<compile_context>
chip_gen: v6e
topology: v6e:2x2x1
jax: 0.10.0
libtpu: 0.0.40
codegen_flags: <defaults>
</compile_context>

<pallas_src>
import jax
import jax.numpy as jnp
from jax.experimental import pallas as pl
from jax.experimental.pallas import tpu as pltpu


HIDDEN = 1000
H_PAD = 1024     # hidden 1000 -> 1024 (lane-dense intermediates)
O_PAD = 128      # out_going 100 -> 128 (unmasked output stores)
A_PAD = 128      # a features 100 -> 128


def _leaky(v, slope=0.05):
    return jnp.where(v >= 0, v, slope * v)


def _round_up(n, m):
    return ((n + m - 1) // m) * m


def _pad2(m, rows, cols):
    return jnp.pad(m, ((0, rows - m.shape[0]), (0, cols - m.shape[1])))


def rnn_module_kernel(x_ref, a_ref,
                      w1_ref, w2_ref, w3_ref, wa_ref,
                      b12_ref, b3a_ref,
                      o_ref):
    """One timestep. x_ref/a_ref: (B, C_PAD)/(B, A_PAD) bf16; weights bf16;
    b12_ref: (2, H_PAD) f32 [b1; b2]; b3a_ref: (2, O_PAD) f32 [b3; ba]."""
    bf16 = jnp.bfloat16

    # x_mod: fc_1 -> leaky -> fc_2 -> leaky -> fc_3 -> leaky
    h = jnp.dot(x_ref[...], w1_ref[...], preferred_element_type=jnp.float32)
    h = _leaky(h + b12_ref[0:1, :])

    h = jnp.dot(h.astype(bf16), w2_ref[...], preferred_element_type=jnp.float32)
    h = _leaky(h + b12_ref[1:2, :])

    h = jnp.dot(h.astype(bf16), w3_ref[...], preferred_element_type=jnp.float32)
    h = _leaky(h + b3a_ref[0:1, :])      # leaky_3 happens BEFORE the a_mod add

    # a_mod: Linear(100, 100), no activation before the sum
    a_out = jnp.dot(a_ref[...], wa_ref[...], preferred_element_type=jnp.float32)
    a_out = a_out + b3a_ref[1:2, :]

    # Final add + LeakyReLU.  Padded lanes stay exactly 0 (zero-padded weight
    # columns/rows and biases, leaky(0)=0) and are sliced off outside.
    o_ref[...] = _leaky(h + a_out).astype(o_ref.dtype)


def prepare_params(params):
    """Pad weights to lane/sublane-dense shapes, cast weights to bf16, and
    pack the four biases into two f32 arrays."""
    (w1, b1, w2, b2, w3, b3, wa, ba) = params
    c_pad = _round_up(w1.shape[0], 128)

    w1p = _pad2(w1, c_pad, H_PAD).astype(jnp.bfloat16)
    w2p = _pad2(w2, H_PAD, H_PAD).astype(jnp.bfloat16)
    w3p = _pad2(w3, H_PAD, O_PAD).astype(jnp.bfloat16)
    wap = _pad2(wa, A_PAD, O_PAD).astype(jnp.bfloat16)

    b12 = jnp.concatenate([_pad2(b1, 1, H_PAD), _pad2(b2, 1, H_PAD)], axis=0)
    b3a = jnp.concatenate([_pad2(b3, 1, O_PAD), _pad2(ba, 1, O_PAD)], axis=0)
    return (w1p, w2p, w3p, wap, b12, b3a)


def rnn_module_forward_seq(xs, a_seq, prepared_params, out_going=100):
    """Run T timesteps in one kernel launch (weights stay VMEM-resident).

    xs:    (T, B, cell_count) f32
    a_seq: (T, B, 100)        f32
    returns (T, B, out_going) f32
    """
    (w1p, w2p, w3p, wap, b12, b3a) = prepared_params
    T, B, _ = xs.shape
    c_pad = w1p.shape[0]

    # One-time (per sequence) pad + bf16 cast of the streamed activations.
    xs_p = jnp.pad(xs, ((0, 0), (0, 0), (0, c_pad - xs.shape[2]))
                   ).astype(jnp.bfloat16)
    a_p = jnp.pad(a_seq, ((0, 0), (0, 0), (0, A_PAD - a_seq.shape[2]))
                  ).astype(jnp.bfloat16)

    const = lambda t: (0, 0)             # weights/biases: resident across T
    in_specs = [
        pl.BlockSpec((None, B, c_pad), lambda t: (t, 0, 0)),   # x_t
        pl.BlockSpec((None, B, A_PAD), lambda t: (t, 0, 0)),   # a_t
        pl.BlockSpec(w1p.shape, const),
        pl.BlockSpec(w2p.shape, const),
        pl.BlockSpec(w3p.shape, const),
        pl.BlockSpec(wap.shape, const),
        pl.BlockSpec(b12.shape, const),
        pl.BlockSpec(b3a.shape, const),
    ]
    out_spec = pl.BlockSpec((None, B, O_PAD), lambda t: (t, 0, 0))

    out_pad = pl.pallas_call(
        rnn_module_kernel,
        grid=(T,),
        out_shape=jax.ShapeDtypeStruct((T, B, O_PAD), jnp.float32),
        in_specs=in_specs,
        out_specs=out_spec,
        compiler_params=pltpu.CompilerParams(
            dimension_semantics=("arbitrary",),
            vmem_limit_bytes=32 << 20),
    )(xs_p, a_p, w1p, w2p, w3p, wap, b12, b3a)

    return out_pad[:, :, :out_going]


def rnn_module_forward(x, a, prepared_params, out_going=100):
    """Single-step convenience wrapper: x (B, cell_count), a (B, 100)."""
    out = rnn_module_forward_seq(x[None], a[None], prepared_params, out_going)
    return out[0]


def init_params(key, cell_count, out_going=100):
    """Synthetic parameters matching the PyTorch module shapes.
    Stored as (in, out), i.e. transposed vs. torch.nn.Linear.weight."""
    ks = jax.random.split(key, 8)

    def lin(kw, kb, fan_in, fan_out):
        bound = 1.0 / jnp.sqrt(fan_in)
        w = jax.random.uniform(kw, (fan_in, fan_out), jnp.float32, -bound, bound)
        b = jax.random.uniform(kb, (1, fan_out), jnp.float32, -bound, bound)
        return w, b

    w1, b1 = lin(ks[0], ks[1], cell_count, HIDDEN)    # fc_1
    w2, b2 = lin(ks[2], ks[3], HIDDEN, HIDDEN)        # fc_2
    w3, b3 = lin(ks[4], ks[5], HIDDEN, out_going)     # fc_3
    wa, ba = lin(ks[6], ks[7], 100, 100)              # a_mod
    return (w1, b1, w2, b2, w3, b3, wa, ba)


def reference_forward_f32(x, a, params):
    (w1, b1, w2, b2, w3, b3, wa, ba) = params
    h = _leaky(x @ w1 + b1)
    h = _leaky(h @ w2 + b2)
    h = _leaky(h @ w3 + b3)
    return _leaky(h + (a @ wa + ba))


def reference_forward_bf16(x, a, params):
    """Mirrors the kernel's math (bf16 operands, f32 accumulation)."""
    (w1, b1, w2, b2, w3, b3, wa, ba) = params
    bf16 = jnp.bfloat16

    def mm(u, w):
        return jnp.dot(u.astype(bf16), w.astype(bf16),
                       preferred_element_type=jnp.float32)

    h = _leaky(mm(x, w1) + b1)
    h = _leaky(mm(h, w2) + b2)
    h = _leaky(mm(h, w3) + b3)
    return _leaky(h + (mm(a, wa) + ba))


if __name__ == "__main__":
    key = jax.random.PRNGKey(0)
    k_x, k_a, k_p = jax.random.split(key, 3)

    T = 4            # timesteps handled inside one kernel launch
    B = 8            # batch
    cell_count = 64  # input feature count
    out_going = 100  # must be 100 so x_mod(x) + a_mod(a) broadcasts (torch default)

    xs = jax.random.normal(k_x, (T, B, cell_count), dtype=jnp.float32)
    a_seq = jax.random.normal(k_a, (T, B, 100), dtype=jnp.float32)
    params = init_params(k_p, cell_count, out_going)
    prepared = prepare_params(params)

    out = rnn_module_forward_seq(xs, a_seq, prepared, out_going=out_going)
    out = jax.block_until_ready(out)
    assert out.shape == (T, B, out_going), out.shape

    # Exact-semantics check against a bf16-mirrored reference.
    ref_bf16 = reference_forward_bf16(xs, a_seq, params)
    assert jnp.allclose(out, ref_bf16, atol=2e-2, rtol=2e-2), \
        "mismatch vs bf16 reference"

    # Sanity check against the pure-f32 reference (looser tolerance: weights
    # and activations are streamed as bf16 inside the kernel).
    ref_f32 = reference_forward_f32(xs, a_seq, params)
    assert jnp.allclose(out, ref_f32, atol=1e-1, rtol=1e-1), \
        "mismatch vs f32 reference"

    # Single-step wrapper still works (T=1 path).
    out1 = jax.block_until_ready(
        rnn_module_forward(xs[0], a_seq[0], prepared, out_going=out_going))
    assert out1.shape == (B, out_going)
    assert jnp.allclose(out1, out[0], atol=1e-5, rtol=1e-5)

    print("KERNEL_OK")
</pallas_src>

<mosaic_0001>
module attributes {stable_mosaic.version = 11 : i64} {
  func.func @rnn_module_kernel(%arg0: i32, %arg1: memref<1x8x128xbf16, #tpu.memory_space<vmem>>, %arg2: memref<1x8x128xbf16, #tpu.memory_space<vmem>>, %arg3: memref<128x1024xbf16, #tpu.memory_space<vmem>>, %arg4: memref<1024x1024xbf16, #tpu.memory_space<vmem>>, %arg5: memref<1024x128xbf16, #tpu.memory_space<vmem>>, %arg6: memref<128x128xbf16, #tpu.memory_space<vmem>>, %arg7: memref<2x1024xf32, #tpu.memory_space<vmem>>, %arg8: memref<2x128xf32, #tpu.memory_space<vmem>>, %arg9: memref<1x8x128xf32, #tpu.memory_space<vmem>>) attributes {dimension_semantics = [#tpu.dimension_semantics<arbitrary>], iteration_bounds = array<i64: 4>, scalar_prefetch = 0 : i64, scratch_operands = 0 : i64, tpu.core_type = #tpu.core_type<tc>, window_params = [{transform_indices = @transform_0, window_bounds = array<i64: 1, 8, 128>}, {transform_indices = @transform_1, window_bounds = array<i64: 1, 8, 128>}, {pipeline_mode = #tpu.pipeline_mode<synchronous>, transform_indices = @transform_2, window_bounds = array<i64: 128, 1024>}, {pipeline_mode = #tpu.pipeline_mode<synchronous>, transform_indices = @transform_3, window_bounds = array<i64: 1024, 1024>}, {pipeline_mode = #tpu.pipeline_mode<synchronous>, transform_indices = @transform_4, window_bounds = array<i64: 1024, 128>}, {pipeline_mode = #tpu.pipeline_mode<synchronous>, transform_indices = @transform_5, window_bounds = array<i64: 128, 128>}, {pipeline_mode = #tpu.pipeline_mode<synchronous>, transform_indices = @transform_6, window_bounds = array<i64: 2, 1024>}, {pipeline_mode = #tpu.pipeline_mode<synchronous>, transform_indices = @transform_7, window_bounds = array<i64: 2, 128>}, {transform_indices = @transform_8, window_bounds = array<i64: 1, 8, 128>}]} {
    %c0 = arith.constant 0 : index
    %c0_0 = arith.constant 0 : index
    %c0_1 = arith.constant 0 : index
    %0 = vector.load %arg1[%c0, %c0_0, %c0_1] : memref<1x8x128xbf16, #tpu.memory_space<vmem>>, vector<1x8x128xbf16>
    %1 = vector.shape_cast %0 : vector<1x8x128xbf16> to vector<8x128xbf16>
    %c0_2 = arith.constant 0 : index
    %c0_3 = arith.constant 0 : index
    %2 = vector.load %arg3[%c0_2, %c0_3] : memref<128x1024xbf16, #tpu.memory_space<vmem>>, vector<128x1024xbf16>
    %cst = arith.constant dense<0.000000e+00> : vector<8x1024xf32>
    %3 = tpu.matmul %1, %2, %cst {dimension_numbers = #tpu.dot_dimension_numbers<[1], [0], [0], [1], [0, 0, 1, 1], [], []>} : vector<8x128xbf16>, vector<128x1024xbf16>, vector<8x1024xf32> -> vector<8x1024xf32>
    %c0_4 = arith.constant 0 : index
    %c0_5 = arith.constant 0 : index
    %4 = vector.load %arg7[%c0_4, %c0_5] : memref<2x1024xf32, #tpu.memory_space<vmem>>, vector<1x1024xf32>
    %5 = vector.broadcast %4 : vector<1x1024xf32> to vector<8x1024xf32>
    %6 = arith.addf %3, %5 : vector<8x1024xf32>
    %cst_6 = arith.constant 0.000000e+00 : f32
    %7 = vector.broadcast %cst_6 : f32 to vector<8x1024xf32>
    %8 = arith.cmpf oge, %6, %7 : vector<8x1024xf32>
    %cst_7 = arith.constant 5.000000e-02 : f32
    %9 = vector.broadcast %cst_7 : f32 to vector<8x1024xf32>
    %10 = arith.mulf %9, %6 : vector<8x1024xf32>
    %11 = arith.select %8, %6, %10 : vector<8x1024xi1>, vector<8x1024xf32>
    %12 = arith.truncf %11 : vector<8x1024xf32> to vector<8x1024xbf16>
    %c0_8 = arith.constant 0 : index
    %c0_9 = arith.constant 0 : index
    %13 = vector.load %arg4[%c0_8, %c0_9] : memref<1024x1024xbf16, #tpu.memory_space<vmem>>, vector<1024x1024xbf16>
    %cst_10 = arith.constant dense<0.000000e+00> : vector<8x1024xf32>
    %14 = tpu.matmul %12, %13, %cst_10 {dimension_numbers = #tpu.dot_dimension_numbers<[1], [0], [0], [1], [0, 0, 1, 1], [], []>} : vector<8x1024xbf16>, vector<1024x1024xbf16>, vector<8x1024xf32> -> vector<8x1024xf32>
    %c1 = arith.constant 1 : index
    %c0_11 = arith.constant 0 : index
    %15 = vector.load %arg7[%c1, %c0_11] : memref<2x1024xf32, #tpu.memory_space<vmem>>, vector<1x1024xf32>
    %16 = vector.broadcast %15 : vector<1x1024xf32> to vector<8x1024xf32>
    %17 = arith.addf %14, %16 : vector<8x1024xf32>
    %cst_12 = arith.constant 0.000000e+00 : f32
    %18 = vector.broadcast %cst_12 : f32 to vector<8x1024xf32>
    %19 = arith.cmpf oge, %17, %18 : vector<8x1024xf32>
    %cst_13 = arith.constant 5.000000e-02 : f32
    %20 = vector.broadcast %cst_13 : f32 to vector<8x1024xf32>
    %21 = arith.mulf %20, %17 : vector<8x1024xf32>
    %22 = arith.select %19, %17, %21 : vector<8x1024xi1>, vector<8x1024xf32>
    %23 = arith.truncf %22 : vector<8x1024xf32> to vector<8x1024xbf16>
    %c0_14 = arith.constant 0 : index
    %c0_15 = arith.constant 0 : index
    %24 = vector.load %arg5[%c0_14, %c0_15] : memref<1024x128xbf16, #tpu.memory_space<vmem>>, vector<1024x128xbf16>
    %cst_16 = arith.constant dense<0.000000e+00> : vector<8x128xf32>
    %25 = tpu.matmul %23, %24, %cst_16 {dimension_numbers = #tpu.dot_dimension_numbers<[1], [0], [0], [1], [0, 0, 1, 1], [], []>} : vector<8x1024xbf16>, vector<1024x128xbf16>, vector<8x128xf32> -> vector<8x128xf32>
    %c0_17 = arith.constant 0 : index
    %c0_18 = arith.constant 0 : index
    %26 = vector.load %arg8[%c0_17, %c0_18] : memref<2x128xf32, #tpu.memory_space<vmem>>, vector<1x128xf32>
    %27 = vector.broadcast %26 : vector<1x128xf32> to vector<8x128xf32>
    %28 = arith.addf %25, %27 : vector<8x128xf32>
    %cst_19 = arith.constant 0.000000e+00 : f32
    %29 = vector.broadcast %cst_19 : f32 to vector<8x128xf32>
    %30 = arith.cmpf oge, %28, %29 : vector<8x128xf32>
    %cst_20 = arith.constant 5.000000e-02 : f32
    %31 = vector.broadcast %cst_20 : f32 to vector<8x128xf32>
    %32 = arith.mulf %31, %28 : vector<8x128xf32>
    %33 = arith.select %30, %28, %32 : vector<8x128xi1>, vector<8x128xf32>
    %c0_21 = arith.constant 0 : index
    %c0_22 = arith.constant 0 : index
    %c0_23 = arith.constant 0 : index
    %34 = vector.load %arg2[%c0_21, %c0_22, %c0_23] : memref<1x8x128xbf16, #tpu.memory_space<vmem>>, vector<1x8x128xbf16>
    %35 = vector.shape_cast %34 : vector<1x8x128xbf16> to vector<8x128xbf16>
    %c0_24 = arith.constant 0 : index
    %c0_25 = arith.constant 0 : index
    %36 = vector.load %arg6[%c0_24, %c0_25] : memref<128x128xbf16, #tpu.memory_space<vmem>>, vector<128x128xbf16>
    %cst_26 = arith.constant dense<0.000000e+00> : vector<8x128xf32>
    %37 = tpu.matmul %35, %36, %cst_26 {dimension_numbers = #tpu.dot_dimension_numbers<[1], [0], [0], [1], [0, 0, 1, 1], [], []>} : vector<8x128xbf16>, vector<128x128xbf16>, vector<8x128xf32> -> vector<8x128xf32>
    %c1_27 = arith.constant 1 : index
    %c0_28 = arith.constant 0 : index
    %38 = vector.load %arg8[%c1_27, %c0_28] : memref<2x128xf32, #tpu.memory_space<vmem>>, vector<1x128xf32>
    %39 = vector.broadcast %38 : vector<1x128xf32> to vector<8x128xf32>
    %40 = arith.addf %37, %39 : vector<8x128xf32>
    %41 = arith.addf %33, %40 : vector<8x128xf32>
    %cst_29 = arith.constant 0.000000e+00 : f32
    %42 = vector.broadcast %cst_29 : f32 to vector<8x128xf32>
    %43 = arith.cmpf oge, %41, %42 : vector<8x128xf32>
    %cst_30 = arith.constant 5.000000e-02 : f32
    %44 = vector.broadcast %cst_30 : f32 to vector<8x128xf32>
    %45 = arith.mulf %44, %41 : vector<8x128xf32>
    %46 = arith.select %43, %41, %45 : vector<8x128xi1>, vector<8x128xf32>
    %c0_31 = arith.constant 0 : index
    %c0_32 = arith.constant 0 : index
    %c0_33 = arith.constant 0 : index
    %47 = vector.load %arg9[%c0_31, %c0_32, %c0_33] : memref<1x8x128xf32, #tpu.memory_space<vmem>>, vector<1x8x128xf32>
    %48 = vector.shape_cast %47 : vector<1x8x128xf32> to vector<8x128xf32>
    %49 = vector.shape_cast %46 : vector<8x128xf32> to vector<1x8x128xf32>
    tpu.vector_store %arg9[%c0_31, %c0_32, %c0_33], %49 {strides = array<i32>} : memref<1x8x128xf32, #tpu.memory_space<vmem>>, vector<1x8x128xf32>,
    return
  }
  func.func @transform_0(%arg0: i32) -> (i32, i32, i32) {
    %c0_i32 = arith.constant 0 : i32
    %c0_i32_0 = arith.constant 0 : i32
    %c0_i32_1 = arith.constant 0 : i32
    return %arg0, %c0_i32, %c0_i32_0 : i32, i32, i32
  }
  func.func @transform_1(%arg0: i32) -> (i32, i32, i32) {
    %c0_i32 = arith.constant 0 : i32
    %c0_i32_0 = arith.constant 0 : i32
    %c0_i32_1 = arith.constant 0 : i32
    return %arg0, %c0_i32, %c0_i32_0 : i32, i32, i32
  }
  func.func @transform_2(%arg0: i32) -> (i32, i32) {
    %c0_i32 = arith.constant 0 : i32
    %c0_i32_0 = arith.constant 0 : i32
    %c0_i32_1 = arith.constant 0 : i32
    return %c0_i32, %c0_i32_0 : i32, i32
  }
  func.func @transform_3(%arg0: i32) -> (i32, i32) {
    %c0_i32 = arith.constant 0 : i32
    %c0_i32_0 = arith.constant 0 : i32
    %c0_i32_1 = arith.constant 0 : i32
    return %c0_i32, %c0_i32_0 : i32, i32
  }
  func.func @transform_4(%arg0: i32) -> (i32, i32) {
    %c0_i32 = arith.constant 0 : i32
    %c0_i32_0 = arith.constant 0 : i32
    %c0_i32_1 = arith.constant 0 : i32
    return %c0_i32, %c0_i32_0 : i32, i32
  }
  func.func @transform_5(%arg0: i32) -> (i32, i32) {
    %c0_i32 = arith.constant 0 : i32
    %c0_i32_0 = arith.constant 0 : i32
    %c0_i32_1 = arith.constant 0 : i32
    return %c0_i32, %c0_i32_0 : i32, i32
  }
  func.func @transform_6(%arg0: i32) -> (i32, i32) {
    %c0_i32 = arith.constant 0 : i32
    %c0_i32_0 = arith.constant 0 : i32
    %c0_i32_1 = arith.constant 0 : i32
    return %c0_i32, %c0_i32_0 : i32, i32
  }
  func.func @transform_7(%arg0: i32) -> (i32, i32) {
    %c0_i32 = arith.constant 0 : i32
    %c0_i32_0 = arith.constant 0 : i32
    %c0_i32_1 = arith.constant 0 : i32
    return %c0_i32, %c0_i32_0 : i32, i32
  }
  func.func @transform_8(%arg0: i32) -> (i32, i32, i32) {
    %c0_i32 = arith.constant 0 : i32
    %c0_i32_0 = arith.constant 0 : i32
    %c0_i32_1 = arith.constant 0 : i32
    return %arg0, %c0_i32, %c0_i32_0 : i32, i32, i32
  }
}

</mosaic_0001>

<llo_original>
// kernel: tpu_custom_call.1
$region0: #{tpu_custom_call.1}
  #allocation0 [shape = 'u32[]', space=smem, size = 0x4, offset = 0x4, fixed_abs, tag = 'smem constant byte address 0x4 - core index']
  #allocation1 [shape = 'u32[144,128]{1,0:T(1,128)}', space=vmem, size = 0x12000, scoped, tag = 'internal scratch']
  %s0 = inlined_call_operand.hbm [shape: bf16[4,8,128], index: 0, kind: input, shape index: {}]
  %s1 = inlined_call_operand.hbm [shape: bf16[4,8,128], index: 1, kind: input, shape index: {}]
  %s2 = inlined_call_operand.hbm [shape: bf16[128,1024], index: 2, kind: input, shape index: {}]
  %s3 = inlined_call_operand.hbm [shape: bf16[1024,1024], index: 3, kind: input, shape index: {}]
  %s4 = inlined_call_operand.hbm [shape: bf16[1024,128], index: 4, kind: input, shape index: {}]
  %s5 = inlined_call_operand.hbm [shape: bf16[128,128], index: 5, kind: input, shape index: {}]
  %s6 = inlined_call_operand.hbm [shape: f32[2,1024], index: 6, kind: input, shape index: {}]
  %s7 = inlined_call_operand.hbm [shape: f32[2,128], index: 7, kind: input, shape index: {}]
  %s8 = inlined_call_operand.hbm [shape: f32[4,8,128], index: 8, kind: output, shape index: {}]
  %s9 = sld [smem:[#allocation0]]
  $region97: #{tpu_custom_call.1} parent=0
    _
  %s11 = ssub.s32 1, %s9
  %s12 = scalar_select 0, %s11, %s9
  $region1: #{tpu_custom_call.1} parent=0
    #allocation2 [shape = 'u8[4096]{0}', space=vmem, size = 0x1000, scoped, tag = 'input window, operand 0']
    #allocation3 [shape = 's32[2]{0}', space=sflag, size = 0x8, scoped, tag = 'scoped memory for tpu_custom_call.1']
    #allocation4 [shape = 's32[2]{0}', space=sflag, size = 0x8, scoped, tag = 'scoped memory for tpu_custom_call.1']
    #allocation5 [shape = 'u8[4096]{0}', space=vmem, size = 0x1000, scoped, tag = 'input window, operand 1']
    #allocation6 [shape = 's32[2]{0}', space=sflag, size = 0x8, scoped, tag = 'scoped memory for tpu_custom_call.1']
    #allocation7 [shape = 'u8[262144]{0}', space=vmem, size = 0x40000, scoped, tag = 'input window, operand 2, single buffered']
    #allocation8 [shape = 'u8[2097152]{0}', space=vmem, size = 0x200000, scoped, tag = 'input window, operand 3, single buffered']
    #allocation9 [shape = 's32[1]{0}', space=sflag, size = 0x4, scoped, tag = 'scoped memory for tpu_custom_call.1']
    #allocation10 [shape = 'u8[262144]{0}', space=vmem, size = 0x40000, scoped, tag = 'input window, operand 4, single buffered']
    #allocation11 [shape = 'u8[32768]{0}', space=vmem, size = 0x8000, scoped, tag = 'input window, operand 5, single buffered']
    #allocation12 [shape = 's32[1]{0}', space=sflag, size = 0x4, scoped, tag = 'scoped memory for tpu_custom_call.1']
    #allocation13 [shape = 'u8[8192]{0}', space=vmem, size = 0x2000, scoped, tag = 'input window, operand 6, single buffered']
    #allocation14 [shape = 'u8[1024]{0}', space=vmem, size = 0x400, scoped, tag = 'input window, operand 7, single buffered']
    #allocation15 [shape = 's32[1]{0}', space=sflag, size = 0x4, scoped, tag = 'scoped memory for tpu_custom_call.1']
    #allocation16 [shape = 'u8[8192]{0}', space=vmem, size = 0x2000, scoped, tag = 'output window, operand 0']
    %13 = vsyncpa [#allocation3], 0
    %s14 = scalar_lea.sflag [#allocation3], 1
    %15 = vsyncpa %s14, 0
    %16 = vsyncpa [#allocation6], 0
    %s17 = scalar_lea.sflag [#allocation6], 1
    %18 = vsyncpa %s17, 0
    %19 = vsyncpa [#allocation9], 0
    %20 = vsyncpa [#allocation12], 0
    %21 = vsyncpa [#allocation15], 0
    %22 = vsyncpa [#allocation4], 0
    %s23 = scalar_lea.sflag [#allocation4], 1
    %24 = vsyncpa %s23, 0
    loop: start=0, step=1, limit=6
    $region2: #{tpu_custom_call.1} parent=1 // loop_pre_header
      _
    $region3: #{tpu_custom_call.1} parent=1 // loop_header
      %s26 = sphi 0, %s30
      %p27 = scmp.ge.s32.totalorder %s26, 6
      %s36 = sphi 0, %s38
      %s39 = sphi 0, %s36
      %s40 = sphi 0, %s39
      %s56 = sphi 0, %s40
      %s62 = sphi 0, %s64
      %s65 = sphi 0, %s62
      %s66 = sphi 0, %s65
      %s82 = sphi 0, %s66
      %s86 = sphi 0, %s86
      %s88 = sphi 0, %s86
      %s89 = sphi 0, %s88
      %s103 = sphi 0, %s89
      %s107 = sphi 0, %s107
      %s109 = sphi 0, %s107
      %s110 = sphi 0, %s109
      %s124 = sphi 0, %s110
      %s128 = sphi 0, %s128
      %s130 = sphi 0, %s128
      %s131 = sphi 0, %s130
      %s145 = sphi 0, %s131
      %s149 = sphi 0, %s149
      %s151 = sphi 0, %s149
      %s152 = sphi 0, %s151
      %s166 = sphi 0, %s152
      %s170 = sphi 0, %s170
      %s172 = sphi 0, %s170
      %s173 = sphi 0, %s172
      %s187 = sphi 0, %s173
      %s191 = sphi 0, %s191
      %s193 = sphi 0, %s191
      %s194 = sphi 0, %s193
      %s208 = sphi 0, %s194
      %s214 = sphi 0, %s216
      %s217 = sphi 0, %s214
      %s218 = sphi 0, %s217
      %s234 = sphi 0, %s218
    $region4: #{tpu_custom_call.1} parent=1 // loop_header_branch
      %29 = sbr.rel (%p27) target = $region8
    $region5: #{tpu_custom_call.1} parent=1 // loop_body
      %s31 = ssub.s32 %s26, 1
      %s32 = ssub.s32 %s26, 2
      %s33 = sadd.s32 %s26, 1
      %s34 = ssub.s32 %s26, %s33
      %p35 = scmp.eq.s32.totalorder %s34, 0
      %s37 = sadd.s32 %s36, 1
      %s38 = scalar_select %p35, %s36, %s37
      %p41 = pneg %p35
      %p42 = scmp.eq.s32.totalorder %s26, 3
      %p43 = por %p41, %p42
      %p44 = scmp.ne.s32.totalorder %s36, %s39
      %p45 = scmp.eq.s32.totalorder %s26, 0
      %p46 = por %p44, %p45
      %p47 = scmp.ne.s32.totalorder %s36, %s39
      %p48 = scmp.eq.s32.totalorder %s31, 3
      %p49 = por %p47, %p48
      %p50 = scmp.ne.s32.totalorder %s39, %s40
      %p51 = scmp.eq.s32.totalorder %s31, 0
      %p52 = por %p50, %p51
      %p53 = scmp.ne.s32.totalorder %s39, %s40
      %p54 = scmp.eq.s32.totalorder %s32, 3
      %p55 = por %p53, %p54
      %p57 = scmp.ne.s32.totalorder %s40, %s56
      %p58 = scmp.eq.s32.totalorder %s32, 0
      %p59 = por %p57, %p58
      %s60 = ssub.s32 %s26, %s33
      %p61 = scmp.eq.s32.totalorder %s60, 0
      %s63 = sadd.s32 %s62, 1
      %s64 = scalar_select %p61, %s62, %s63
      %p67 = pneg %p61
      %p68 = scmp.eq.s32.totalorder %s26, 3
      %p69 = por %p67, %p68
      %p70 = scmp.ne.s32.totalorder %s62, %s65
      %p71 = scmp.eq.s32.totalorder %s26, 0
      %p72 = por %p70, %p71
      %p73 = scmp.ne.s32.totalorder %s62, %s65
      %p74 = scmp.eq.s32.totalorder %s31, 3
      %p75 = por %p73, %p74
      %p76 = scmp.ne.s32.totalorder %s65, %s66
      %p77 = scmp.eq.s32.totalorder %s31, 0
      %p78 = por %p76, %p77
      %p79 = scmp.ne.s32.totalorder %s65, %s66
      %p80 = scmp.eq.s32.totalorder %s32, 3
      %p81 = por %p79, %p80
      %p83 = scmp.ne.s32.totalorder %s66, %s82
      %p84 = scmp.eq.s32.totalorder %s32, 0
      %p85 = por %p83, %p84
      %s87 = sadd.s32 %s86, 1
      %p90 = scmp.eq.s32.totalorder %s26, 3
      %p91 = scmp.ne.s32.totalorder %s86, %s88
      %p92 = scmp.eq.s32.totalorder %s26, 0
      %p93 = por %p91, %p92
      %p94 = scmp.ne.s32.totalorder %s86, %s88
      %p95 = scmp.eq.s32.totalorder %s31, 3
      %p96 = por %p94, %p95
      %p97 = scmp.ne.s32.totalorder %s88, %s89
      %p98 = scmp.eq.s32.totalorder %s31, 0
      %p99 = por %p97, %p98
      %p100 = scmp.ne.s32.totalorder %s88, %s89
      %p101 = scmp.eq.s32.totalorder %s32, 3
      %p102 = por %p100, %p101
      %p104 = scmp.ne.s32.totalorder %s89, %s103
      %p105 = scmp.eq.s32.totalorder %s32, 0
      %p106 = por %p104, %p105
      %s108 = sadd.s32 %s107, 1
      %p111 = scmp.eq.s32.totalorder %s26, 3
      %p112 = scmp.ne.s32.totalorder %s107, %s109
      %p113 = scmp.eq.s32.totalorder %s26, 0
      %p114 = por %p112, %p113
      %p115 = scmp.ne.s32.totalorder %s107, %s109
      %p116 = scmp.eq.s32.totalorder %s31, 3
      %p117 = por %p115, %p116
      %p118 = scmp.ne.s32.totalorder %s109, %s110
      %p119 = scmp.eq.s32.totalorder %s31, 0
      %p120 = por %p118, %p119
      %p121 = scmp.ne.s32.totalorder %s109, %s110
      %p122 = scmp.eq.s32.totalorder %s32, 3
      %p123 = por %p121, %p122
      %p125 = scmp.ne.s32.totalorder %s110, %s124
      %p126 = scmp.eq.s32.totalorder %s32, 0
      %p127 = por %p125, %p126
      %s129 = sadd.s32 %s128, 1
      %p132 = scmp.eq.s32.totalorder %s26, 3
      %p133 = scmp.ne.s32.totalorder %s128, %s130
      %p134 = scmp.eq.s32.totalorder %s26, 0
      %p135 = por %p133, %p134
      %p136 = scmp.ne.s32.totalorder %s128, %s130
      %p137 = scmp.eq.s32.totalorder %s31, 3
      %p138 = por %p136, %p137
      %p139 = scmp.ne.s32.totalorder %s130, %s131
      %p140 = scmp.eq.s32.totalorder %s31, 0
      %p141 = por %p139, %p140
      %p142 = scmp.ne.s32.totalorder %s130, %s131
      %p143 = scmp.eq.s32.totalorder %s32, 3
      %p144 = por %p142, %p143
      %p146 = scmp.ne.s32.totalorder %s131, %s145
      %p147 = scmp.eq.s32.totalorder %s32, 0
      %p148 = por %p146, %p147
      %s150 = sadd.s32 %s149, 1
      %p153 = scmp.eq.s32.totalorder %s26, 3
      %p154 = scmp.ne.s32.totalorder %s149, %s151
      %p155 = scmp.eq.s32.totalorder %s26, 0
      %p156 = por %p154, %p155
      %p157 = scmp.ne.s32.totalorder %s149, %s151
      %p158 = scmp.eq.s32.totalorder %s31, 3
      %p159 = por %p157, %p158
      %p160 = scmp.ne.s32.totalorder %s151, %s152
      %p161 = scmp.eq.s32.totalorder %s31, 0
      %p162 = por %p160, %p161
      %p163 = scmp.ne.s32.totalorder %s151, %s152
      %p164 = scmp.eq.s32.totalorder %s32, 3
      %p165 = por %p163, %p164
      %p167 = scmp.ne.s32.totalorder %s152, %s166
      %p168 = scmp.eq.s32.totalorder %s32, 0
      %p169 = por %p167, %p168
      %s171 = sadd.s32 %s170, 1
      %p174 = scmp.eq.s32.totalorder %s26, 3
      %p175 = scmp.ne.s32.totalorder %s170, %s172
      %p176 = scmp.eq.s32.totalorder %s26, 0
      %p177 = por %p175, %p176
      %p178 = scmp.ne.s32.totalorder %s170, %s172
      %p179 = scmp.eq.s32.totalorder %s31, 3
      %p180 = por %p178, %p179
      %p181 = scmp.ne.s32.totalorder %s172, %s173
      %p182 = scmp.eq.s32.totalorder %s31, 0
      %p183 = por %p181, %p182
      %p184 = scmp.ne.s32.totalorder %s172, %s173
      %p185 = scmp.eq.s32.totalorder %s32, 3
      %p186 = por %p184, %p185
      %p188 = scmp.ne.s32.totalorder %s173, %s187
      %p189 = scmp.eq.s32.totalorder %s32, 0
      %p190 = por %p188, %p189
      %s192 = sadd.s32 %s191, 1
      %p195 = scmp.eq.s32.totalorder %s26, 3
      %p196 = scmp.ne.s32.totalorder %s191, %s193
      %p197 = scmp.eq.s32.totalorder %s26, 0
      %p198 = por %p196, %p197
      %p199 = scmp.ne.s32.totalorder %s191, %s193
      %p200 = scmp.eq.s32.totalorder %s31, 3
      %p201 = por %p199, %p200
      %p202 = scmp.ne.s32.totalorder %s193, %s194
      %p203 = scmp.eq.s32.totalorder %s31, 0
      %p204 = por %p202, %p203
      %p205 = scmp.ne.s32.totalorder %s193, %s194
      %p206 = scmp.eq.s32.totalorder %s32, 3
      %p207 = por %p205, %p206
      %p209 = scmp.ne.s32.totalorder %s194, %s208
      %p210 = scmp.eq.s32.totalorder %s32, 0
      %p211 = por %p209, %p210
      %s212 = ssub.s32 %s26, %s33
      %p213 = scmp.eq.s32.totalorder %s212, 0
      %s215 = sadd.s32 %s214, 1
      %s216 = scalar_select %p213, %s214, %s215
      %p219 = pneg %p213
      %p220 = scmp.eq.s32.totalorder %s26, 3
      %p221 = por %p219, %p220
      %p222 = scmp.ne.s32.totalorder %s214, %s217
      %p223 = scmp.eq.s32.totalorder %s26, 0
      %p224 = por %p222, %p223
      %p225 = scmp.ne.s32.totalorder %s214, %s217
      %p226 = scmp.eq.s32.totalorder %s31, 3
      %p227 = por %p225, %p226
      %p228 = scmp.ne.s32.totalorder %s217, %s218
      %p229 = scmp.eq.s32.totalorder %s31, 0
      %p230 = por %p228, %p229
      %p231 = scmp.ne.s32.totalorder %s217, %s218
      %p232 = scmp.eq.s32.totalorder %s32, 3
      %p233 = por %p231, %p232
      %p235 = scmp.ne.s32.totalorder %s218, %s234
      %p236 = scmp.eq.s32.totalorder %s32, 0
      %p237 = por %p235, %p236
      %p238 = scmp.le.s32.totalorder 1, %s26
      %p239 = scmp.lt.s32.totalorder %s26, 5
      %p240 = pnand %p238, %p239
      %p241 = pneg %p240
      // Predicated region
      $region9: #{tpu_custom_call.1} parent=5 // pred_check
        _
      $region10: #{tpu_custom_call.1} parent=5 // pred_check_branch
        %243 = sbr.rel (%p240) target = $region12
      $region11: #{tpu_custom_call.1} parent=5 // pred_region
        %s244 = ssub.s32 %s26, 1
        // Predicated region
        $region13: #{tpu_custom_call.1} parent=11 // pred_check
          %p245 = pneg %p99
        $region14: #{tpu_custom_call.1} parent=11 // pred_check_branch
          %247 = sbr.rel (%p245) target = $region16
        $region15: #{tpu_custom_call.1} parent=11 // pred_region
          %s249 = ssub.s32 8192, 8192
          %250 = vsyncadd [#allocation6], %s249
          %s251 = sshll.u32 [#allocation7], 4
          %s252 = int_to_ptr.vmem [resolvable:$true] %s251
          %257 = dma.hbm_to_vmem [thread:$0]  %s2, 8192, %s252, [#allocation6], 512, 512, 32
        $region16: #{tpu_custom_call.1} parent=11 // pred_fallthru
          _
        // Predicated region
        $region17: #{tpu_custom_call.1} parent=11 // pred_check
          %p258 = pneg %p120
        $region18: #{tpu_custom_call.1} parent=11 // pred_check_branch
          %260 = sbr.rel (%p258) target = $region20
        $region19: #{tpu_custom_call.1} parent=11 // pred_region
          %s262 = ssub.s32 65536, 65536
          %263 = vsyncadd [#allocation9], %s262
          %s264 = sshll.u32 [#allocation8], 4
          %s265 = int_to_ptr.vmem [resolvable:$true] %s264
          %270 = dma.hbm_to_vmem [thread:$0]  %s3, 65536, %s265, [#allocation9], 512, 512, 32
        $region20: #{tpu_custom_call.1} parent=11 // pred_fallthru
          _
        // Predicated region
        $region21: #{tpu_custom_call.1} parent=11 // pred_check
          %p271 = pneg %p141
        $region22: #{tpu_custom_call.1} parent=11 // pred_check_branch
          %273 = sbr.rel (%p271) target = $region24
        $region23: #{tpu_custom_call.1} parent=11 // pred_region
          %s275 = ssub.s32 8192, 8192
          %276 = vsyncadd [#allocation9], %s275
          %s277 = sshll.u32 [#allocation10], 4
          %s278 = int_to_ptr.vmem [resolvable:$true] %s277
          %283 = dma.hbm_to_vmem [thread:$0]  %s4, 8192, %s278, [#allocation9], 64, 64, 4
        $region24: #{tpu_custom_call.1} parent=11 // pred_fallthru
          _
        // Predicated region
        $region25: #{tpu_custom_call.1} parent=11 // pred_check
          %p284 = pneg %p162
        $region26: #{tpu_custom_call.1} parent=11 // pred_check_branch
          %286 = sbr.rel (%p284) target = $region28
        $region27: #{tpu_custom_call.1} parent=11 // pred_region
          %s288 = ssub.s32 1024, 1024
          %289 = vsyncadd [#allocation12], %s288
          %s290 = sshll.u32 [#allocation11], 4
          %s291 = int_to_ptr.vmem [resolvable:$true] %s290
          %296 = dma.hbm_to_vmem [thread:$0]  %s5, 1024, %s291, [#allocation12], 64, 64, 4
        $region28: #{tpu_custom_call.1} parent=11 // pred_fallthru
          _
        // Predicated region
        $region29: #{tpu_custom_call.1} parent=11 // pred_check
          %p297 = pneg %p183
        $region30: #{tpu_custom_call.1} parent=11 // pred_check_branch
          %299 = sbr.rel (%p297) target = $region32
        $region31: #{tpu_custom_call.1} parent=11 // pred_region
          %s301 = ssub.s32 256, 256
          %302 = vsyncadd [#allocation12], %s301
          %s304 = sshll.u32 [#allocation13], 4
          %s305 = int_to_ptr.vmem [resolvable:$true] %s304
          %307 = dma.hbm_to_vmem [thread:$0]  %s6, 256, %s305, [#allocation12]
        $region32: #{tpu_custom_call.1} parent=11 // pred_fallthru
          _
        // Predicated region
        $region33: #{tpu_custom_call.1} parent=11 // pred_check
          %p308 = pneg %p204
        $region34: #{tpu_custom_call.1} parent=11 // pred_check_branch
          %310 = sbr.rel (%p308) target = $region36
        $region35: #{tpu_custom_call.1} parent=11 // pred_region
          %s312 = ssub.s32 32, 32
          %313 = vsyncadd [#allocation15], %s312
          %s315 = sshll.u32 [#allocation14], 4
          %s316 = int_to_ptr.vmem [resolvable:$true] %s315
          %318 = dma.hbm_to_vmem [thread:$0]  %s7, 32, %s316, [#allocation15]
        $region36: #{tpu_custom_call.1} parent=11 // pred_fallthru
          _
      $region12: #{tpu_custom_call.1} parent=5 // pred_fallthru
        _
      %p319 = scmp.lt.s32.totalorder %s26, 4
      // Predicated region
      $region37: #{tpu_custom_call.1} parent=5 // pred_check
        %p320 = pneg %p319
      $region38: #{tpu_custom_call.1} parent=5 // pred_check_branch
        %322 = sbr.rel (%p320) target = $region40
      $region39: #{tpu_custom_call.1} parent=5 // pred_region
        // Predicated region
        $region41: #{tpu_custom_call.1} parent=39 // pred_check
          %p323 = pneg %p46
        $region42: #{tpu_custom_call.1} parent=39 // pred_check_branch
          %325 = sbr.rel (%p323) target = $region44
        $region43: #{tpu_custom_call.1} parent=39 // pred_region
          %s326 = sand.u32 %s36, 1
          %s327 = scalar_lea.sflag [#allocation3], %s326
          %s328 = sand.u32 %s36, 1
          %s329 = smul.addr %s328, 4
          %s330 = scalar_lea.vmem [#allocation2], %s329
          %s332 = ssub.s32 64, 64
          %333 = vsyncadd %s327, %s332
          %s334 = smul.addr %s26, 64
          %s335 = scalar_lea.hbm %s0, %s334
          %s337 = sshll.u32 %s330, 4
          %s338 = int_to_ptr.vmem [resolvable:$true] %s337
          %340 = dma.hbm_to_vmem [thread:$0]  %s335, 64, %s338, %s327
        $region44: #{tpu_custom_call.1} parent=39 // pred_fallthru
          _
        // Predicated region
        $region45: #{tpu_custom_call.1} parent=39 // pred_check
          %p341 = pneg %p72
        $region46: #{tpu_custom_call.1} parent=39 // pred_check_branch
          %343 = sbr.rel (%p341) target = $region48
        $region47: #{tpu_custom_call.1} parent=39 // pred_region
          %s344 = sand.u32 %s26, 1
          %s345 = scalar_lea.sflag [#allocation6], %s344
          %s346 = sand.u32 %s62, 1
          %s347 = smul.addr %s346, 4
          %s348 = scalar_lea.vmem [#allocation5], %s347
          %s350 = ssub.s32 64, 64
          %351 = vsyncadd %s345, %s350
          %s352 = smul.addr %s26, 64
          %s353 = scalar_lea.hbm %s1, %s352
          %s355 = sshll.u32 %s348, 4
          %s356 = int_to_ptr.vmem [resolvable:$true] %s355
          %358 = dma.hbm_to_vmem [thread:$0]  %s353, 64, %s356, %s345
        $region48: #{tpu_custom_call.1} parent=39 // pred_fallthru
          _
      $region40: #{tpu_custom_call.1} parent=5 // pred_fallthru
        _
      %p359 = scmp.le.s32.totalorder 1, %s26
      %p360 = scmp.lt.s32.totalorder %s26, 5
      %p361 = pnand %p359, %p360
      %p362 = pneg %p361
      // Predicated region
      $region49: #{tpu_custom_call.1} parent=5 // pred_check
        _
      $region50: #{tpu_custom_call.1} parent=5 // pred_check_branch
        %364 = sbr.rel (%p361) target = $region52
      $region51: #{tpu_custom_call.1} parent=5 // pred_region
        %s365 = ssub.s32 %s26, 1
        %s366 = sand.u32 %s39, 1
        %s367 = scalar_lea.sflag [#allocation3], %s366
        %s368 = sand.u32 %s39, 1
        %s369 = smul.addr %s368, 4
        %s370 = scalar_lea.vmem [#allocation2], %s369
        // Predicated region
        $region53: #{tpu_custom_call.1} parent=51 // pred_check
          %p371 = pneg %p52
        $region54: #{tpu_custom_call.1} parent=51 // pred_check_branch
          %373 = sbr.rel (%p371) target = $region56
        $region55: #{tpu_custom_call.1} parent=51 // pred_region
          %374 = dma.done %s367, 64
        $region56: #{tpu_custom_call.1} parent=51 // pred_fallthru
          _
        %s375 = sand.u32 %s31, 1
        %s376 = scalar_lea.sflag [#allocation6], %s375
        %s377 = sand.u32 %s65, 1
        %s378 = smul.addr %s377, 4
        %s379 = scalar_lea.vmem [#allocation5], %s378
        // Predicated region
        $region57: #{tpu_custom_call.1} parent=51 // pred_check
          %p380 = pneg %p78
        $region58: #{tpu_custom_call.1} parent=51 // pred_check_branch
          %382 = sbr.rel (%p380) target = $region60
        $region59: #{tpu_custom_call.1} parent=51 // pred_region
          %383 = dma.done %s376, 64
        $region60: #{tpu_custom_call.1} parent=51 // pred_fallthru
          _
        // Predicated region
        $region61: #{tpu_custom_call.1} parent=51 // pred_check
          %p384 = pneg %p99
        $region62: #{tpu_custom_call.1} parent=51 // pred_check_branch
          %386 = sbr.rel (%p384) target = $region64
        $region63: #{tpu_custom_call.1} parent=51 // pred_region
          %387 = dma.done [#allocation6], 8192
        $region64: #{tpu_custom_call.1} parent=51 // pred_fallthru
          _
        // Predicated region
        $region65: #{tpu_custom_call.1} parent=51 // pred_check
          %p388 = pneg %p120
        $region66: #{tpu_custom_call.1} parent=51 // pred_check_branch
          %390 = sbr.rel (%p388) target = $region68
        $region67: #{tpu_custom_call.1} parent=51 // pred_region
          %391 = dma.done [#allocation9], 65536
        $region68: #{tpu_custom_call.1} parent=51 // pred_fallthru
          _
        // Predicated region
        $region69: #{tpu_custom_call.1} parent=51 // pred_check
          %p392 = pneg %p141
        $region70: #{tpu_custom_call.1} parent=51 // pred_check_branch
          %394 = sbr.rel (%p392) target = $region72
        $region71: #{tpu_custom_call.1} parent=51 // pred_region
          %395 = dma.done [#allocation9], 8192
        $region72: #{tpu_custom_call.1} parent=51 // pred_fallthru
          _
        // Predicated region
        $region73: #{tpu_custom_call.1} parent=51 // pred_check
          %p396 = pneg %p162
        $region74: #{tpu_custom_call.1} parent=51 // pred_check_branch
          %398 = sbr.rel (%p396) target = $region76
        $region75: #{tpu_custom_call.1} parent=51 // pred_region
          %399 = dma.done [#allocation12], 1024
        $region76: #{tpu_custom_call.1} parent=51 // pred_fallthru
          _
        // Predicated region
        $region77: #{tpu_custom_call.1} parent=51 // pred_check
          %p400 = pneg %p183
        $region78: #{tpu_custom_call.1} parent=51 // pred_check_branch
          %402 = sbr.rel (%p400) target = $region80
        $region79: #{tpu_custom_call.1} parent=51 // pred_region
          %403 = dma.done [#allocation12], 256
        $region80: #{tpu_custom_call.1} parent=51 // pred_fallthru
          _
        // Predicated region
        $region81: #{tpu_custom_call.1} parent=51 // pred_check
          %p404 = pneg %p204
        $region82: #{tpu_custom_call.1} parent=51 // pred_check_branch
          %406 = sbr.rel (%p404) target = $region84
        $region83: #{tpu_custom_call.1} parent=51 // pred_region
          %407 = dma.done [#allocation15], 32
        $region84: #{tpu_custom_call.1} parent=51 // pred_fallthru
          _
        %s408 = sand.u32 %s39, 1
        %s409 = scalar_lea.sflag [#allocation3], %s408
        %s410 = sand.u32 %s39, 1
        %s411 = smul.addr %s410, 4
        %s412 = scalar_lea.vmem [#allocation2], %s411
        %p413 = pneg %p52
        %p414 = pneg %p49
        %s415 = sand.u32 %s31, 1
        %s416 = scalar_lea.sflag [#allocation6], %s415
        %s417 = sand.u32 %s65, 1
        %s418 = smul.addr %s417, 4
        %s419 = scalar_lea.vmem [#allocation5], %s418
        %p420 = pneg %p78
        %p421 = pneg %p75
        %p422 = pneg %p99
        %p423 = pneg %p96
        %p424 = pneg %p120
        %p425 = pneg %p117
        %p426 = pneg %p141
        %p427 = pneg %p138
        %p428 = pneg %p162
        %p429 = pneg %p159
        %p430 = pneg %p183
        %p431 = pneg %p180
        %p432 = pneg %p204
        %p433 = pneg %p201
        %p434 = pneg %p230
        %p435 = pneg %p227
        %s436 = sand.u32 %s217, 1
        %s437 = scalar_lea.sflag [#allocation4], %s436
        %s438 = sand.u32 %s217, 1
        %s439 = smul.addr %s438, 8
        %s440 = scalar_lea.vmem [#allocation16], %s439
        %v442 = vld [vmem:[%s370] sm:$0xf]
        %v443 = vld [vmem:[#allocation7] sm:$0xff]
        %v444 = vld [vmem:[#allocation7 + $0x8] sm:$0xff]
        %v445 = vld [vmem:[#allocation7 + $0x10] sm:$0xff]
        %v446 = vld [vmem:[#allocation7 + $0x18] sm:$0xff]
        %v447 = vld [vmem:[#allocation7 + $0x20] sm:$0xff]
        %v448 = vld [vmem:[#allocation7 + $0x28] sm:$0xff]
        %v449 = vld [vmem:[#allocation7 + $0x30] sm:$0xff]
        %v450 = vld [vmem:[#allocation7 + $0x38] sm:$0xff]
        %v451 = vld [vmem:[#allocation7 + $0x40] sm:$0xff]
        %v452 = vld [vmem:[#allocation7 + $0x48] sm:$0xff]
        %v453 = vld [vmem:[#allocation7 + $0x50] sm:$0xff]
        %v454 = vld [vmem:[#allocation7 + $0x58] sm:$0xff]
        %v455 = vld [vmem:[#allocation7 + $0x60] sm:$0xff]
        %v456 = vld [vmem:[#allocation7 + $0x68] sm:$0xff]
        %v457 = vld [vmem:[#allocation7 + $0x70] sm:$0xff]
        %v458 = vld [vmem:[#allocation7 + $0x78] sm:$0xff]
        %v459 = vld [vmem:[#allocation7 + $0x80] sm:$0xff]
        %v460 = vld [vmem:[#allocation7 + $0x88] sm:$0xff]
        %v461 = vld [vmem:[#allocation7 + $0x90] sm:$0xff]
        %v462 = vld [vmem:[#allocation7 + $0x98] sm:$0xff]
        %v463 = vld [vmem:[#allocation7 + $0xa0] sm:$0xff]
        %v464 = vld [vmem:[#allocation7 + $0xa8] sm:$0xff]
        %v465 = vld [vmem:[#allocation7 + $0xb0] sm:$0xff]
        %v466 = vld [vmem:[#allocation7 + $0xb8] sm:$0xff]
        %v467 = vld [vmem:[#allocation7 + $0xc0] sm:$0xff]
        %v468 = vld [vmem:[#allocation7 + $0xc8] sm:$0xff]
        %v469 = vld [vmem:[#allocation7 + $0xd0] sm:$0xff]
        %v470 = vld [vmem:[#allocation7 + $0xd8] sm:$0xff]
        %v471 = vld [vmem:[#allocation7 + $0xe0] sm:$0xff]
        %v472 = vld [vmem:[#allocation7 + $0xe8] sm:$0xff]
        %v473 = vld [vmem:[#allocation7 + $0xf0] sm:$0xff]
        %v474 = vld [vmem:[#allocation7 + $0xf8] sm:$0xff]
        %v475 = vld [vmem:[#allocation7 + $0x100] sm:$0xff]
        %v476 = vld [vmem:[#allocation7 + $0x108] sm:$0xff]
        %v477 = vld [vmem:[#allocation7 + $0x110] sm:$0xff]
        %v478 = vld [vmem:[#allocation7 + $0x118] sm:$0xff]
        %v479 = vld [vmem:[#allocation7 + $0x120] sm:$0xff]
        %v480 = vld [vmem:[#allocation7 + $0x128] sm:$0xff]
        %v481 = vld [vmem:[#allocation7 + $0x130] sm:$0xff]
        %v482 = vld [vmem:[#allocation7 + $0x138] sm:$0xff]
        %v483 = vld [vmem:[#allocation7 + $0x140] sm:$0xff]
        %v484 = vld [vmem:[#allocation7 + $0x148] sm:$0xff]
        %v485 = vld [vmem:[#allocation7 + $0x150] sm:$0xff]
        %v486 = vld [vmem:[#allocation7 + $0x158] sm:$0xff]
        %v487 = vld [vmem:[#allocation7 + $0x160] sm:$0xff]
        %v488 = vld [vmem:[#allocation7 + $0x168] sm:$0xff]
        %v489 = vld [vmem:[#allocation7 + $0x170] sm:$0xff]
        %v490 = vld [vmem:[#allocation7 + $0x178] sm:$0xff]
        %v491 = vld [vmem:[#allocation7 + $0x180] sm:$0xff]
        %v492 = vld [vmem:[#allocation7 + $0x188] sm:$0xff]
        %v493 = vld [vmem:[#allocation7 + $0x190] sm:$0xff]
        %v494 = vld [vmem:[#allocation7 + $0x198] sm:$0xff]
        %v495 = vld [vmem:[#allocation7 + $0x1a0] sm:$0xff]
        %v496 = vld [vmem:[#allocation7 + $0x1a8] sm:$0xff]
        %v497 = vld [vmem:[#allocation7 + $0x1b0] sm:$0xff]
        %v498 = vld [vmem:[#allocation7 + $0x1b8] sm:$0xff]
        %v499 = vld [vmem:[#allocation7 + $0x1c0] sm:$0xff]
        %v500 = vld [vmem:[#allocation7 + $0x1c8] sm:$0xff]
        %v501 = vld [vmem:[#allocation7 + $0x1d0] sm:$0xff]
        %v502 = vld [vmem:[#allocation7 + $0x1d8] sm:$0xff]
        %v503 = vld [vmem:[#allocation7 + $0x1e0] sm:$0xff]
        %v504 = vld [vmem:[#allocation7 + $0x1e8] sm:$0xff]
        %v505 = vld [vmem:[#allocation7 + $0x1f0] sm:$0xff]
        %v506 = vld [vmem:[#allocation7 + $0x1f8] sm:$0xff]
        %v507 = vld [vmem:[#allocation13] ss:$2 sm:$0xff]
        %v509 = vlaneseq
        %v510 = vshrl.u32 %v509, 7
        %v511 = vsub.s32 0, %v510
        %v512 = vrot.slane %v507, %v511
        %v513 = vlaneseq
        %v514 = vshrl.u32 %v513, 7
        %v515 = vsub.s32 1, %v514
        %v516 = vrot.slane %v507, %v515
        %v517 = vlaneseq
        %v518 = vshrl.u32 %v517, 7
        %v519 = vsub.s32 2, %v518
        %v520 = vrot.slane %v507, %v519
        %v521 = vlaneseq
        %v522 = vshrl.u32 %v521, 7
        %v523 = vsub.s32 3, %v522
        %v524 = vrot.slane %v507, %v523
        %v525 = vlaneseq
        %v526 = vshrl.u32 %v525, 7
        %v527 = vsub.s32 4, %v526
        %v528 = vrot.slane %v507, %v527
        %v529 = vlaneseq
        %v530 = vshrl.u32 %v529, 7
        %v531 = vsub.s32 5, %v530
        %v532 = vrot.slane %v507, %v531
        %v533 = vlaneseq
        %v534 = vshrl.u32 %v533, 7
        %v535 = vsub.s32 6, %v534
        %v536 = vrot.slane %v507, %v535
        %v537 = vlaneseq
        %v538 = vshrl.u32 %v537, 7
        %v539 = vsub.s32 7, %v538
        %v540 = vrot.slane %v507, %v539
        %v613 = vunpack.c.l.b16 %v443
        %v614 = vunpack.c.h.b16 %v443
        %v615 = vunpack.c.l.b16 %v444
        %v616 = vunpack.c.h.b16 %v444
        %v617 = vunpack.c.l.b16 %v445
        %v618 = vunpack.c.h.b16 %v445
        %v619 = vunpack.c.l.b16 %v446
        %v620 = vunpack.c.h.b16 %v446
        %v621 = vunpack.c.l.b16 %v447
        %v622 = vunpack.c.h.b16 %v447
        %v623 = vunpack.c.l.b16 %v448
        %v624 = vunpack.c.h.b16 %v448
        %v625 = vunpack.c.l.b16 %v449
        %v626 = vunpack.c.h.b16 %v449
        %v627 = vunpack.c.l.b16 %v450
        %v628 = vunpack.c.h.b16 %v450
        %v629 = vunpack.c.l.b16 %v451
        %v630 = vunpack.c.h.b16 %v451
        %v631 = vunpack.c.l.b16 %v452
        %v632 = vunpack.c.h.b16 %v452
        %v633 = vunpack.c.l.b16 %v453
        %v634 = vunpack.c.h.b16 %v453
        %v635 = vunpack.c.l.b16 %v454
        %v636 = vunpack.c.h.b16 %v454
        %v637 = vunpack.c.l.b16 %v455
        %v638 = vunpack.c.h.b16 %v455
        %v639 = vunpack.c.l.b16 %v456
        %v640 = vunpack.c.h.b16 %v456
        %v641 = vunpack.c.l.b16 %v457
        %v642 = vunpack.c.h.b16 %v457
        %v643 = vunpack.c.l.b16 %v458
        %v644 = vunpack.c.h.b16 %v458
        %v645 = vunpack.c.l.b16 %v459
        %v646 = vunpack.c.h.b16 %v459
        %v647 = vunpack.c.l.b16 %v460
        %v648 = vunpack.c.h.b16 %v460
        %v649 = vunpack.c.l.b16 %v461
        %v650 = vunpack.c.h.b16 %v461
        %v651 = vunpack.c.l.b16 %v462
        %v652 = vunpack.c.h.b16 %v462
        %v653 = vunpack.c.l.b16 %v463
        %v654 = vunpack.c.h.b16 %v463
        %v655 = vunpack.c.l.b16 %v464
        %v656 = vunpack.c.h.b16 %v464
        %v657 = vunpack.c.l.b16 %v465
        %v658 = vunpack.c.h.b16 %v465
        %v659 = vunpack.c.l.b16 %v466
        %v660 = vunpack.c.h.b16 %v466
        %v661 = vunpack.c.l.b16 %v467
        %v662 = vunpack.c.h.b16 %v467
        %v663 = vunpack.c.l.b16 %v468
        %v664 = vunpack.c.h.b16 %v468
        %v665 = vunpack.c.l.b16 %v469
        %v666 = vunpack.c.h.b16 %v469
        %v667 = vunpack.c.l.b16 %v470
        %v668 = vunpack.c.h.b16 %v470
        %v669 = vunpack.c.l.b16 %v471
        %v670 = vunpack.c.h.b16 %v471
        %v671 = vunpack.c.l.b16 %v472
        %v672 = vunpack.c.h.b16 %v472
        %v673 = vunpack.c.l.b16 %v473
        %v674 = vunpack.c.h.b16 %v473
        %v675 = vunpack.c.l.b16 %v474
        %v676 = vunpack.c.h.b16 %v474
        %v677 = vunpack.c.l.b16 %v475
        %v678 = vunpack.c.h.b16 %v475
        %v679 = vunpack.c.l.b16 %v476
        %v680 = vunpack.c.h.b16 %v476
        %v681 = vunpack.c.l.b16 %v477
        %v682 = vunpack.c.h.b16 %v477
        %v683 = vunpack.c.l.b16 %v478
        %v684 = vunpack.c.h.b16 %v478
        %v685 = vunpack.c.l.b16 %v479
        %v686 = vunpack.c.h.b16 %v479
        %v687 = vunpack.c.l.b16 %v480
        %v688 = vunpack.c.h.b16 %v480
        %v689 = vunpack.c.l.b16 %v481
        %v690 = vunpack.c.h.b16 %v481
        %v691 = vunpack.c.l.b16 %v482
        %v692 = vunpack.c.h.b16 %v482
        %v693 = vunpack.c.l.b16 %v483
        %v694 = vunpack.c.h.b16 %v483
        %v695 = vunpack.c.l.b16 %v484
        %v696 = vunpack.c.h.b16 %v484
        %v697 = vunpack.c.l.b16 %v485
        %v698 = vunpack.c.h.b16 %v485
        %v699 = vunpack.c.l.b16 %v486
        %v700 = vunpack.c.h.b16 %v486
        %v701 = vunpack.c.l.b16 %v487
        %v702 = vunpack.c.h.b16 %v487
        %v703 = vunpack.c.l.b16 %v488
        %v704 = vunpack.c.h.b16 %v488
        %v705 = vunpack.c.l.b16 %v489
        %v706 = vunpack.c.h.b16 %v489
        %v707 = vunpack.c.l.b16 %v490
        %v708 = vunpack.c.h.b16 %v490
        %v709 = vunpack.c.l.b16 %v491
        %v710 = vunpack.c.h.b16 %v491
        %v711 = vunpack.c.l.b16 %v492
        %v712 = vunpack.c.h.b16 %v492
        %v713 = vunpack.c.l.b16 %v493
        %v714 = vunpack.c.h.b16 %v493
        %v715 = vunpack.c.l.b16 %v494
        %v716 = vunpack.c.h.b16 %v494
        %v717 = vunpack.c.l.b16 %v495
        %v718 = vunpack.c.h.b16 %v495
        %v719 = vunpack.c.l.b16 %v496
        %v720 = vunpack.c.h.b16 %v496
        %v721 = vunpack.c.l.b16 %v497
        %v722 = vunpack.c.h.b16 %v497
        %v723 = vunpack.c.l.b16 %v498
        %v724 = vunpack.c.h.b16 %v498
        %v725 = vunpack.c.l.b16 %v499
        %v726 = vunpack.c.h.b16 %v499
        %v727 = vunpack.c.l.b16 %v500
        %v728 = vunpack.c.h.b16 %v500
        %v729 = vunpack.c.l.b16 %v501
        %v730 = vunpack.c.h.b16 %v501
        %v731 = vunpack.c.l.b16 %v502
        %v732 = vunpack.c.h.b16 %v502
        %v733 = vunpack.c.l.b16 %v503
        %v734 = vunpack.c.h.b16 %v503
        %v735 = vunpack.c.l.b16 %v504
        %v736 = vunpack.c.h.b16 %v504
        %v737 = vunpack.c.l.b16 %v505
        %v738 = vunpack.c.h.b16 %v505
        %v739 = vunpack.c.l.b16 %v506
        %v740 = vunpack.c.h.b16 %v506
        %v741 = vpack.c.b16 %v621, %v613
        %v742 = vpack.c.b16 %v622, %v614
        %v743 = vpack.c.b16 %v623, %v615
        %v744 = vpack.c.b16 %v624, %v616
        %v745 = vpack.c.b16 %v625, %v617
        %v746 = vpack.c.b16 %v626, %v618
        %v747 = vpack.c.b16 %v627, %v619
        %v748 = vpack.c.b16 %v628, %v620
        %v749 = vpack.c.b16 %v637, %v629
        %v750 = vpack.c.b16 %v638, %v630
        %v751 = vpack.c.b16 %v639, %v631
        %v752 = vpack.c.b16 %v640, %v632
        %v753 = vpack.c.b16 %v641, %v633
        %v754 = vpack.c.b16 %v642, %v634
        %v755 = vpack.c.b16 %v643, %v635
        %v756 = vpack.c.b16 %v644, %v636
        %v757 = vpack.c.b16 %v653, %v645
        %v758 = vpack.c.b16 %v654, %v646
        %v759 = vpack.c.b16 %v655, %v647
        %v760 = vpack.c.b16 %v656, %v648
        %v761 = vpack.c.b16 %v657, %v649
        %v762 = vpack.c.b16 %v658, %v650
        %v763 = vpack.c.b16 %v659, %v651
        %v764 = vpack.c.b16 %v660, %v652
        %v765 = vpack.c.b16 %v669, %v661
        %v766 = vpack.c.b16 %v670, %v662
        %v767 = vpack.c.b16 %v671, %v663
        %v768 = vpack.c.b16 %v672, %v664
        %v769 = vpack.c.b16 %v673, %v665
        %v770 = vpack.c.b16 %v674, %v666
        %v771 = vpack.c.b16 %v675, %v667
        %v772 = vpack.c.b16 %v676, %v668
        %v773 = vpack.c.b16 %v685, %v677
        %v774 = vpack.c.b16 %v686, %v678
        %v775 = vpack.c.b16 %v687, %v679
        %v776 = vpack.c.b16 %v688, %v680
        %v777 = vpack.c.b16 %v689, %v681
        %v778 = vpack.c.b16 %v690, %v682
        %v779 = vpack.c.b16 %v691, %v683
        %v780 = vpack.c.b16 %v692, %v684
        %v781 = vpack.c.b16 %v701, %v693
        %v782 = vpack.c.b16 %v702, %v694
        %v783 = vpack.c.b16 %v703, %v695
        %v784 = vpack.c.b16 %v704, %v696
        %v785 = vpack.c.b16 %v705, %v697
        %v786 = vpack.c.b16 %v706, %v698
        %v787 = vpack.c.b16 %v707, %v699
        %v788 = vpack.c.b16 %v708, %v700
        %v789 = vpack.c.b16 %v717, %v709
        %v790 = vpack.c.b16 %v718, %v710
        %v791 = vpack.c.b16 %v719, %v711
        %v792 = vpack.c.b16 %v720, %v712
        %v793 = vpack.c.b16 %v721, %v713
        %v794 = vpack.c.b16 %v722, %v714
        %v795 = vpack.c.b16 %v723, %v715
        %v796 = vpack.c.b16 %v724, %v716
        %v797 = vpack.c.b16 %v733, %v725
        %v798 = vpack.c.b16 %v734, %v726
        %v799 = vpack.c.b16 %v735, %v727
        %v800 = vpack.c.b16 %v736, %v728
        %v801 = vpack.c.b16 %v737, %v729
        %v802 = vpack.c.b16 %v738, %v730
        %v803 = vpack.c.b16 %v739, %v731
        %v804 = vpack.c.b16 %v740, %v732
        %869 = vmatprep.subr.bf16.mxu0 %v798
        %870 = vmatpush1.bf16.msra.mxu0 %v797
        %871 = vmatprep.subr.bf16.mxu0 %v790
        %872 = vmatpush1.bf16.msra.mxu0 %v789
        %873 = vmatprep.subr.bf16.mxu0 %v782
        %874 = vmatpush1.bf16.msra.mxu0 %v781
        %875 = vmatprep.subr.bf16.mxu0 %v774
        %876 = vmatpush1.bf16.msra.mxu0 %v773
        %877 = vmatprep.subr.bf16.mxu0 %v766
        %878 = vmatpush1.bf16.msra.mxu0 %v765
        %879 = vmatprep.subr.bf16.mxu0 %v758
        %880 = vmatpush1.bf16.msra.mxu0 %v757
        %881 = vmatprep.subr.bf16.mxu0 %v750
        %882 = vmatpush1.bf16.msra.mxu0 %v749
        %883 = vmatprep.subr.bf16.mxu0 %v742
        %884 = vmatpush1.bf16.msra.mxu0 %v741
        %885 = vmatprep.subr.bf16.mxu0 0
        %886 = vmatpush2.bf16.msra.mxu0 0
        %887 = vmatprep.subr.bf16.mxu0 0
        %888 = vmatpush2.bf16.msra.mxu0 0
        %889 = vmatprep.subr.bf16.mxu0 0
        %890 = vmatpush2.bf16.msra.mxu0 0
        %891 = vmatprep.subr.bf16.mxu0 0
        %892 = vmatpush2.bf16.msra.mxu0 0
        %893 = vmatprep.subr.bf16.mxu0 0
        %894 = vmatpush2.bf16.msra.mxu0 0
        %895 = vmatprep.subr.bf16.mxu0 0
        %896 = vmatpush2.bf16.msra.mxu0 0
        %897 = vmatprep.subr.bf16.mxu0 0
        %898 = vmatpush2.bf16.msra.mxu0 0
        %899 = vmatprep.subr.bf16.mxu0 0
        %900 = vmatpush2.bf16.msra.mxu0 0
        %901 = vmatprep.mubr.bf16.mxu0 0
        %902 = vmatmul.mubr.bf16.gmra.mxu0 %v442
        %v903 = vpop.f32.mrf.mxu0
        %v904 = vadd.f32 %v512, %v903
        %v905 = vpop.f32.mrf.mxu0
        %v906 = vadd.f32 %v516, %v905
        %v907 = vpop.f32.mrf.mxu0
        %v908 = vpop.f32.mrf.mxu0
        %909 = vdwg.mxu0
        %910 = vmatprep.subr.bf16.mxu0 %v800
        %911 = vmatpush1.bf16.msra.mxu0 %v799
        %912 = vmatprep.subr.bf16.mxu0 %v792
        %913 = vmatpush1.bf16.msra.mxu0 %v791
        %914 = vmatprep.subr.bf16.mxu0 %v784
        %915 = vmatpush1.bf16.msra.mxu0 %v783
        %916 = vmatprep.subr.bf16.mxu0 %v776
        %917 = vmatpush1.bf16.msra.mxu0 %v775
        %918 = vmatprep.subr.bf16.mxu0 %v768
        %919 = vmatpush1.bf16.msra.mxu0 %v767
        %920 = vmatprep.subr.bf16.mxu0 %v760
        %921 = vmatpush1.bf16.msra.mxu0 %v759
        %922 = vmatprep.subr.bf16.mxu0 %v752
        %923 = vmatpush1.bf16.msra.mxu0 %v751
        %924 = vmatprep.subr.bf16.mxu0 %v744
        %925 = vmatpush1.bf16.msra.mxu0 %v743
        %926 = vmatprep.subr.bf16.mxu0 0
        %927 = vmatpush2.bf16.msra.mxu0 0
        %928 = vmatprep.subr.bf16.mxu0 0
        %929 = vmatpush2.bf16.msra.mxu0 0
        %930 = vmatprep.subr.bf16.mxu0 0
        %931 = vmatpush2.bf16.msra.mxu0 0
        %932 = vmatprep.subr.bf16.mxu0 0
        %933 = vmatpush2.bf16.msra.mxu0 0
        %934 = vmatprep.subr.bf16.mxu0 0
        %935 = vmatpush2.bf16.msra.mxu0 0
        %936 = vmatprep.subr.bf16.mxu0 0
        %937 = vmatpush2.bf16.msra.mxu0 0
        %938 = vmatprep.subr.bf16.mxu0 0
        %939 = vmatpush2.bf16.msra.mxu0 0
        %940 = vmatprep.subr.bf16.mxu0 0
        %941 = vmatpush2.bf16.msra.mxu0 0
        %942 = vmatprep.mubr.bf16.mxu0 0
        %943 = vmatmul.mubr.bf16.gmra.mxu0 %v442
        %v944 = vpop.f32.mrf.mxu0
        %v945 = vadd.f32 %v520, %v944
        %v946 = vpop.f32.mrf.mxu0
        %v947 = vadd.f32 %v524, %v946
        %v948 = vpop.f32.mrf.mxu0
        %v949 = vpop.f32.mrf.mxu0
        %950 = vdwg.mxu0
        %951 = vmatprep.subr.bf16.mxu0 %v802
        %952 = vmatpush1.bf16.msra.mxu0 %v801
        %953 = vmatprep.subr.bf16.mxu0 %v794
        %954 = vmatpush1.bf16.msra.mxu0 %v793
        %955 = vmatprep.subr.bf16.mxu0 %v786
        %956 = vmatpush1.bf16.msra.mxu0 %v785
        %957 = vmatprep.subr.bf16.mxu0 %v778
        %958 = vmatpush1.bf16.msra.mxu0 %v777
        %959 = vmatprep.subr.bf16.mxu0 %v770
        %960 = vmatpush1.bf16.msra.mxu0 %v769
        %961 = vmatprep.subr.bf16.mxu0 %v762
        %962 = vmatpush1.bf16.msra.mxu0 %v761
        %963 = vmatprep.subr.bf16.mxu0 %v754
        %964 = vmatpush1.bf16.msra.mxu0 %v753
        %965 = vmatprep.subr.bf16.mxu0 %v746
        %966 = vmatpush1.bf16.msra.mxu0 %v745
        %967 = vmatprep.subr.bf16.mxu0 0
        %968 = vmatpush2.bf16.msra.mxu0 0
        %969 = vmatprep.subr.bf16.mxu0 0
        %970 = vmatpush2.bf16.msra.mxu0 0
        %971 = vmatprep.subr.bf16.mxu0 0
        %972 = vmatpush2.bf16.msra.mxu0 0
        %973 = vmatprep.subr.bf16.mxu0 0
        %974 = vmatpush2.bf16.msra.mxu0 0
        %975 = vmatprep.subr.bf16.mxu0 0
        %976 = vmatpush2.bf16.msra.mxu0 0
        %977 = vmatprep.subr.bf16.mxu0 0
        %978 = vmatpush2.bf16.msra.mxu0 0
        %979 = vmatprep.subr.bf16.mxu0 0
        %980 = vmatpush2.bf16.msra.mxu0 0
        %981 = vmatprep.subr.bf16.mxu0 0
        %982 = vmatpush2.bf16.msra.mxu0 0
        %983 = vmatprep.mubr.bf16.mxu0 0
        %984 = vmatmul.mubr.bf16.gmra.mxu0 %v442
        %v985 = vpop.f32.mrf.mxu0
        %v986 = vadd.f32 %v528, %v985
        %v987 = vpop.f32.mrf.mxu0
        %v988 = vadd.f32 %v532, %v987
        %v989 = vpop.f32.mrf.mxu0
        %v990 = vpop.f32.mrf.mxu0
        %991 = vdwg.mxu0
        %992 = vmatprep.subr.bf16.mxu0 %v804
        %993 = vmatpush1.bf16.msra.mxu0 %v803
        %994 = vmatprep.subr.bf16.mxu0 %v796
        %995 = vmatpush1.bf16.msra.mxu0 %v795
        %996 = vmatprep.subr.bf16.mxu0 %v788
        %997 = vmatpush1.bf16.msra.mxu0 %v787
        %998 = vmatprep.subr.bf16.mxu0 %v780
        %999 = vmatpush1.bf16.msra.mxu0 %v779
        %1000 = vmatprep.subr.bf16.mxu0 %v772
        %1001 = vmatpush1.bf16.msra.mxu0 %v771
        %1002 = vmatprep.subr.bf16.mxu0 %v764
        %1003 = vmatpush1.bf16.msra.mxu0 %v763
        %1004 = vmatprep.subr.bf16.mxu0 %v756
        %1005 = vmatpush1.bf16.msra.mxu0 %v755
        %1006 = vmatprep.subr.bf16.mxu0 %v748
        %1007 = vmatpush1.bf16.msra.mxu0 %v747
        %1008 = vmatprep.subr.bf16.mxu0 0
        %1009 = vmatpush2.bf16.msra.mxu0 0
        %1010 = vmatprep.subr.bf16.mxu0 0
        %1011 = vmatpush2.bf16.msra.mxu0 0
        %1012 = vmatprep.subr.bf16.mxu0 0
        %1013 = vmatpush2.bf16.msra.mxu0 0
        %1014 = vmatprep.subr.bf16.mxu0 0
        %1015 = vmatpush2.bf16.msra.mxu0 0
        %1016 = vmatprep.subr.bf16.mxu0 0
        %1017 = vmatpush2.bf16.msra.mxu0 0
        %1018 = vmatprep.subr.bf16.mxu0 0
        %1019 = vmatpush2.bf16.msra.mxu0 0
        %1020 = vmatprep.subr.bf16.mxu0 0
        %1021 = vmatpush2.bf16.msra.mxu0 0
        %1022 = vmatprep.subr.bf16.mxu0 0
        %1023 = vmatpush2.bf16.msra.mxu0 0
        %1024 = vmatprep.mubr.bf16.mxu0 0
        %1025 = vmatmul.mubr.bf16.gmra.mxu0 %v442
        %v1026 = vpop.f32.mrf.mxu0
        %v1027 = vadd.f32 %v536, %v1026
        %v1028 = vpop.f32.mrf.mxu0
        %v1029 = vadd.f32 %v540, %v1028
        %v1030 = vpop.f32.mrf.mxu0
        %v1031 = vpop.f32.mrf.mxu0
        %1032 = vdwg.mxu0
        %vm1033 = vcmp.ge.f32.partialorder %v904, 0.0
        %vm1034 = vcmp.ge.f32.partialorder %v906, 0.0
        %vm1035 = vcmp.ge.f32.partialorder %v945, 0.0
        %vm1036 = vcmp.ge.f32.partialorder %v947, 0.0
        %vm1037 = vcmp.ge.f32.partialorder %v986, 0.0
        %vm1038 = vcmp.ge.f32.partialorder %v988, 0.0
        %vm1039 = vcmp.ge.f32.partialorder %v1027, 0.0
        %vm1040 = vcmp.ge.f32.partialorder %v1029, 0.0
        %v1041 = vmul.f32 %v904, 0.05
        %v1042 = vmul.f32 %v906, 0.05
        %v1043 = vmul.f32 %v945, 0.05
        %v1044 = vmul.f32 %v947, 0.05
        %v1045 = vmul.f32 %v986, 0.05
        %v1046 = vmul.f32 %v988, 0.05
        %v1047 = vmul.f32 %v1027, 0.05
        %v1048 = vmul.f32 %v1029, 0.05
        %v1049 = vsel %vm1033, %v904, %v1041
        %v1050 = vsel %vm1034, %v906, %v1042
        %v1051 = vsel %vm1035, %v945, %v1043
        %v1052 = vsel %vm1036, %v947, %v1044
        %v1053 = vsel %vm1037, %v986, %v1045
        %v1054 = vsel %vm1038, %v988, %v1046
        %v1055 = vsel %vm1039, %v1027, %v1047
        %v1056 = vsel %vm1040, %v1029, %v1048
        %v1057 = vpack.c.bf16 %v1049, %v1049
        %v1058 = vpack.c.bf16 %v1050, %v1050
        %v1059 = vpack.c.bf16 %v1051, %v1051
        %v1060 = vpack.c.bf16 %v1052, %v1052
        %v1061 = vpack.c.bf16 %v1053, %v1053
        %v1062 = vpack.c.bf16 %v1054, %v1054
        %v1063 = vpack.c.bf16 %v1055, %v1055
        %v1064 = vpack.c.bf16 %v1056, %v1056
        %v1065 = vld [vmem:[#allocation8] sm:$0xff]
        %v1066 = vld [vmem:[#allocation8 + $0x8] sm:$0xff]
        %v1067 = vld [vmem:[#allocation8 + $0x10] sm:$0xff]
        %v1068 = vld [vmem:[#allocation8 + $0x18] sm:$0xff]
        %v1069 = vld [vmem:[#allocation8 + $0x20] sm:$0xff]
        %v1070 = vld [vmem:[#allocation8 + $0x28] sm:$0xff]
        %v1071 = vld [vmem:[#allocation8 + $0x30] sm:$0xff]
        %v1072 = vld [vmem:[#allocation8 + $0x38] sm:$0xff]
        %v1073 = vld [vmem:[#allocation8 + $0x40] sm:$0xff]
        %v1074 = vld [vmem:[#allocation8 + $0x48] sm:$0xff]
        %v1075 = vld [vmem:[#allocation8 + $0x50] sm:$0xff]
        %v1076 = vld [vmem:[#allocation8 + $0x58] sm:$0xff]
        %v1077 = vld [vmem:[#allocation8 + $0x60] sm:$0xff]
        %v1078 = vld [vmem:[#allocation8 + $0x68] sm:$0xff]
        %v1079 = vld [vmem:[#allocation8 + $0x70] sm:$0xff]
        %v1080 = vld [vmem:[#allocation8 + $0x78] sm:$0xff]
        %v1081 = vld [vmem:[#allocation8 + $0x80] sm:$0xff]
        %v1082 = vld [vmem:[#allocation8 + $0x88] sm:$0xff]
        %v1083 = vld [vmem:[#allocation8 + $0x90] sm:$0xff]
        %v1084 = vld [vmem:[#allocation8 + $0x98] sm:$0xff]
        %v1085 = vld [vmem:[#allocation8 + $0xa0] sm:$0xff]
        %v1086 = vld [vmem:[#allocation8 + $0xa8] sm:$0xff]
        %v1087 = vld [vmem:[#allocation8 + $0xb0] sm:$0xff]
        %v1088 = vld [vmem:[#allocation8 + $0xb8] sm:$0xff]
        %v1089 = vld [vmem:[#allocation8 + $0xc0] sm:$0xff]
        %v1090 = vld [vmem:[#allocation8 + $0xc8] sm:$0xff]
        %v1091 = vld [vmem:[#allocation8 + $0xd0] sm:$0xff]
        %v1092 = vld [vmem:[#allocation8 + $0xd8] sm:$0xff]
        %v1093 = vld [vmem:[#allocation8 + $0xe0] sm:$0xff]
        %v1094 = vld [vmem:[#allocation8 + $0xe8] sm:$0xff]
        %v1095 = vld [vmem:[#allocation8 + $0xf0] sm:$0xff]
        %v1096 = vld [vmem:[#allocation8 + $0xf8] sm:$0xff]
        %v1097 = vld [vmem:[#allocation8 + $0x100] sm:$0xff]
        %v1098 = vld [vmem:[#allocation8 + $0x108] sm:$0xff]
        %v1099 = vld [vmem:[#allocation8 + $0x110] sm:$0xff]
        %v1100 = vld [vmem:[#allocation8 + $0x118] sm:$0xff]
        %v1101 = vld [vmem:[#allocation8 + $0x120] sm:$0xff]
        %v1102 = vld [vmem:[#allocation8 + $0x128] sm:$0xff]
        %v1103 = vld [vmem:[#allocation8 + $0x130] sm:$0xff]
        %v1104 = vld [vmem:[#allocation8 + $0x138] sm:$0xff]
        %v1105 = vld [vmem:[#allocation8 + $0x140] sm:$0xff]
        %v1106 = vld [vmem:[#allocation8 + $0x148] sm:$0xff]
        %v1107 = vld [vmem:[#allocation8 + $0x150] sm:$0xff]
        %v1108 = vld [vmem:[#allocation8 + $0x158] sm:$0xff]
        %v1109 = vld [vmem:[#allocation8 + $0x160] sm:$0xff]
        %v1110 = vld [vmem:[#allocation8 + $0x168] sm:$0xff]
        %v1111 = vld [vmem:[#allocation8 + $0x170] sm:$0xff]
        %v1112 = vld [vmem:[#allocation8 + $0x178] sm:$0xff]
        %v1113 = vld [vmem:[#allocation8 + $0x180] sm:$0xff]
        %v1114 = vld [vmem:[#allocation8 + $0x188] sm:$0xff]
        %v1115 = vld [vmem:[#allocation8 + $0x190] sm:$0xff]
        %v1116 = vld [vmem:[#allocation8 + $0x198] sm:$0xff]
        %v1117 = vld [vmem:[#allocation8 + $0x1a0] sm:$0xff]
        %v1118 = vld [vmem:[#allocation8 + $0x1a8] sm:$0xff]
        %v1119 = vld [vmem:[#allocation8 + $0x1b0] sm:$0xff]
        %v1120 = vld [vmem:[#allocation8 + $0x1b8] sm:$0xff]
        %v1121 = vld [vmem:[#allocation8 + $0x1c0] sm:$0xff]
        %v1122 = vld [vmem:[#allocation8 + $0x1c8] sm:$0xff]
        %v1123 = vld [vmem:[#allocation8 + $0x1d0] sm:$0xff]
        %v1124 = vld [vmem:[#allocation8 + $0x1d8] sm:$0xff]
        %v1125 = vld [vmem:[#allocation8 + $0x1e0] sm:$0xff]
        %v1126 = vld [vmem:[#allocation8 + $0x1e8] sm:$0xff]
        %v1127 = vld [vmem:[#allocation8 + $0x1f0] sm:$0xff]
        %v1128 = vld [vmem:[#allocation8 + $0x1f8] sm:$0xff]
        %v1129 = vld [vmem:[#allocation8 + $0x200] sm:$0xff]
        %v1130 = vld [vmem:[#allocation8 + $0x208] sm:$0xff]
        %v1131 = vld [vmem:[#allocation8 + $0x210] sm:$0xff]
        %v1132 = vld [vmem:[#allocation8 + $0x218] sm:$0xff]
        %v1133 = vld [vmem:[#allocation8 + $0x220] sm:$0xff]
        %v1134 = vld [vmem:[#allocation8 + $0x228] sm:$0xff]
        %v1135 = vld [vmem:[#allocation8 + $0x230] sm:$0xff]
        %v1136 = vld [vmem:[#allocation8 + $0x238] sm:$0xff]
        %v1137 = vld [vmem:[#allocation8 + $0x240] sm:$0xff]
        %v1138 = vld [vmem:[#allocation8 + $0x248] sm:$0xff]
        %v1139 = vld [vmem:[#allocation8 + $0x250] sm:$0xff]
        %v1140 = vld [vmem:[#allocation8 + $0x258] sm:$0xff]
        %v1141 = vld [vmem:[#allocation8 + $0x260] sm:$0xff]
        %v1142 = vld [vmem:[#allocation8 + $0x268] sm:$0xff]
        %v1143 = vld [vmem:[#allocation8 + $0x270] sm:$0xff]
        %v1144 = vld [vmem:[#allocation8 + $0x278] sm:$0xff]
        %v1145 = vld [vmem:[#allocation8 + $0x280] sm:$0xff]
        %v1146 = vld [vmem:[#allocation8 + $0x288] sm:$0xff]
        %v1147 = vld [vmem:[#allocation8 + $0x290] sm:$0xff]
        %v1148 = vld [vmem:[#allocation8 + $0x298] sm:$0xff]
        %v1149 = vld [vmem:[#allocation8 + $0x2a0] sm:$0xff]
        %v1150 = vld [vmem:[#allocation8 + $0x2a8] sm:$0xff]
        %v1151 = vld [vmem:[#allocation8 + $0x2b0] sm:$0xff]
        %v1152 = vld [vmem:[#allocation8 + $0x2b8] sm:$0xff]
        %v1153 = vld [vmem:[#allocation8 + $0x2c0] sm:$0xff]
        %v1154 = vld [vmem:[#allocation8 + $0x2c8] sm:$0xff]
        %v1155 = vld [vmem:[#allocation8 + $0x2d0] sm:$0xff]
        %v1156 = vld [vmem:[#allocation8 + $0x2d8] sm:$0xff]
        %v1157 = vld [vmem:[#allocation8 + $0x2e0] sm:$0xff]
        %v1158 = vld [vmem:[#allocation8 + $0x2e8] sm:$0xff]
        %v1159 = vld [vmem:[#allocation8 + $0x2f0] sm:$0xff]
        %v1160 = vld [vmem:[#allocation8 + $0x2f8] sm:$0xff]
        %v1161 = vld [vmem:[#allocation8 + $0x300] sm:$0xff]
        %v1162 = vld [vmem:[#allocation8 + $0x308] sm:$0xff]
        %v1163 = vld [vmem:[#allocation8 + $0x310] sm:$0xff]
        %v1164 = vld [vmem:[#allocation8 + $0x318] sm:$0xff]
        %v1165 = vld [vmem:[#allocation8 + $0x320] sm:$0xff]
        %v1166 = vld [vmem:[#allocation8 + $0x328] sm:$0xff]
        %v1167 = vld [vmem:[#allocation8 + $0x330] sm:$0xff]
        %v1168 = vld [vmem:[#allocation8 + $0x338] sm:$0xff]
        %v1169 = vld [vmem:[#allocation8 + $0x340] sm:$0xff]
        %v1170 = vld [vmem:[#allocation8 + $0x348] sm:$0xff]
        %v1171 = vld [vmem:[#allocation8 + $0x350] sm:$0xff]
        %v1172 = vld [vmem:[#allocation8 + $0x358] sm:$0xff]
        %v1173 = vld [vmem:[#allocation8 + $0x360] sm:$0xff]
        %v1174 = vld [vmem:[#allocation8 + $0x368] sm:$0xff]
        %v1175 = vld [vmem:[#allocation8 + $0x370] sm:$0xff]
        %v1176 = vld [vmem:[#allocation8 + $0x378] sm:$0xff]
        %v1177 = vld [vmem:[#allocation8 + $0x380] sm:$0xff]
        %v1178 = vld [vmem:[#allocation8 + $0x388] sm:$0xff]
        %v1179 = vld [vmem:[#allocation8 + $0x390] sm:$0xff]
        %v1180 = vld [vmem:[#allocation8 + $0x398] sm:$0xff]
        %v1181 = vld [vmem:[#allocation8 + $0x3a0] sm:$0xff]
        %v1182 = vld [vmem:[#allocation8 + $0x3a8] sm:$0xff]
        %v1183 = vld [vmem:[#allocation8 + $0x3b0] sm:$0xff]
        %v1184 = vld [vmem:[#allocation8 + $0x3b8] sm:$0xff]
        %v1185 = vld [vmem:[#allocation8 + $0x3c0] sm:$0xff]
        %v1186 = vld [vmem:[#allocation8 + $0x3c8] sm:$0xff]
        %v1187 = vld [vmem:[#allocation8 + $0x3d0] sm:$0xff]
        %v1188 = vld [vmem:[#allocation8 + $0x3d8] sm:$0xff]
        %v1189 = vld [vmem:[#allocation8 + $0x3e0] sm:$0xff]
        %v1190 = vld [vmem:[#allocation8 + $0x3e8] sm:$0xff]
        %v1191 = vld [vmem:[#allocation8 + $0x3f0] sm:$0xff]
        %v1192 = vld [vmem:[#allocation8 + $0x3f8] sm:$0xff]
        %v1193 = vld [vmem:[#allocation8 + $0x400] sm:$0xff]
        %v1194 = vld [vmem:[#allocation8 + $0x408] sm:$0xff]
        %v1195 = vld [vmem:[#allocation8 + $0x410] sm:$0xff]
        %v1196 = vld [vmem:[#allocation8 + $0x418] sm:$0xff]
        %v1197 = vld [vmem:[#allocation8 + $0x420] sm:$0xff]
        %v1198 = vld [vmem:[#allocation8 + $0x428] sm:$0xff]
        %v1199 = vld [vmem:[#allocation8 + $0x430] sm:$0xff]
        %v1200 = vld [vmem:[#allocation8 + $0x438] sm:$0xff]
        %v1201 = vld [vmem:[#allocation8 + $0x440] sm:$0xff]
        %v1202 = vld [vmem:[#allocation8 + $0x448] sm:$0xff]
        %v1203 = vld [vmem:[#allocation8 + $0x450] sm:$0xff]
        %v1204 = vld [vmem:[#allocation8 + $0x458] sm:$0xff]
        %v1205 = vld [vmem:[#allocation8 + $0x460] sm:$0xff]
        %v1206 = vld [vmem:[#allocation8 + $0x468] sm:$0xff]
        %v1207 = vld [vmem:[#allocation8 + $0x470] sm:$0xff]
        %v1208 = vld [vmem:[#allocation8 + $0x478] sm:$0xff]
        %v1209 = vld [vmem:[#allocation8 + $0x480] sm:$0xff]
        %v1210 = vld [vmem:[#allocation8 + $0x488] sm:$0xff]
        %v1211 = vld [vmem:[#allocation8 + $0x490] sm:$0xff]
        %v1212 = vld [vmem:[#allocation8 + $0x498] sm:$0xff]
        %v1213 = vld [vmem:[#allocation8 + $0x4a0] sm:$0xff]
        %v1214 = vld [vmem:[#allocation8 + $0x4a8] sm:$0xff]
        %v1215 = vld [vmem:[#allocation8 + $0x4b0] sm:$0xff]
        %v1216 = vld [vmem:[#allocation8 + $0x4b8] sm:$0xff]
        %v1217 = vld [vmem:[#allocation8 + $0x4c0] sm:$0xff]
        %v1218 = vld [vmem:[#allocation8 + $0x4c8] sm:$0xff]
        %v1219 = vld [vmem:[#allocation8 + $0x4d0] sm:$0xff]
        %v1220 = vld [vmem:[#allocation8 + $0x4d8] sm:$0xff]
        %v1221 = vld [vmem:[#allocation8 + $0x4e0] sm:$0xff]
        %v1222 = vld [vmem:[#allocation8 + $0x4e8] sm:$0xff]
        %v1223 = vld [vmem:[#allocation8 + $0x4f0] sm:$0xff]
        %v1224 = vld [vmem:[#allocation8 + $0x4f8] sm:$0xff]
        %v1225 = vld [vmem:[#allocation8 + $0x500] sm:$0xff]
        %v1226 = vld [vmem:[#allocation8 + $0x508] sm:$0xff]
        %v1227 = vld [vmem:[#allocation8 + $0x510] sm:$0xff]
        %v1228 = vld [vmem:[#allocation8 + $0x518] sm:$0xff]
        %v1229 = vld [vmem:[#allocation8 + $0x520] sm:$0xff]
        %v1230 = vld [vmem:[#allocation8 + $0x528] sm:$0xff]
        %v1231 = vld [vmem:[#allocation8 + $0x530] sm:$0xff]
        %v1232 = vld [vmem:[#allocation8 + $0x538] sm:$0xff]
        %v1233 = vld [vmem:[#allocation8 + $0x540] sm:$0xff]
        %v1234 = vld [vmem:[#allocation8 + $0x548] sm:$0xff]
        %v1235 = vld [vmem:[#allocation8 + $0x550] sm:$0xff]
        %v1236 = vld [vmem:[#allocation8 + $0x558] sm:$0xff]
        %v1237 = vld [vmem:[#allocation8 + $0x560] sm:$0xff]
        %v1238 = vld [vmem:[#allocation8 + $0x568] sm:$0xff]
        %v1239 = vld [vmem:[#allocation8 + $0x570] sm:$0xff]
        %v1240 = vld [vmem:[#allocation8 + $0x578] sm:$0xff]
        %v1241 = vld [vmem:[#allocation8 + $0x580] sm:$0xff]
        %v1242 = vld [vmem:[#allocation8 + $0x588] sm:$0xff]
        %v1243 = vld [vmem:[#allocation8 + $0x590] sm:$0xff]
        %v1244 = vld [vmem:[#allocation8 + $0x598] sm:$0xff]
        %v1245 = vld [vmem:[#allocation8 + $0x5a0] sm:$0xff]
        %v1246 = vld [vmem:[#allocation8 + $0x5a8] sm:$0xff]
        %v1247 = vld [vmem:[#allocation8 + $0x5b0] sm:$0xff]
        %v1248 = vld [vmem:[#allocation8 + $0x5b8] sm:$0xff]
        %v1249 = vld [vmem:[#allocation8 + $0x5c0] sm:$0xff]
        %v1250 = vld [vmem:[#allocation8 + $0x5c8] sm:$0xff]
        %v1251 = vld [vmem:[#allocation8 + $0x5d0] sm:$0xff]
        %v1252 = vld [vmem:[#allocation8 + $0x5d8] sm:$0xff]
        %v1253 = vld [vmem:[#allocation8 + $0x5e0] sm:$0xff]
        %v1254 = vld [vmem:[#allocation8 + $0x5e8] sm:$0xff]
        %v1255 = vld [vmem:[#allocation8 + $0x5f0] sm:$0xff]
        %v1256 = vld [vmem:[#allocation8 + $0x5f8] sm:$0xff]
        %v1257 = vld [vmem:[#allocation8 + $0x600] sm:$0xff]
        %v1258 = vld [vmem:[#allocation8 + $0x608] sm:$0xff]
        %v1259 = vld [vmem:[#allocation8 + $0x610] sm:$0xff]
        %v1260 = vld [vmem:[#allocation8 + $0x618] sm:$0xff]
        %v1261 = vld [vmem:[#allocation8 + $0x620] sm:$0xff]
        %v1262 = vld [vmem:[#allocation8 + $0x628] sm:$0xff]
        %v1263 = vld [vmem:[#allocation8 + $0x630] sm:$0xff]
        %v1264 = vld [vmem:[#allocation8 + $0x638] sm:$0xff]
        %v1265 = vld [vmem:[#allocation8 + $0x640] sm:$0xff]
        %v1266 = vld [vmem:[#allocation8 + $0x648] sm:$0xff]
        %v1267 = vld [vmem:[#allocation8 + $0x650] sm:$0xff]
        %v1268 = vld [vmem:[#allocation8 + $0x658] sm:$0xff]
        %v1269 = vld [vmem:[#allocation8 + $0x660] sm:$0xff]
        %v1270 = vld [vmem:[#allocation8 + $0x668] sm:$0xff]
        %v1271 = vld [vmem:[#allocation8 + $0x670] sm:$0xff]
        %v1272 = vld [vmem:[#allocation8 + $0x678] sm:$0xff]
        %v1273 = vld [vmem:[#allocation8 + $0x680] sm:$0xff]
        %v1274 = vld [vmem:[#allocation8 + $0x688] sm:$0xff]
        %v1275 = vld [vmem:[#allocation8 + $0x690] sm:$0xff]
        %v1276 = vld [vmem:[#allocation8 + $0x698] sm:$0xff]
        %v1277 = vld [vmem:[#allocation8 + $0x6a0] sm:$0xff]
        %v1278 = vld [vmem:[#allocation8 + $0x6a8] sm:$0xff]
        %v1279 = vld [vmem:[#allocation8 + $0x6b0] sm:$0xff]
        %v1280 = vld [vmem:[#allocation8 + $0x6b8] sm:$0xff]
        %v1281 = vld [vmem:[#allocation8 + $0x6c0] sm:$0xff]
        %v1282 = vld [vmem:[#allocation8 + $0x6c8] sm:$0xff]
        %v1283 = vld [vmem:[#allocation8 + $0x6d0] sm:$0xff]
        %v1284 = vld [vmem:[#allocation8 + $0x6d8] sm:$0xff]
        %v1285 = vld [vmem:[#allocation8 + $0x6e0] sm:$0xff]
        %v1286 = vld [vmem:[#allocation8 + $0x6e8] sm:$0xff]
        %v1287 = vld [vmem:[#allocation8 + $0x6f0] sm:$0xff]
        %v1288 = vld [vmem:[#allocation8 + $0x6f8] sm:$0xff]
        %v1289 = vld [vmem:[#allocation8 + $0x700] sm:$0xff]
        %v1290 = vld [vmem:[#allocation8 + $0x708] sm:$0xff]
        %v1291 = vld [vmem:[#allocation8 + $0x710] sm:$0xff]
        %v1292 = vld [vmem:[#allocation8 + $0x718] sm:$0xff]
        %v1293 = vld [vmem:[#allocation8 + $0x720] sm:$0xff]
        %v1294 = vld [vmem:[#allocation8 + $0x728] sm:$0xff]
        %v1295 = vld [vmem:[#allocation8 + $0x730] sm:$0xff]
        %v1296 = vld [vmem:[#allocation8 + $0x738] sm:$0xff]
        %v1297 = vld [vmem:[#allocation8 + $0x740] sm:$0xff]
        %v1298 = vld [vmem:[#allocation8 + $0x748] sm:$0xff]
        %v1299 = vld [vmem:[#allocation8 + $0x750] sm:$0xff]
        %v1300 = vld [vmem:[#allocation8 + $0x758] sm:$0xff]
        %v1301 = vld [vmem:[#allocation8 + $0x760] sm:$0xff]
        %v1302 = vld [vmem:[#allocation8 + $0x768] sm:$0xff]
        %v1303 = vld [vmem:[#allocation8 + $0x770] sm:$0xff]
        %v1304 = vld [vmem:[#allocation8 + $0x778] sm:$0xff]
        %v1305 = vld [vmem:[#allocation8 + $0x780] sm:$0xff]
        %v1306 = vld [vmem:[#allocation8 + $0x788] sm:$0xff]
        %v1307 = vld [vmem:[#allocation8 + $0x790] sm:$0xff]
        %v1308 = vld [vmem:[#allocation8 + $0x798] sm:$0xff]
        %v1309 = vld [vmem:[#allocation8 + $0x7a0] sm:$0xff]
        %v1310 = vld [vmem:[#allocation8 + $0x7a8] sm:$0xff]
        %v1311 = vld [vmem:[#allocation8 + $0x7b0] sm:$0xff]
        %v1312 = vld [vmem:[#allocation8 + $0x7b8] sm:$0xff]
        %v1313 = vld [vmem:[#allocation8 + $0x7c0] sm:$0xff]
        %v1314 = vld [vmem:[#allocation8 + $0x7c8] sm:$0xff]
        %v1315 = vld [vmem:[#allocation8 + $0x7d0] sm:$0xff]
        %v1316 = vld [vmem:[#allocation8 + $0x7d8] sm:$0xff]
        %v1317 = vld [vmem:[#allocation8 + $0x7e0] sm:$0xff]
        %v1318 = vld [vmem:[#allocation8 + $0x7e8] sm:$0xff]
        %v1319 = vld [vmem:[#allocation8 + $0x7f0] sm:$0xff]
        %v1320 = vld [vmem:[#allocation8 + $0x7f8] sm:$0xff]
        %v1321 = vld [vmem:[#allocation8 + $0x800] sm:$0xff]
        %v1322 = vld [vmem:[#allocation8 + $0x808] sm:$0xff]
        %v1323 = vld [vmem:[#allocation8 + $0x810] sm:$0xff]
        %v1324 = vld [vmem:[#allocation8 + $0x818] sm:$0xff]
        %v1325 = vld [vmem:[#allocation8 + $0x820] sm:$0xff]
        %v1326 = vld [vmem:[#allocation8 + $0x828] sm:$0xff]
        %v1327 = vld [vmem:[#allocation8 + $0x830] sm:$0xff]
        %v1328 = vld [vmem:[#allocation8 + $0x838] sm:$0xff]
        %v1329 = vld [vmem:[#allocation8 + $0x840] sm:$0xff]
        %v1330 = vld [vmem:[#allocation8 + $0x848] sm:$0xff]
        %v1331 = vld [vmem:[#allocation8 + $0x850] sm:$0xff]
        %v1332 = vld [vmem:[#allocation8 + $0x858] sm:$0xff]
        %v1333 = vld [vmem:[#allocation8 + $0x860] sm:$0xff]
        %v1334 = vld [vmem:[#allocation8 + $0x868] sm:$0xff]
        %v1335 = vld [vmem:[#allocation8 + $0x870] sm:$0xff]
        %v1336 = vld [vmem:[#allocation8 + $0x878] sm:$0xff]
        %v1337 = vld [vmem:[#allocation8 + $0x880] sm:$0xff]
        %v1338 = vld [vmem:[#allocation8 + $0x888] sm:$0xff]
        %v1339 = vld [vmem:[#allocation8 + $0x890] sm:$0xff]
        %v1340 = vld [vmem:[#allocation8 + $0x898] sm:$0xff]
        %v1341 = vld [vmem:[#allocation8 + $0x8a0] sm:$0xff]
        %v1342 = vld [vmem:[#allocation8 + $0x8a8] sm:$0xff]
        %v1343 = vld [vmem:[#allocation8 + $0x8b0] sm:$0xff]
        %v1344 = vld [vmem:[#allocation8 + $0x8b8] sm:$0xff]
        %v1345 = vld [vmem:[#allocation8 + $0x8c0] sm:$0xff]
        %v1346 = vld [vmem:[#allocation8 + $0x8c8] sm:$0xff]
        %v1347 = vld [vmem:[#allocation8 + $0x8d0] sm:$0xff]
        %v1348 = vld [vmem:[#allocation8 + $0x8d8] sm:$0xff]
        %v1349 = vld [vmem:[#allocation8 + $0x8e0] sm:$0xff]
        %v1350 = vld [vmem:[#allocation8 + $0x8e8] sm:$0xff]
        %v1351 = vld [vmem:[#allocation8 + $0x8f0] sm:$0xff]
        %v1352 = vld [vmem:[#allocation8 + $0x8f8] sm:$0xff]
        %v1353 = vld [vmem:[#allocation8 + $0x900] sm:$0xff]
        %v1354 = vld [vmem:[#allocation8 + $0x908] sm:$0xff]
        %v1355 = vld [vmem:[#allocation8 + $0x910] sm:$0xff]
        %v1356 = vld [vmem:[#allocation8 + $0x918] sm:$0xff]
        %v1357 = vld [vmem:[#allocation8 + $0x920] sm:$0xff]
        %v1358 = vld [vmem:[#allocation8 + $0x928] sm:$0xff]
        %v1359 = vld [vmem:[#allocation8 + $0x930] sm:$0xff]
        %v1360 = vld [vmem:[#allocation8 + $0x938] sm:$0xff]
        %v1361 = vld [vmem:[#allocation8 + $0x940] sm:$0xff]
        %v1362 = vld [vmem:[#allocation8 + $0x948] sm:$0xff]
        %v1363 = vld [vmem:[#allocation8 + $0x950] sm:$0xff]
        %v1364 = vld [vmem:[#allocation8 + $0x958] sm:$0xff]
        %v1365 = vld [vmem:[#allocation8 + $0x960] sm:$0xff]
        %v1366 = vld [vmem:[#allocation8 + $0x968] sm:$0xff]
        %v1367 = vld [vmem:[#allocation8 + $0x970] sm:$0xff]
        %v1368 = vld [vmem:[#allocation8 + $0x978] sm:$0xff]
        %v1369 = vld [vmem:[#allocation8 + $0x980] sm:$0xff]
        %v1370 = vld [vmem:[#allocation8 + $0x988] sm:$0xff]
        %v1371 = vld [vmem:[#allocation8 + $0x990] sm:$0xff]
        %v1372 = vld [vmem:[#allocation8 + $0x998] sm:$0xff]
        %v1373 = vld [vmem:[#allocation8 + $0x9a0] sm:$0xff]
        %v1374 = vld [vmem:[#allocation8 + $0x9a8] sm:$0xff]
        %v1375 = vld [vmem:[#allocation8 + $0x9b0] sm:$0xff]
        %v1376 = vld [vmem:[#allocation8 + $0x9b8] sm:$0xff]
        %v1377 = vld [vmem:[#allocation8 + $0x9c0] sm:$0xff]
        %v1378 = vld [vmem:[#allocation8 + $0x9c8] sm:$0xff]
        %v1379 = vld [vmem:[#allocation8 + $0x9d0] sm:$0xff]
        %v1380 = vld [vmem:[#allocation8 + $0x9d8] sm:$0xff]
        %v1381 = vld [vmem:[#allocation8 + $0x9e0] sm:$0xff]
        %v1382 = vld [vmem:[#allocation8 + $0x9e8] sm:$0xff]
        %v1383 = vld [vmem:[#allocation8 + $0x9f0] sm:$0xff]
        %v1384 = vld [vmem:[#allocation8 + $0x9f8] sm:$0xff]
        %v1385 = vld [vmem:[#allocation8 + $0xa00] sm:$0xff]
        %v1386 = vld [vmem:[#allocation8 + $0xa08] sm:$0xff]
        %v1387 = vld [vmem:[#allocation8 + $0xa10] sm:$0xff]
        %v1388 = vld [vmem:[#allocation8 + $0xa18] sm:$0xff]
        %v1389 = vld [vmem:[#allocation8 + $0xa20] sm:$0xff]
        %v1390 = vld [vmem:[#allocation8 + $0xa28] sm:$0xff]
        %v1391 = vld [vmem:[#allocation8 + $0xa30] sm:$0xff]
        %v1392 = vld [vmem:[#allocation8 + $0xa38] sm:$0xff]
        %v1393 = vld [vmem:[#allocation8 + $0xa40] sm:$0xff]
        %v1394 = vld [vmem:[#allocation8 + $0xa48] sm:$0xff]
        %v1395 = vld [vmem:[#allocation8 + $0xa50] sm:$0xff]
        %v1396 = vld [vmem:[#allocation8 + $0xa58] sm:$0xff]
        %v1397 = vld [vmem:[#allocation8 + $0xa60] sm:$0xff]
        %v1398 = vld [vmem:[#allocation8 + $0xa68] sm:$0xff]
        %v1399 = vld [vmem:[#allocation8 + $0xa70] sm:$0xff]
        %v1400 = vld [vmem:[#allocation8 + $0xa78] sm:$0xff]
        %v1401 = vld [vmem:[#allocation8 + $0xa80] sm:$0xff]
        %v1402 = vld [vmem:[#allocation8 + $0xa88] sm:$0xff]
        %v1403 = vld [vmem:[#allocation8 + $0xa90] sm:$0xff]
        %v1404 = vld [vmem:[#allocation8 + $0xa98] sm:$0xff]
        %v1405 = vld [vmem:[#allocation8 + $0xaa0] sm:$0xff]
        %v1406 = vld [vmem:[#allocation8 + $0xaa8] sm:$0xff]
        %v1407 = vld [vmem:[#allocation8 + $0xab0] sm:$0xff]
        %v1408 = vld [vmem:[#allocation8 + $0xab8] sm:$0xff]
        %v1409 = vld [vmem:[#allocation8 + $0xac0] sm:$0xff]
        %v1410 = vld [vmem:[#allocation8 + $0xac8] sm:$0xff]
        %v1411 = vld [vmem:[#allocation8 + $0xad0] sm:$0xff]
        %v1412 = vld [vmem:[#allocation8 + $0xad8] sm:$0xff]
        %v1413 = vld [vmem:[#allocation8 + $0xae0] sm:$0xff]
        %v1414 = vld [vmem:[#allocation8 + $0xae8] sm:$0xff]
        %v1415 = vld [vmem:[#allocation8 + $0xaf0] sm:$0xff]
        %v1416 = vld [vmem:[#allocation8 + $0xaf8] sm:$0xff]
        %v1417 = vld [vmem:[#allocation8 + $0xb00] sm:$0xff]
        %v1418 = vld [vmem:[#allocation8 + $0xb08] sm:$0xff]
        %v1419 = vld [vmem:[#allocation8 + $0xb10] sm:$0xff]
        %v1420 = vld [vmem:[#allocation8 + $0xb18] sm:$0xff]
        %v1421 = vld [vmem:[#allocation8 + $0xb20] sm:$0xff]
        %v1422 = vld [vmem:[#allocation8 + $0xb28] sm:$0xff]
        %v1423 = vld [vmem:[#allocation8 + $0xb30] sm:$0xff]
        %v1424 = vld [vmem:[#allocation8 + $0xb38] sm:$0xff]
        %v1425 = vld [vmem:[#allocation8 + $0xb40] sm:$0xff]
        %v1426 = vld [vmem:[#allocation8 + $0xb48] sm:$0xff]
        %v1427 = vld [vmem:[#allocation8 + $0xb50] sm:$0xff]
        %v1428 = vld [vmem:[#allocation8 + $0xb58] sm:$0xff]
        %v1429 = vld [vmem:[#allocation8 + $0xb60] sm:$0xff]
        %v1430 = vld [vmem:[#allocation8 + $0xb68] sm:$0xff]
        %v1431 = vld [vmem:[#allocation8 + $0xb70] sm:$0xff]
        %v1432 = vld [vmem:[#allocation8 + $0xb78] sm:$0xff]
        %v1433 = vld [vmem:[#allocation8 + $0xb80] sm:$0xff]
        %v1434 = vld [vmem:[#allocation8 + $0xb88] sm:$0xff]
        %v1435 = vld [vmem:[#allocation8 + $0xb90] sm:$0xff]
        %v1436 = vld [vmem:[#allocation8 + $0xb98] sm:$0xff]
        %v1437 = vld [vmem:[#allocation8 + $0xba0] sm:$0xff]
        %v1438 = vld [vmem:[#allocation8 + $0xba8] sm:$0xff]
        %v1439 = vld [vmem:[#allocation8 + $0xbb0] sm:$0xff]
        %v1440 = vld [vmem:[#allocation8 + $0xbb8] sm:$0xff]
        %v1441 = vld [vmem:[#allocation8 + $0xbc0] sm:$0xff]
        %v1442 = vld [vmem:[#allocation8 + $0xbc8] sm:$0xff]
        %v1443 = vld [vmem:[#allocation8 + $0xbd0] sm:$0xff]
        %v1444 = vld [vmem:[#allocation8 + $0xbd8] sm:$0xff]
        %v1445 = vld [vmem:[#allocation8 + $0xbe0] sm:$0xff]
        %v1446 = vld [vmem:[#allocation8 + $0xbe8] sm:$0xff]
        %v1447 = vld [vmem:[#allocation8 + $0xbf0] sm:$0xff]
        %v1448 = vld [vmem:[#allocation8 + $0xbf8] sm:$0xff]
        %v1449 = vld [vmem:[#allocation8 + $0xc00] sm:$0xff]
        %v1450 = vld [vmem:[#allocation8 + $0xc08] sm:$0xff]
        %v1451 = vld [vmem:[#allocation8 + $0xc10] sm:$0xff]
        %v1452 = vld [vmem:[#allocation8 + $0xc18] sm:$0xff]
        %v1453 = vld [vmem:[#allocation8 + $0xc20] sm:$0xff]
        %v1454 = vld [vmem:[#allocation8 + $0xc28] sm:$0xff]
        %v1455 = vld [vmem:[#allocation8 + $0xc30] sm:$0xff]
        %v1456 = vld [vmem:[#allocation8 + $0xc38] sm:$0xff]
        %v1457 = vld [vmem:[#allocation8 + $0xc40] sm:$0xff]
        %v1458 = vld [vmem:[#allocation8 + $0xc48] sm:$0xff]
        %v1459 = vld [vmem:[#allocation8 + $0xc50] sm:$0xff]
        %v1460 = vld [vmem:[#allocation8 + $0xc58] sm:$0xff]
        %v1461 = vld [vmem:[#allocation8 + $0xc60] sm:$0xff]
        %v1462 = vld [vmem:[#allocation8 + $0xc68] sm:$0xff]
        %v1463 = vld [vmem:[#allocation8 + $0xc70] sm:$0xff]
        %v1464 = vld [vmem:[#allocation8 + $0xc78] sm:$0xff]
        %v1465 = vld [vmem:[#allocation8 + $0xc80] sm:$0xff]
        %v1466 = vld [vmem:[#allocation8 + $0xc88] sm:$0xff]
        %v1467 = vld [vmem:[#allocation8 + $0xc90] sm:$0xff]
        %v1468 = vld [vmem:[#allocation8 + $0xc98] sm:$0xff]
        %v1469 = vld [vmem:[#allocation8 + $0xca0] sm:$0xff]
        %v1470 = vld [vmem:[#allocation8 + $0xca8] sm:$0xff]
        %v1471 = vld [vmem:[#allocation8 + $0xcb0] sm:$0xff]
        %v1472 = vld [vmem:[#allocation8 + $0xcb8] sm:$0xff]
        %v1473 = vld [vmem:[#allocation8 + $0xcc0] sm:$0xff]
        %v1474 = vld [vmem:[#allocation8 + $0xcc8] sm:$0xff]
        %v1475 = vld [vmem:[#allocation8 + $0xcd0] sm:$0xff]
        %v1476 = vld [vmem:[#allocation8 + $0xcd8] sm:$0xff]
        %v1477 = vld [vmem:[#allocation8 + $0xce0] sm:$0xff]
        %v1478 = vld [vmem:[#allocation8 + $0xce8] sm:$0xff]
        %v1479 = vld [vmem:[#allocation8 + $0xcf0] sm:$0xff]
        %v1480 = vld [vmem:[#allocation8 + $0xcf8] sm:$0xff]
        %v1481 = vld [vmem:[#allocation8 + $0xd00] sm:$0xff]
        %v1482 = vld [vmem:[#allocation8 + $0xd08] sm:$0xff]
        %v1483 = vld [vmem:[#allocation8 + $0xd10] sm:$0xff]
        %v1484 = vld [vmem:[#allocation8 + $0xd18] sm:$0xff]
        %v1485 = vld [vmem:[#allocation8 + $0xd20] sm:$0xff]
        %v1486 = vld [vmem:[#allocation8 + $0xd28] sm:$0xff]
        %v1487 = vld [vmem:[#allocation8 + $0xd30] sm:$0xff]
        %v1488 = vld [vmem:[#allocation8 + $0xd38] sm:$0xff]
        %v1489 = vld [vmem:[#allocation8 + $0xd40] sm:$0xff]
        %v1490 = vld [vmem:[#allocation8 + $0xd48] sm:$0xff]
        %v1491 = vld [vmem:[#allocation8 + $0xd50] sm:$0xff]
        %v1492 = vld [vmem:[#allocation8 + $0xd58] sm:$0xff]
        %v1493 = vld [vmem:[#allocation8 + $0xd60] sm:$0xff]
        %v1494 = vld [vmem:[#allocation8 + $0xd68] sm:$0xff]
        %v1495 = vld [vmem:[#allocation8 + $0xd70] sm:$0xff]
        %v1496 = vld [vmem:[#allocation8 + $0xd78] sm:$0xff]
        %v1497 = vld [vmem:[#allocation8 + $0xd80] sm:$0xff]
        %v1498 = vld [vmem:[#allocation8 + $0xd88] sm:$0xff]
        %v1499 = vld [vmem:[#allocation8 + $0xd90] sm:$0xff]
        %v1500 = vld [vmem:[#allocation8 + $0xd98] sm:$0xff]
        %v1501 = vld [vmem:[#allocation8 + $0xda0] sm:$0xff]
        %v1502 = vld [vmem:[#allocation8 + $0xda8] sm:$0xff]
        %v1503 = vld [vmem:[#allocation8 + $0xdb0] sm:$0xff]
        %v1504 = vld [vmem:[#allocation8 + $0xdb8] sm:$0xff]
        %v1505 = vld [vmem:[#allocation8 + $0xdc0] sm:$0xff]
        %v1506 = vld [vmem:[#allocation8 + $0xdc8] sm:$0xff]
        %v1507 = vld [vmem:[#allocation8 + $0xdd0] sm:$0xff]
        %v1508 = vld [vmem:[#allocation8 + $0xdd8] sm:$0xff]
        %v1509 = vld [vmem:[#allocation8 + $0xde0] sm:$0xff]
        %v1510 = vld [vmem:[#allocation8 + $0xde8] sm:$0xff]
        %v1511 = vld [vmem:[#allocation8 + $0xdf0] sm:$0xff]
        %v1512 = vld [vmem:[#allocation8 + $0xdf8] sm:$0xff]
        %v1513 = vld [vmem:[#allocation8 + $0xe00] sm:$0xff]
        %v1514 = vld [vmem:[#allocation8 + $0xe08] sm:$0xff]
        %v1515 = vld [vmem:[#allocation8 + $0xe10] sm:$0xff]
        %v1516 = vld [vmem:[#allocation8 + $0xe18] sm:$0xff]
        %v1517 = vld [vmem:[#allocation8 + $0xe20] sm:$0xff]
        %v1518 = vld [vmem:[#allocation8 + $0xe28] sm:$0xff]
        %v1519 = vld [vmem:[#allocation8 + $0xe30] sm:$0xff]
        %v1520 = vld [vmem:[#allocation8 + $0xe38] sm:$0xff]
        %v1521 = vld [vmem:[#allocation8 + $0xe40] sm:$0xff]
        %v1522 = vld [vmem:[#allocation8 + $0xe48] sm:$0xff]
        %v1523 = vld [vmem:[#allocation8 + $0xe50] sm:$0xff]
        %v1524 = vld [vmem:[#allocation8 + $0xe58] sm:$0xff]
        %v1525 = vld [vmem:[#allocation8 + $0xe60] sm:$0xff]
        %v1526 = vld [vmem:[#allocation8 + $0xe68] sm:$0xff]
        %v1527 = vld [vmem:[#allocation8 + $0xe70] sm:$0xff]
        %v1528 = vld [vmem:[#allocation8 + $0xe78] sm:$0xff]
        %v1529 = vld [vmem:[#allocation8 + $0xe80] sm:$0xff]
        %v1530 = vld [vmem:[#allocation8 + $0xe88] sm:$0xff]
        %v1531 = vld [vmem:[#allocation8 + $0xe90] sm:$0xff]
        %v1532 = vld [vmem:[#allocation8 + $0xe98] sm:$0xff]
        %v1533 = vld [vmem:[#allocation8 + $0xea0] sm:$0xff]
        %v1534 = vld [vmem:[#allocation8 + $0xea8] sm:$0xff]
        %v1535 = vld [vmem:[#allocation8 + $0xeb0] sm:$0xff]
        %v1536 = vld [vmem:[#allocation8 + $0xeb8] sm:$0xff]
        %v1537 = vld [vmem:[#allocation8 + $0xec0] sm:$0xff]
        %v1538 = vld [vmem:[#allocation8 + $0xec8] sm:$0xff]
        %v1539 = vld [vmem:[#allocation8 + $0xed0] sm:$0xff]
        %v1540 = vld [vmem:[#allocation8 + $0xed8] sm:$0xff]
        %v1541 = vld [vmem:[#allocation8 + $0xee0] sm:$0xff]
        %v1542 = vld [vmem:[#allocation8 + $0xee8] sm:$0xff]
        %v1543 = vld [vmem:[#allocation8 + $0xef0] sm:$0xff]
        %v1544 = vld [vmem:[#allocation8 + $0xef8] sm:$0xff]
        %v1545 = vld [vmem:[#allocation8 + $0xf00] sm:$0xff]
        %v1546 = vld [vmem:[#allocation8 + $0xf08] sm:$0xff]
        %v1547 = vld [vmem:[#allocation8 + $0xf10] sm:$0xff]
        %v1548 = vld [vmem:[#allocation8 + $0xf18] sm:$0xff]
        %v1549 = vld [vmem:[#allocation8 + $0xf20] sm:$0xff]
        %v1550 = vld [vmem:[#allocation8 + $0xf28] sm:$0xff]
        %v1551 = vld [vmem:[#allocation8 + $0xf30] sm:$0xff]
        %v1552 = vld [vmem:[#allocation8 + $0xf38] sm:$0xff]
        %v1553 = vld [vmem:[#allocation8 + $0xf40] sm:$0xff]
        %v1554 = vld [vmem:[#allocation8 + $0xf48] sm:$0xff]
        %v1555 = vld [vmem:[#allocation8 + $0xf50] sm:$0xff]
        %v1556 = vld [vmem:[#allocation8 + $0xf58] sm:$0xff]
        %v1557 = vld [vmem:[#allocation8 + $0xf60] sm:$0xff]
        %v1558 = vld [vmem:[#allocation8 + $0xf68] sm:$0xff]
        %v1559 = vld [vmem:[#allocation8 + $0xf70] sm:$0xff]
        %v1560 = vld [vmem:[#allocation8 + $0xf78] sm:$0xff]
        %v1561 = vld [vmem:[#allocation8 + $0xf80] sm:$0xff]
        %v1562 = vld [vmem:[#allocation8 + $0xf88] sm:$0xff]
        %v1563 = vld [vmem:[#allocation8 + $0xf90] sm:$0xff]
        %v1564 = vld [vmem:[#allocation8 + $0xf98] sm:$0xff]
        %v1565 = vld [vmem:[#allocation8 + $0xfa0] sm:$0xff]
        %v1566 = vld [vmem:[#allocation8 + $0xfa8] sm:$0xff]
        %v1567 = vld [vmem:[#allocation8 + $0xfb0] sm:$0xff]
        %v1568 = vld [vmem:[#allocation8 + $0xfb8] sm:$0xff]
        %v1569 = vld [vmem:[#allocation8 + $0xfc0] sm:$0xff]
        %v1570 = vld [vmem:[#allocation8 + $0xfc8] sm:$0xff]
        %v1571 = vld [vmem:[#allocation8 + $0xfd0] sm:$0xff]
        %v1572 = vld [vmem:[#allocation8 + $0xfd8] sm:$0xff]
        %v1573 = vld [vmem:[#allocation8 + $0xfe0] sm:$0xff]
        %v1574 = vld [vmem:[#allocation8 + $0xfe8] sm:$0xff]
        %v1575 = vld [vmem:[#allocation8 + $0xff0] sm:$0xff]
        %v1576 = vld [vmem:[#allocation8 + $0xff8] sm:$0xff]
        %s1577 = scalar_lea.vmem [#allocation13], 1
        %v1578 = vld [vmem:[%s1577] ss:$2 sm:$0xff]
        %v1580 = vlaneseq
        %v1581 = vshrl.u32 %v1580, 7
        %v1582 = vsub.s32 0, %v1581
        %v1583 = vrot.slane %v1578, %v1582
        %v1584 = vlaneseq
        %v1585 = vshrl.u32 %v1584, 7
        %v1586 = vsub.s32 1, %v1585
        %v1587 = vrot.slane %v1578, %v1586
        %v1588 = vlaneseq
        %v1589 = vshrl.u32 %v1588, 7
        %v1590 = vsub.s32 2, %v1589
        %v1591 = vrot.slane %v1578, %v1590
        %v1592 = vlaneseq
        %v1593 = vshrl.u32 %v1592, 7
        %v1594 = vsub.s32 3, %v1593
        %v1595 = vrot.slane %v1578, %v1594
        %v1596 = vlaneseq
        %v1597 = vshrl.u32 %v1596, 7
        %v1598 = vsub.s32 4, %v1597
        %v1599 = vrot.slane %v1578, %v1598
        %v1600 = vlaneseq
        %v1601 = vshrl.u32 %v1600, 7
        %v1602 = vsub.s32 5, %v1601
        %v1603 = vrot.slane %v1578, %v1602
        %v1604 = vlaneseq
        %v1605 = vshrl.u32 %v1604, 7
        %v1606 = vsub.s32 6, %v1605
        %v1607 = vrot.slane %v1578, %v1606
        %v1608 = vlaneseq
        %v1609 = vshrl.u32 %v1608, 7
        %v1610 = vsub.s32 7, %v1609
        %v1611 = vrot.slane %v1578, %v1610
        %v2132 = vunpack.c.l.b16 %v1065
        %v2133 = vunpack.c.h.b16 %v1065
        %v2134 = vunpack.c.l.b16 %v1066
        %v2135 = vunpack.c.h.b16 %v1066
        %v2136 = vunpack.c.l.b16 %v1067
        %v2137 = vunpack.c.h.b16 %v1067
        %v2138 = vunpack.c.l.b16 %v1068
        %v2139 = vunpack.c.h.b16 %v1068
        %v2140 = vunpack.c.l.b16 %v1069
        %v2141 = vunpack.c.h.b16 %v1069
        %v2142 = vunpack.c.l.b16 %v1070
        %v2143 = vunpack.c.h.b16 %v1070
        %v2144 = vunpack.c.l.b16 %v1071
        %v2145 = vunpack.c.h.b16 %v1071
        %v2146 = vunpack.c.l.b16 %v1072
        %v2147 = vunpack.c.h.b16 %v1072
        %v2148 = vunpack.c.l.b16 %v1073
        %v2149 = vunpack.c.h.b16 %v1073
        %v2150 = vunpack.c.l.b16 %v1074
        %v2151 = vunpack.c.h.b16 %v1074
        %v2152 = vunpack.c.l.b16 %v1075
        %v2153 = vunpack.c.h.b16 %v1075
        %v2154 = vunpack.c.l.b16 %v1076
        %v2155 = vunpack.c.h.b16 %v1076
        %v2156 = vunpack.c.l.b16 %v1077
        %v2157 = vunpack.c.h.b16 %v1077
        %v2158 = vunpack.c.l.b16 %v1078
        %v2159 = vunpack.c.h.b16 %v1078
        %v2160 = vunpack.c.l.b16 %v1079
        %v2161 = vunpack.c.h.b16 %v1079
        %v2162 = vunpack.c.l.b16 %v1080
        %v2163 = vunpack.c.h.b16 %v1080
        %v2164 = vunpack.c.l.b16 %v1081
        %v2165 = vunpack.c.h.b16 %v1081
        %v2166 = vunpack.c.l.b16 %v1082
        %v2167 = vunpack.c.h.b16 %v1082
        %v2168 = vunpack.c.l.b16 %v1083
        %v2169 = vunpack.c.h.b16 %v1083
        %v2170 = vunpack.c.l.b16 %v1084
        %v2171 = vunpack.c.h.b16 %v1084
        %v2172 = vunpack.c.l.b16 %v1085
        %v2173 = vunpack.c.h.b16 %v1085
        %v2174 = vunpack.c.l.b16 %v1086
        %v2175 = vunpack.c.h.b16 %v1086
        %v2176 = vunpack.c.l.b16 %v1087
        %v2177 = vunpack.c.h.b16 %v1087
        %v2178 = vunpack.c.l.b16 %v1088
        %v2179 = vunpack.c.h.b16 %v1088
        %v2180 = vunpack.c.l.b16 %v1089
        %v2181 = vunpack.c.h.b16 %v1089
        %v2182 = vunpack.c.l.b16 %v1090
        %v2183 = vunpack.c.h.b16 %v1090
        %v2184 = vunpack.c.l.b16 %v1091
        %v2185 = vunpack.c.h.b16 %v1091
        %v2186 = vunpack.c.l.b16 %v1092
        %v2187 = vunpack.c.h.b16 %v1092
        %v2188 = vunpack.c.l.b16 %v1093
        %v2189 = vunpack.c.h.b16 %v1093
        %v2190 = vunpack.c.l.b16 %v1094
        %v2191 = vunpack.c.h.b16 %v1094
        %v2192 = vunpack.c.l.b16 %v1095
        %v2193 = vunpack.c.h.b16 %v1095
        %v2194 = vunpack.c.l.b16 %v1096
        %v2195 = vunpack.c.h.b16 %v1096
        %v2196 = vunpack.c.l.b16 %v1097
        %v2197 = vunpack.c.h.b16 %v1097
        %v2198 = vunpack.c.l.b16 %v1098
        %v2199 = vunpack.c.h.b16 %v1098
        %v2200 = vunpack.c.l.b16 %v1099
        %v2201 = vunpack.c.h.b16 %v1099
        %v2202 = vunpack.c.l.b16 %v1100
        %v2203 = vunpack.c.h.b16 %v1100
        %v2204 = vunpack.c.l.b16 %v1101
        %v2205 = vunpack.c.h.b16 %v1101
        %v2206 = vunpack.c.l.b16 %v1102
        %v2207 = vunpack.c.h.b16 %v1102
        %v2208 = vunpack.c.l.b16 %v1103
        %v2209 = vunpack.c.h.b16 %v1103
        %v2210 = vunpack.c.l.b16 %v1104
        %v2211 = vunpack.c.h.b16 %v1104
        %v2212 = vunpack.c.l.b16 %v1105
        %v2213 = vunpack.c.h.b16 %v1105
        %v2214 = vunpack.c.l.b16 %v1106
        %v2215 = vunpack.c.h.b16 %v1106
        %v2216 = vunpack.c.l.b16 %v1107
        %v2217 = vunpack.c.h.b16 %v1107
        %v2218 = vunpack.c.l.b16 %v1108
        %v2219 = vunpack.c.h.b16 %v1108
        %v2220 = vunpack.c.l.b16 %v1109
        %v2221 = vunpack.c.h.b16 %v1109
        %v2222 = vunpack.c.l.b16 %v1110
        %v2223 = vunpack.c.h.b16 %v1110
        %v2224 = vunpack.c.l.b16 %v1111
        %v2225 = vunpack.c.h.b16 %v1111
        %v2226 = vunpack.c.l.b16 %v1112
        %v2227 = vunpack.c.h.b16 %v1112
        %v2228 = vunpack.c.l.b16 %v1113
        %v2229 = vunpack.c.h.b16 %v1113
        %v2230 = vunpack.c.l.b16 %v1114
        %v2231 = vunpack.c.h.b16 %v1114
        %v2232 = vunpack.c.l.b16 %v1115
        %v2233 = vunpack.c.h.b16 %v1115
        %v2234 = vunpack.c.l.b16 %v1116
        %v2235 = vunpack.c.h.b16 %v1116
        %v2236 = vunpack.c.l.b16 %v1117
        %v2237 = vunpack.c.h.b16 %v1117
        %v2238 = vunpack.c.l.b16 %v1118
        %v2239 = vunpack.c.h.b16 %v1118
        %v2240 = vunpack.c.l.b16 %v1119
        %v2241 = vunpack.c.h.b16 %v1119
        %v2242 = vunpack.c.l.b16 %v1120
        %v2243 = vunpack.c.h.b16 %v1120
        %v2244 = vunpack.c.l.b16 %v1121
        %v2245 = vunpack.c.h.b16 %v1121
        %v2246 = vunpack.c.l.b16 %v1122
        %v2247 = vunpack.c.h.b16 %v1122
        %v2248 = vunpack.c.l.b16 %v1123
        %v2249 = vunpack.c.h.b16 %v1123
        %v2250 = vunpack.c.l.b16 %v1124
        %v2251 = vunpack.c.h.b16 %v1124
        %v2252 = vunpack.c.l.b16 %v1125
        %v2253 = vunpack.c.h.b16 %v1125
        %v2254 = vunpack.c.l.b16 %v1126
        %v2255 = vunpack.c.h.b16 %v1126
        %v2256 = vunpack.c.l.b16 %v1127
        %v2257 = vunpack.c.h.b16 %v1127
        %v2258 = vunpack.c.l.b16 %v1128
        %v2259 = vunpack.c.h.b16 %v1128
        %v2260 = vunpack.c.l.b16 %v1129
        %v2261 = vunpack.c.h.b16 %v1129
        %v2262 = vunpack.c.l.b16 %v1130
        %v2263 = vunpack.c.h.b16 %v1130
        %v2264 = vunpack.c.l.b16 %v1131
        %v2265 = vunpack.c.h.b16 %v1131
        %v2266 = vunpack.c.l.b16 %v1132
        %v2267 = vunpack.c.h.b16 %v1132
        %v2268 = vunpack.c.l.b16 %v1133
        %v2269 = vunpack.c.h.b16 %v1133
        %v2270 = vunpack.c.l.b16 %v1134
        %v2271 = vunpack.c.h.b16 %v1134
        %v2272 = vunpack.c.l.b16 %v1135
        %v2273 = vunpack.c.h.b16 %v1135
        %v2274 = vunpack.c.l.b16 %v1136
        %v2275 = vunpack.c.h.b16 %v1136
        %v2276 = vunpack.c.l.b16 %v1137
        %v2277 = vunpack.c.h.b16 %v1137
        %v2278 = vunpack.c.l.b16 %v1138
        %v2279 = vunpack.c.h.b16 %v1138
        %v2280 = vunpack.c.l.b16 %v1139
        %v2281 = vunpack.c.h.b16 %v1139
        %v2282 = vunpack.c.l.b16 %v1140
        %v2283 = vunpack.c.h.b16 %v1140
        %v2284 = vunpack.c.l.b16 %v1141
        %v2285 = vunpack.c.h.b16 %v1141
        %v2286 = vunpack.c.l.b16 %v1142
        %v2287 = vunpack.c.h.b16 %v1142
        %v2288 = vunpack.c.l.b16 %v1143
        %v2289 = vunpack.c.h.b16 %v1143
        %v2290 = vunpack.c.l.b16 %v1144
        %v2291 = vunpack.c.h.b16 %v1144
        %v2292 = vunpack.c.l.b16 %v1145
        %v2293 = vunpack.c.h.b16 %v1145
        %v2294 = vunpack.c.l.b16 %v1146
        %v2295 = vunpack.c.h.b16 %v1146
        %v2296 = vunpack.c.l.b16 %v1147
        %v2297 = vunpack.c.h.b16 %v1147
        %v2298 = vunpack.c.l.b16 %v1148
        %v2299 = vunpack.c.h.b16 %v1148
        %v2300 = vunpack.c.l.b16 %v1149
        %v2301 = vunpack.c.h.b16 %v1149
        %v2302 = vunpack.c.l.b16 %v1150
        %v2303 = vunpack.c.h.b16 %v1150
        %v2304 = vunpack.c.l.b16 %v1151
        %v2305 = vunpack.c.h.b16 %v1151
        %v2306 = vunpack.c.l.b16 %v1152
        %v2307 = vunpack.c.h.b16 %v1152
        %v2308 = vunpack.c.l.b16 %v1153
        %v2309 = vunpack.c.h.b16 %v1153
        %v2310 = vunpack.c.l.b16 %v1154
        %v2311 = vunpack.c.h.b16 %v1154
        %v2312 = vunpack.c.l.b16 %v1155
        %v2313 = vunpack.c.h.b16 %v1155
        %v2314 = vunpack.c.l.b16 %v1156
        %v2315 = vunpack.c.h.b16 %v1156
        %v2316 = vunpack.c.l.b16 %v1157
        %v2317 = vunpack.c.h.b16 %v1157
        %v2318 = vunpack.c.l.b16 %v1158
        %v2319 = vunpack.c.h.b16 %v1158
        %v2320 = vunpack.c.l.b16 %v1159
        %v2321 = vunpack.c.h.b16 %v1159
        %v2322 = vunpack.c.l.b16 %v1160
        %v2323 = vunpack.c.h.b16 %v1160
        %v2324 = vunpack.c.l.b16 %v1161
        %v2325 = vunpack.c.h.b16 %v1161
        %v2326 = vunpack.c.l.b16 %v1162
        %v2327 = vunpack.c.h.b16 %v1162
        %v2328 = vunpack.c.l.b16 %v1163
        %v2329 = vunpack.c.h.b16 %v1163
        %v2330 = vunpack.c.l.b16 %v1164
        %v2331 = vunpack.c.h.b16 %v1164
        %v2332 = vunpack.c.l.b16 %v1165
        %v2333 = vunpack.c.h.b16 %v1165
        %v2334 = vunpack.c.l.b16 %v1166
        %v2335 = vunpack.c.h.b16 %v1166
        %v2336 = vunpack.c.l.b16 %v1167
        %v2337 = vunpack.c.h.b16 %v1167
        %v2338 = vunpack.c.l.b16 %v1168
        %v2339 = vunpack.c.h.b16 %v1168
        %v2340 = vunpack.c.l.b16 %v1169
        %v2341 = vunpack.c.h.b16 %v1169
        %v2342 = vunpack.c.l.b16 %v1170
        %v2343 = vunpack.c.h.b16 %v1170
        %v2344 = vunpack.c.l.b16 %v1171
        %v2345 = vunpack.c.h.b16 %v1171
        %v2346 = vunpack.c.l.b16 %v1172
        %v2347 = vunpack.c.h.b16 %v1172
        %v2348 = vunpack.c.l.b16 %v1173
        %v2349 = vunpack.c.h.b16 %v1173
        %v2350 = vunpack.c.l.b16 %v1174
        %v2351 = vunpack.c.h.b16 %v1174
        %v2352 = vunpack.c.l.b16 %v1175
        %v2353 = vunpack.c.h.b16 %v1175
        %v2354 = vunpack.c.l.b16 %v1176
        %v2355 = vunpack.c.h.b16 %v1176
        %v2356 = vunpack.c.l.b16 %v1177
        %v2357 = vunpack.c.h.b16 %v1177
        %v2358 = vunpack.c.l.b16 %v1178
        %v2359 = vunpack.c.h.b16 %v1178
        %v2360 = vunpack.c.l.b16 %v1179
        %v2361 = vunpack.c.h.b16 %v1179
        %v2362 = vunpack.c.l.b16 %v1180
        %v2363 = vunpack.c.h.b16 %v1180
        %v2364 = vunpack.c.l.b16 %v1181
        %v2365 = vunpack.c.h.b16 %v1181
        %v2366 = vunpack.c.l.b16 %v1182
        %v2367 = vunpack.c.h.b16 %v1182
        %v2368 = vunpack.c.l.b16 %v1183
        %v2369 = vunpack.c.h.b16 %v1183
        %v2370 = vunpack.c.l.b16 %v1184
        %v2371 = vunpack.c.h.b16 %v1184
        %v2372 = vunpack.c.l.b16 %v1185
        %v2373 = vunpack.c.h.b16 %v1185
        %v2374 = vunpack.c.l.b16 %v1186
        %v2375 = vunpack.c.h.b16 %v1186
        %v2376 = vunpack.c.l.b16 %v1187
        %v2377 = vunpack.c.h.b16 %v1187
        %v2378 = vunpack.c.l.b16 %v1188
        %v2379 = vunpack.c.h.b16 %v1188
        %v2380 = vunpack.c.l.b16 %v1189
        %v2381 = vunpack.c.h.b16 %v1189
        %v2382 = vunpack.c.l.b16 %v1190
        %v2383 = vunpack.c.h.b16 %v1190
        %v2384 = vunpack.c.l.b16 %v1191
        %v2385 = vunpack.c.h.b16 %v1191
        %v2386 = vunpack.c.l.b16 %v1192
        %v2387 = vunpack.c.h.b16 %v1192
        %v2388 = vunpack.c.l.b16 %v1193
        %v2389 = vunpack.c.h.b16 %v1193
        %v2390 = vunpack.c.l.b16 %v1194
        %v2391 = vunpack.c.h.b16 %v1194
        %v2392 = vunpack.c.l.b16 %v1195
        %v2393 = vunpack.c.h.b16 %v1195
        %v2394 = vunpack.c.l.b16 %v1196
        %v2395 = vunpack.c.h.b16 %v1196
        %v2396 = vunpack.c.l.b16 %v1197
        %v2397 = vunpack.c.h.b16 %v1197
        %v2398 = vunpack.c.l.b16 %v1198
        %v2399 = vunpack.c.h.b16 %v1198
        %v2400 = vunpack.c.l.b16 %v1199
        %v2401 = vunpack.c.h.b16 %v1199
        %v2402 = vunpack.c.l.b16 %v1200
        %v2403 = vunpack.c.h.b16 %v1200
        %v2404 = vunpack.c.l.b16 %v1201
        %v2405 = vunpack.c.h.b16 %v1201
        %v2406 = vunpack.c.l.b16 %v1202
        %v2407 = vunpack.c.h.b16 %v1202
        %v2408 = vunpack.c.l.b16 %v1203
        %v2409 = vunpack.c.h.b16 %v1203
        %v2410 = vunpack.c.l.b16 %v1204
        %v2411 = vunpack.c.h.b16 %v1204
        %v2412 = vunpack.c.l.b16 %v1205
        %v2413 = vunpack.c.h.b16 %v1205
        %v2414 = vunpack.c.l.b16 %v1206
        %v2415 = vunpack.c.h.b16 %v1206
        %v2416 = vunpack.c.l.b16 %v1207
        %v2417 = vunpack.c.h.b16 %v1207
        %v2418 = vunpack.c.l.b16 %v1208
        %v2419 = vunpack.c.h.b16 %v1208
        %v2420 = vunpack.c.l.b16 %v1209
        %v2421 = vunpack.c.h.b16 %v1209
        %v2422 = vunpack.c.l.b16 %v1210
        %v2423 = vunpack.c.h.b16 %v1210
        %v2424 = vunpack.c.l.b16 %v1211
        %v2425 = vunpack.c.h.b16 %v1211
        %v2426 = vunpack.c.l.b16 %v1212
        %v2427 = vunpack.c.h.b16 %v1212
        %v2428 = vunpack.c.l.b16 %v1213
        %v2429 = vunpack.c.h.b16 %v1213
        %v2430 = vunpack.c.l.b16 %v1214
        %v2431 = vunpack.c.h.b16 %v1214
        %v2432 = vunpack.c.l.b16 %v1215
        %v2433 = vunpack.c.h.b16 %v1215
        %v2434 = vunpack.c.l.b16 %v1216
        %v2435 = vunpack.c.h.b16 %v1216
        %v2436 = vunpack.c.l.b16 %v1217
        %v2437 = vunpack.c.h.b16 %v1217
        %v2438 = vunpack.c.l.b16 %v1218
        %v2439 = vunpack.c.h.b16 %v1218
        %v2440 = vunpack.c.l.b16 %v1219
        %v2441 = vunpack.c.h.b16 %v1219
        %v2442 = vunpack.c.l.b16 %v1220
        %v2443 = vunpack.c.h.b16 %v1220
        %v2444 = vunpack.c.l.b16 %v1221
        %v2445 = vunpack.c.h.b16 %v1221
        %v2446 = vunpack.c.l.b16 %v1222
        %v2447 = vunpack.c.h.b16 %v1222
        %v2448 = vunpack.c.l.b16 %v1223
        %v2449 = vunpack.c.h.b16 %v1223
        %v2450 = vunpack.c.l.b16 %v1224
        %v2451 = vunpack.c.h.b16 %v1224
        %v2452 = vunpack.c.l.b16 %v1225
        %v2453 = vunpack.c.h.b16 %v1225
        %v2454 = vunpack.c.l.b16 %v1226
        %v2455 = vunpack.c.h.b16 %v1226
        %v2456 = vunpack.c.l.b16 %v1227
        %v2457 = vunpack.c.h.b16 %v1227
        %v2458 = vunpack.c.l.b16 %v1228
        %v2459 = vunpack.c.h.b16 %v1228
        %v2460 = vunpack.c.l.b16 %v1229
        %v2461 = vunpack.c.h.b16 %v1229
        %v2462 = vunpack.c.l.b16 %v1230
        %v2463 = vunpack.c.h.b16 %v1230
        %v2464 = vunpack.c.l.b16 %v1231
        %v2465 = vunpack.c.h.b16 %v1231
        %v2466 = vunpack.c.l.b16 %v1232
        %v2467 = vunpack.c.h.b16 %v1232
        %v2468 = vunpack.c.l.b16 %v1233
        %v2469 = vunpack.c.h.b16 %v1233
        %v2470 = vunpack.c.l.b16 %v1234
        %v2471 = vunpack.c.h.b16 %v1234
        %v2472 = vunpack.c.l.b16 %v1235
        %v2473 = vunpack.c.h.b16 %v1235
        %v2474 = vunpack.c.l.b16 %v1236
        %v2475 = vunpack.c.h.b16 %v1236
        %v2476 = vunpack.c.l.b16 %v1237
        %v2477 = vunpack.c.h.b16 %v1237
        %v2478 = vunpack.c.l.b16 %v1238
        %v2479 = vunpack.c.h.b16 %v1238
        %v2480 = vunpack.c.l.b16 %v1239
        %v2481 = vunpack.c.h.b16 %v1239
        %v2482 = vunpack.c.l.b16 %v1240
        %v2483 = vunpack.c.h.b16 %v1240
        %v2484 = vunpack.c.l.b16 %v1241
        %v2485 = vunpack.c.h.b16 %v1241
        %v2486 = vunpack.c.l.b16 %v1242
        %v2487 = vunpack.c.h.b16 %v1242
        %v2488 = vunpack.c.l.b16 %v1243
        %v2489 = vunpack.c.h.b16 %v1243
        %v2490 = vunpack.c.l.b16 %v1244
        %v2491 = vunpack.c.h.b16 %v1244
        %v2492 = vunpack.c.l.b16 %v1245
        %v2493 = vunpack.c.h.b16 %v1245
        %v2494 = vunpack.c.l.b16 %v1246
        %v2495 = vunpack.c.h.b16 %v1246
        %v2496 = vunpack.c.l.b16 %v1247
        %v2497 = vunpack.c.h.b16 %v1247
        %v2498 = vunpack.c.l.b16 %v1248
        %v2499 = vunpack.c.h.b16 %v1248
        %v2500 = vunpack.c.l.b16 %v1249
        %v2501 = vunpack.c.h.b16 %v1249
        %v2502 = vunpack.c.l.b16 %v1250
        %v2503 = vunpack.c.h.b16 %v1250
        %v2504 = vunpack.c.l.b16 %v1251
        %v2505 = vunpack.c.h.b16 %v1251
        %v2506 = vunpack.c.l.b16 %v1252
        %v2507 = vunpack.c.h.b16 %v1252
        %v2508 = vunpack.c.l.b16 %v1253
        %v2509 = vunpack.c.h.b16 %v1253
        %v2510 = vunpack.c.l.b16 %v1254
        %v2511 = vunpack.c.h.b16 %v1254
        %v2512 = vunpack.c.l.b16 %v1255
        %v2513 = vunpack.c.h.b16 %v1255
        %v2514 = vunpack.c.l.b16 %v1256
        %v2515 = vunpack.c.h.b16 %v1256
        %v2516 = vunpack.c.l.b16 %v1257
        %v2517 = vunpack.c.h.b16 %v1257
        %v2518 = vunpack.c.l.b16 %v1258
        %v2519 = vunpack.c.h.b16 %v1258
        %v2520 = vunpack.c.l.b16 %v1259
        %v2521 = vunpack.c.h.b16 %v1259
        %v2522 = vunpack.c.l.b16 %v1260
        %v2523 = vunpack.c.h.b16 %v1260
        %v2524 = vunpack.c.l.b16 %v1261
        %v2525 = vunpack.c.h.b16 %v1261
        %v2526 = vunpack.c.l.b16 %v1262
        %v2527 = vunpack.c.h.b16 %v1262
        %v2528 = vunpack.c.l.b16 %v1263
        %v2529 = vunpack.c.h.b16 %v1263
        %v2530 = vunpack.c.l.b16 %v1264
        %v2531 = vunpack.c.h.b16 %v1264
        %v2532 = vunpack.c.l.b16 %v1265
        %v2533 = vunpack.c.h.b16 %v1265
        %v2534 = vunpack.c.l.b16 %v1266
        %v2535 = vunpack.c.h.b16 %v1266
        %v2536 = vunpack.c.l.b16 %v1267
        %v2537 = vunpack.c.h.b16 %v1267
        %v2538 = vunpack.c.l.b16 %v1268
        %v2539 = vunpack.c.h.b16 %v1268
        %v2540 = vunpack.c.l.b16 %v1269
        %v2541 = vunpack.c.h.b16 %v1269
        %v2542 = vunpack.c.l.b16 %v1270
        %v2543 = vunpack.c.h.b16 %v1270
        %v2544 = vunpack.c.l.b16 %v1271
        %v2545 = vunpack.c.h.b16 %v1271
        %v2546 = vunpack.c.l.b16 %v1272
        %v2547 = vunpack.c.h.b16 %v1272
        %v2548 = vunpack.c.l.b16 %v1273
        %v2549 = vunpack.c.h.b16 %v1273
        %v2550 = vunpack.c.l.b16 %v1274
        %v2551 = vunpack.c.h.b16 %v1274
        %v2552 = vunpack.c.l.b16 %v1275
        %v2553 = vunpack.c.h.b16 %v1275
        %v2554 = vunpack.c.l.b16 %v1276
        %v2555 = vunpack.c.h.b16 %v1276
        %v2556 = vunpack.c.l.b16 %v1277
        %v2557 = vunpack.c.h.b16 %v1277
        %v2558 = vunpack.c.l.b16 %v1278
        %v2559 = vunpack.c.h.b16 %v1278
        %v2560 = vunpack.c.l.b16 %v1279
        %v2561 = vunpack.c.h.b16 %v1279
        %v2562 = vunpack.c.l.b16 %v1280
        %v2563 = vunpack.c.h.b16 %v1280
        %v2564 = vunpack.c.l.b16 %v1281
        %v2565 = vunpack.c.h.b16 %v1281
        %v2566 = vunpack.c.l.b16 %v1282
        %v2567 = vunpack.c.h.b16 %v1282
        %v2568 = vunpack.c.l.b16 %v1283
        %v2569 = vunpack.c.h.b16 %v1283
        %v2570 = vunpack.c.l.b16 %v1284
        %v2571 = vunpack.c.h.b16 %v1284
        %v2572 = vunpack.c.l.b16 %v1285
        %v2573 = vunpack.c.h.b16 %v1285
        %v2574 = vunpack.c.l.b16 %v1286
        %v2575 = vunpack.c.h.b16 %v1286
        %v2576 = vunpack.c.l.b16 %v1287
        %v2577 = vunpack.c.h.b16 %v1287
        %v2578 = vunpack.c.l.b16 %v1288
        %v2579 = vunpack.c.h.b16 %v1288
        %v2580 = vunpack.c.l.b16 %v1289
        %v2581 = vunpack.c.h.b16 %v1289
        %v2582 = vunpack.c.l.b16 %v1290
        %v2583 = vunpack.c.h.b16 %v1290
        %v2584 = vunpack.c.l.b16 %v1291
        %v2585 = vunpack.c.h.b16 %v1291
        %v2586 = vunpack.c.l.b16 %v1292
        %v2587 = vunpack.c.h.b16 %v1292
        %v2588 = vunpack.c.l.b16 %v1293
        %v2589 = vunpack.c.h.b16 %v1293
        %v2590 = vunpack.c.l.b16 %v1294
        %v2591 = vunpack.c.h.b16 %v1294
        %v2592 = vunpack.c.l.b16 %v1295
        %v2593 = vunpack.c.h.b16 %v1295
        %v2594 = vunpack.c.l.b16 %v1296
        %v2595 = vunpack.c.h.b16 %v1296
        %v2596 = vunpack.c.l.b16 %v1297
        %v2597 = vunpack.c.h.b16 %v1297
        %v2598 = vunpack.c.l.b16 %v1298
        %v2599 = vunpack.c.h.b16 %v1298
        %v2600 = vunpack.c.l.b16 %v1299
        %v2601 = vunpack.c.h.b16 %v1299
        %v2602 = vunpack.c.l.b16 %v1300
        %v2603 = vunpack.c.h.b16 %v1300
        %v2604 = vunpack.c.l.b16 %v1301
        %v2605 = vunpack.c.h.b16 %v1301
        %v2606 = vunpack.c.l.b16 %v1302
        %v2607 = vunpack.c.h.b16 %v1302
        %v2608 = vunpack.c.l.b16 %v1303
        %v2609 = vunpack.c.h.b16 %v1303
        %v2610 = vunpack.c.l.b16 %v1304
        %v2611 = vunpack.c.h.b16 %v1304
        %v2612 = vunpack.c.l.b16 %v1305
        %v2613 = vunpack.c.h.b16 %v1305
        %v2614 = vunpack.c.l.b16 %v1306
        %v2615 = vunpack.c.h.b16 %v1306
        %v2616 = vunpack.c.l.b16 %v1307
        %v2617 = vunpack.c.h.b16 %v1307
        %v2618 = vunpack.c.l.b16 %v1308
        %v2619 = vunpack.c.h.b16 %v1308
        %v2620 = vunpack.c.l.b16 %v1309
        %v2621 = vunpack.c.h.b16 %v1309
        %v2622 = vunpack.c.l.b16 %v1310
        %v2623 = vunpack.c.h.b16 %v1310
        %v2624 = vunpack.c.l.b16 %v1311
        %v2625 = vunpack.c.h.b16 %v1311
        %v2626 = vunpack.c.l.b16 %v1312
        %v2627 = vunpack.c.h.b16 %v1312
        %v2628 = vunpack.c.l.b16 %v1313
        %v2629 = vunpack.c.h.b16 %v1313
        %v2630 = vunpack.c.l.b16 %v1314
        %v2631 = vunpack.c.h.b16 %v1314
        %v2632 = vunpack.c.l.b16 %v1315
        %v2633 = vunpack.c.h.b16 %v1315
        %v2634 = vunpack.c.l.b16 %v1316
        %v2635 = vunpack.c.h.b16 %v1316
        %v2636 = vunpack.c.l.b16 %v1317
        %v2637 = vunpack.c.h.b16 %v1317
        %v2638 = vunpack.c.l.b16 %v1318
        %v2639 = vunpack.c.h.b16 %v1318
        %v2640 = vunpack.c.l.b16 %v1319
        %v2641 = vunpack.c.h.b16 %v1319
        %v2642 = vunpack.c.l.b16 %v1320
        %v2643 = vunpack.c.h.b16 %v1320
        %v2644 = vunpack.c.l.b16 %v1321
        %v2645 = vunpack.c.h.b16 %v1321
        %v2646 = vunpack.c.l.b16 %v1322
        %v2647 = vunpack.c.h.b16 %v1322
        %v2648 = vunpack.c.l.b16 %v1323
        %v2649 = vunpack.c.h.b16 %v1323
        %v2650 = vunpack.c.l.b16 %v1324
        %v2651 = vunpack.c.h.b16 %v1324
        %v2652 = vunpack.c.l.b16 %v1325
        %v2653 = vunpack.c.h.b16 %v1325
        %v2654 = vunpack.c.l.b16 %v1326
        %v2655 = vunpack.c.h.b16 %v1326
        %v2656 = vunpack.c.l.b16 %v1327
        %v2657 = vunpack.c.h.b16 %v1327
        %v2658 = vunpack.c.l.b16 %v1328
        %v2659 = vunpack.c.h.b16 %v1328
        %v2660 = vunpack.c.l.b16 %v1329
        %v2661 = vunpack.c.h.b16 %v1329
        %v2662 = vunpack.c.l.b16 %v1330
        %v2663 = vunpack.c.h.b16 %v1330
        %v2664 = vunpack.c.l.b16 %v1331
        %v2665 = vunpack.c.h.b16 %v1331
        %v2666 = vunpack.c.l.b16 %v1332
        %v2667 = vunpack.c.h.b16 %v1332
        %v2668 = vunpack.c.l.b16 %v1333
        %v2669 = vunpack.c.h.b16 %v1333
        %v2670 = vunpack.c.l.b16 %v1334
        %v2671 = vunpack.c.h.b16 %v1334
        %v2672 = vunpack.c.l.b16 %v1335
        %v2673 = vunpack.c.h.b16 %v1335
        %v2674 = vunpack.c.l.b16 %v1336
        %v2675 = vunpack.c.h.b16 %v1336
        %v2676 = vunpack.c.l.b16 %v1337
        %v2677 = vunpack.c.h.b16 %v1337
        %v2678 = vunpack.c.l.b16 %v1338
        %v2679 = vunpack.c.h.b16 %v1338
        %v2680 = vunpack.c.l.b16 %v1339
        %v2681 = vunpack.c.h.b16 %v1339
        %v2682 = vunpack.c.l.b16 %v1340
        %v2683 = vunpack.c.h.b16 %v1340
        %v2684 = vunpack.c.l.b16 %v1341
        %v2685 = vunpack.c.h.b16 %v1341
        %v2686 = vunpack.c.l.b16 %v1342
        %v2687 = vunpack.c.h.b16 %v1342
        %v2688 = vunpack.c.l.b16 %v1343
        %v2689 = vunpack.c.h.b16 %v1343
        %v2690 = vunpack.c.l.b16 %v1344
        %v2691 = vunpack.c.h.b16 %v1344
        %v2692 = vunpack.c.l.b16 %v1345
        %v2693 = vunpack.c.h.b16 %v1345
        %v2694 = vunpack.c.l.b16 %v1346
        %v2695 = vunpack.c.h.b16 %v1346
        %v2696 = vunpack.c.l.b16 %v1347
        %v2697 = vunpack.c.h.b16 %v1347
        %v2698 = vunpack.c.l.b16 %v1348
        %v2699 = vunpack.c.h.b16 %v1348
        %v2700 = vunpack.c.l.b16 %v1349
        %v2701 = vunpack.c.h.b16 %v1349
        %v2702 = vunpack.c.l.b16 %v1350
        %v2703 = vunpack.c.h.b16 %v1350
        %v2704 = vunpack.c.l.b16 %v1351
        %v2705 = vunpack.c.h.b16 %v1351
        %v2706 = vunpack.c.l.b16 %v1352
        %v2707 = vunpack.c.h.b16 %v1352
        %v2708 = vunpack.c.l.b16 %v1353
        %v2709 = vunpack.c.h.b16 %v1353
        %v2710 = vunpack.c.l.b16 %v1354
        %v2711 = vunpack.c.h.b16 %v1354
        %v2712 = vunpack.c.l.b16 %v1355
        %v2713 = vunpack.c.h.b16 %v1355
        %v2714 = vunpack.c.l.b16 %v1356
        %v2715 = vunpack.c.h.b16 %v1356
        %v2716 = vunpack.c.l.b16 %v1357
        %v2717 = vunpack.c.h.b16 %v1357
        %v2718 = vunpack.c.l.b16 %v1358
        %v2719 = vunpack.c.h.b16 %v1358
        %v2720 = vunpack.c.l.b16 %v1359
        %v2721 = vunpack.c.h.b16 %v1359
        %v2722 = vunpack.c.l.b16 %v1360
        %v2723 = vunpack.c.h.b16 %v1360
        %v2724 = vunpack.c.l.b16 %v1361
        %v2725 = vunpack.c.h.b16 %v1361
        %v2726 = vunpack.c.l.b16 %v1362
        %v2727 = vunpack.c.h.b16 %v1362
        %v2728 = vunpack.c.l.b16 %v1363
        %v2729 = vunpack.c.h.b16 %v1363
        %v2730 = vunpack.c.l.b16 %v1364
        %v2731 = vunpack.c.h.b16 %v1364
        %v2732 = vunpack.c.l.b16 %v1365
        %v2733 = vunpack.c.h.b16 %v1365
        %v2734 = vunpack.c.l.b16 %v1366
        %v2735 = vunpack.c.h.b16 %v1366
        %v2736 = vunpack.c.l.b16 %v1367
        %v2737 = vunpack.c.h.b16 %v1367
        %v2738 = vunpack.c.l.b16 %v1368
        %v2739 = vunpack.c.h.b16 %v1368
        %v2740 = vunpack.c.l.b16 %v1369
        %v2741 = vunpack.c.h.b16 %v1369
        %v2742 = vunpack.c.l.b16 %v1370
        %v2743 = vunpack.c.h.b16 %v1370
        %v2744 = vunpack.c.l.b16 %v1371
        %v2745 = vunpack.c.h.b16 %v1371
        %v2746 = vunpack.c.l.b16 %v1372
        %v2747 = vunpack.c.h.b16 %v1372
        %v2748 = vunpack.c.l.b16 %v1373
        %v2749 = vunpack.c.h.b16 %v1373
        %v2750 = vunpack.c.l.b16 %v1374
        %v2751 = vunpack.c.h.b16 %v1374
        %v2752 = vunpack.c.l.b16 %v1375
        %v2753 = vunpack.c.h.b16 %v1375
        %v2754 = vunpack.c.l.b16 %v1376
        %v2755 = vunpack.c.h.b16 %v1376
        %v2756 = vunpack.c.l.b16 %v1377
        %v2757 = vunpack.c.h.b16 %v1377
        %v2758 = vunpack.c.l.b16 %v1378
        %v2759 = vunpack.c.h.b16 %v1378
        %v2760 = vunpack.c.l.b16 %v1379
        %v2761 = vunpack.c.h.b16 %v1379
        %v2762 = vunpack.c.l.b16 %v1380
        %v2763 = vunpack.c.h.b16 %v1380
        %v2764 = vunpack.c.l.b16 %v1381
        %v2765 = vunpack.c.h.b16 %v1381
        %v2766 = vunpack.c.l.b16 %v1382
        %v2767 = vunpack.c.h.b16 %v1382
        %v2768 = vunpack.c.l.b16 %v1383
        %v2769 = vunpack.c.h.b16 %v1383
        %v2770 = vunpack.c.l.b16 %v1384
        %v2771 = vunpack.c.h.b16 %v1384
        %v2772 = vunpack.c.l.b16 %v1385
        %v2773 = vunpack.c.h.b16 %v1385
        %v2774 = vunpack.c.l.b16 %v1386
        %v2775 = vunpack.c.h.b16 %v1386
        %v2776 = vunpack.c.l.b16 %v1387
        %v2777 = vunpack.c.h.b16 %v1387
        %v2778 = vunpack.c.l.b16 %v1388
        %v2779 = vunpack.c.h.b16 %v1388
        %v2780 = vunpack.c.l.b16 %v1389
        %v2781 = vunpack.c.h.b16 %v1389
        %v2782 = vunpack.c.l.b16 %v1390
        %v2783 = vunpack.c.h.b16 %v1390
        %v2784 = vunpack.c.l.b16 %v1391
        %v2785 = vunpack.c.h.b16 %v1391
        %v2786 = vunpack.c.l.b16 %v1392
        %v2787 = vunpack.c.h.b16 %v1392
        %v2788 = vunpack.c.l.b16 %v1393
        %v2789 = vunpack.c.h.b16 %v1393
        %v2790 = vunpack.c.l.b16 %v1394
        %v2791 = vunpack.c.h.b16 %v1394
        %v2792 = vunpack.c.l.b16 %v1395
        %v2793 = vunpack.c.h.b16 %v1395
        %v2794 = vunpack.c.l.b16 %v1396
        %v2795 = vunpack.c.h.b16 %v1396
        %v2796 = vunpack.c.l.b16 %v1397
        %v2797 = vunpack.c.h.b16 %v1397
        %v2798 = vunpack.c.l.b16 %v1398
        %v2799 = vunpack.c.h.b16 %v1398
        %v2800 = vunpack.c.l.b16 %v1399
        %v2801 = vunpack.c.h.b16 %v1399
        %v2802 = vunpack.c.l.b16 %v1400
        %v2803 = vunpack.c.h.b16 %v1400
        %v2804 = vunpack.c.l.b16 %v1401
        %v2805 = vunpack.c.h.b16 %v1401
        %v2806 = vunpack.c.l.b16 %v1402
        %v2807 = vunpack.c.h.b16 %v1402
        %v2808 = vunpack.c.l.b16 %v1403
        %v2809 = vunpack.c.h.b16 %v1403
        %v2810 = vunpack.c.l.b16 %v1404
        %v2811 = vunpack.c.h.b16 %v1404
        %v2812 = vunpack.c.l.b16 %v1405
        %v2813 = vunpack.c.h.b16 %v1405
        %v2814 = vunpack.c.l.b16 %v1406
        %v2815 = vunpack.c.h.b16 %v1406
        %v2816 = vunpack.c.l.b16 %v1407
        %v2817 = vunpack.c.h.b16 %v1407
        %v2818 = vunpack.c.l.b16 %v1408
        %v2819 = vunpack.c.h.b16 %v1408
        %v2820 = vunpack.c.l.b16 %v1409
        %v2821 = vunpack.c.h.b16 %v1409
        %v2822 = vunpack.c.l.b16 %v1410
        %v2823 = vunpack.c.h.b16 %v1410
        %v2824 = vunpack.c.l.b16 %v1411
        %v2825 = vunpack.c.h.b16 %v1411
        %v2826 = vunpack.c.l.b16 %v1412
        %v2827 = vunpack.c.h.b16 %v1412
        %v2828 = vunpack.c.l.b16 %v1413
        %v2829 = vunpack.c.h.b16 %v1413
        %v2830 = vunpack.c.l.b16 %v1414
        %v2831 = vunpack.c.h.b16 %v1414
        %v2832 = vunpack.c.l.b16 %v1415
        %v2833 = vunpack.c.h.b16 %v1415
        %v2834 = vunpack.c.l.b16 %v1416
        %v2835 = vunpack.c.h.b16 %v1416
        %v2836 = vunpack.c.l.b16 %v1417
        %v2837 = vunpack.c.h.b16 %v1417
        %v2838 = vunpack.c.l.b16 %v1418
        %v2839 = vunpack.c.h.b16 %v1418
        %v2840 = vunpack.c.l.b16 %v1419
        %v2841 = vunpack.c.h.b16 %v1419
        %v2842 = vunpack.c.l.b16 %v1420
        %v2843 = vunpack.c.h.b16 %v1420
        %v2844 = vunpack.c.l.b16 %v1421
        %v2845 = vunpack.c.h.b16 %v1421
        %v2846 = vunpack.c.l.b16 %v1422
        %v2847 = vunpack.c.h.b16 %v1422
        %v2848 = vunpack.c.l.b16 %v1423
        %v2849 = vunpack.c.h.b16 %v1423
        %v2850 = vunpack.c.l.b16 %v1424
        %v2851 = vunpack.c.h.b16 %v1424
        %v2852 = vunpack.c.l.b16 %v1425
        %v2853 = vunpack.c.h.b16 %v1425
        %v2854 = vunpack.c.l.b16 %v1426
        %v2855 = vunpack.c.h.b16 %v1426
        %v2856 = vunpack.c.l.b16 %v1427
        %v2857 = vunpack.c.h.b16 %v1427
        %v2858 = vunpack.c.l.b16 %v1428
        %v2859 = vunpack.c.h.b16 %v1428
        %v2860 = vunpack.c.l.b16 %v1429
        %v2861 = vunpack.c.h.b16 %v1429
        %v2862 = vunpack.c.l.b16 %v1430
        %v2863 = vunpack.c.h.b16 %v1430
        %v2864 = vunpack.c.l.b16 %v1431
        %v2865 = vunpack.c.h.b16 %v1431
        %v2866 = vunpack.c.l.b16 %v1432
        %v2867 = vunpack.c.h.b16 %v1432
        %v2868 = vunpack.c.l.b16 %v1433
        %v2869 = vunpack.c.h.b16 %v1433
        %v2870 = vunpack.c.l.b16 %v1434
        %v2871 = vunpack.c.h.b16 %v1434
        %v2872 = vunpack.c.l.b16 %v1435
        %v2873 = vunpack.c.h.b16 %v1435
        %v2874 = vunpack.c.l.b16 %v1436
        %v2875 = vunpack.c.h.b16 %v1436
        %v2876 = vunpack.c.l.b16 %v1437
        %v2877 = vunpack.c.h.b16 %v1437
        %v2878 = vunpack.c.l.b16 %v1438
        %v2879 = vunpack.c.h.b16 %v1438
        %v2880 = vunpack.c.l.b16 %v1439
        %v2881 = vunpack.c.h.b16 %v1439
        %v2882 = vunpack.c.l.b16 %v1440
        %v2883 = vunpack.c.h.b16 %v1440
        %v2884 = vunpack.c.l.b16 %v1441
        %v2885 = vunpack.c.h.b16 %v1441
        %v2886 = vunpack.c.l.b16 %v1442
        %v2887 = vunpack.c.h.b16 %v1442
        %v2888 = vunpack.c.l.b16 %v1443
        %v2889 = vunpack.c.h.b16 %v1443
        %v2890 = vunpack.c.l.b16 %v1444
        %v2891 = vunpack.c.h.b16 %v1444
        %v2892 = vunpack.c.l.b16 %v1445
        %v2893 = vunpack.c.h.b16 %v1445
        %v2894 = vunpack.c.l.b16 %v1446
        %v2895 = vunpack.c.h.b16 %v1446
        %v2896 = vunpack.c.l.b16 %v1447
        %v2897 = vunpack.c.h.b16 %v1447
        %v2898 = vunpack.c.l.b16 %v1448
        %v2899 = vunpack.c.h.b16 %v1448
        %v2900 = vunpack.c.l.b16 %v1449
        %v2901 = vunpack.c.h.b16 %v1449
        %v2902 = vunpack.c.l.b16 %v1450
        %v2903 = vunpack.c.h.b16 %v1450
        %v2904 = vunpack.c.l.b16 %v1451
        %v2905 = vunpack.c.h.b16 %v1451
        %v2906 = vunpack.c.l.b16 %v1452
        %v2907 = vunpack.c.h.b16 %v1452
        %v2908 = vunpack.c.l.b16 %v1453
        %v2909 = vunpack.c.h.b16 %v1453
        %v2910 = vunpack.c.l.b16 %v1454
        %v2911 = vunpack.c.h.b16 %v1454
        %v2912 = vunpack.c.l.b16 %v1455
        %v2913 = vunpack.c.h.b16 %v1455
        %v2914 = vunpack.c.l.b16 %v1456
        %v2915 = vunpack.c.h.b16 %v1456
        %v2916 = vunpack.c.l.b16 %v1457
        %v2917 = vunpack.c.h.b16 %v1457
        %v2918 = vunpack.c.l.b16 %v1458
        %v2919 = vunpack.c.h.b16 %v1458
        %v2920 = vunpack.c.l.b16 %v1459
        %v2921 = vunpack.c.h.b16 %v1459
        %v2922 = vunpack.c.l.b16 %v1460
        %v2923 = vunpack.c.h.b16 %v1460
        %v2924 = vunpack.c.l.b16 %v1461
        %v2925 = vunpack.c.h.b16 %v1461
        %v2926 = vunpack.c.l.b16 %v1462
        %v2927 = vunpack.c.h.b16 %v1462
        %v2928 = vunpack.c.l.b16 %v1463
        %v2929 = vunpack.c.h.b16 %v1463
        %v2930 = vunpack.c.l.b16 %v1464
        %v2931 = vunpack.c.h.b16 %v1464
        %v2932 = vunpack.c.l.b16 %v1465
        %v2933 = vunpack.c.h.b16 %v1465
        %v2934 = vunpack.c.l.b16 %v1466
        %v2935 = vunpack.c.h.b16 %v1466
        %v2936 = vunpack.c.l.b16 %v1467
        %v2937 = vunpack.c.h.b16 %v1467
        %v2938 = vunpack.c.l.b16 %v1468
        %v2939 = vunpack.c.h.b16 %v1468
        %v2940 = vunpack.c.l.b16 %v1469
        %v2941 = vunpack.c.h.b16 %v1469
        %v2942 = vunpack.c.l.b16 %v1470
        %v2943 = vunpack.c.h.b16 %v1470
        %v2944 = vunpack.c.l.b16 %v1471
        %v2945 = vunpack.c.h.b16 %v1471
        %v2946 = vunpack.c.l.b16 %v1472
        %v2947 = vunpack.c.h.b16 %v1472
        %v2948 = vunpack.c.l.b16 %v1473
        %v2949 = vunpack.c.h.b16 %v1473
        %v2950 = vunpack.c.l.b16 %v1474
        %v2951 = vunpack.c.h.b16 %v1474
        %v2952 = vunpack.c.l.b16 %v1475
        %v2953 = vunpack.c.h.b16 %v1475
        %v2954 = vunpack.c.l.b16 %v1476
        %v2955 = vunpack.c.h.b16 %v1476
        %v2956 = vunpack.c.l.b16 %v1477
        %v2957 = vunpack.c.h.b16 %v1477
        %v2958 = vunpack.c.l.b16 %v1478
        %v2959 = vunpack.c.h.b16 %v1478
        %v2960 = vunpack.c.l.b16 %v1479
        %v2961 = vunpack.c.h.b16 %v1479
        %v2962 = vunpack.c.l.b16 %v1480
        %v2963 = vunpack.c.h.b16 %v1480
        %v2964 = vunpack.c.l.b16 %v1481
        %v2965 = vunpack.c.h.b16 %v1481
        %v2966 = vunpack.c.l.b16 %v1482
        %v2967 = vunpack.c.h.b16 %v1482
        %v2968 = vunpack.c.l.b16 %v1483
        %v2969 = vunpack.c.h.b16 %v1483
        %v2970 = vunpack.c.l.b16 %v1484
        %v2971 = vunpack.c.h.b16 %v1484
        %v2972 = vunpack.c.l.b16 %v1485
        %v2973 = vunpack.c.h.b16 %v1485
        %v2974 = vunpack.c.l.b16 %v1486
        %v2975 = vunpack.c.h.b16 %v1486
        %v2976 = vunpack.c.l.b16 %v1487
        %v2977 = vunpack.c.h.b16 %v1487
        %v2978 = vunpack.c.l.b16 %v1488
        %v2979 = vunpack.c.h.b16 %v1488
        %v2980 = vunpack.c.l.b16 %v1489
        %v2981 = vunpack.c.h.b16 %v1489
        %v2982 = vunpack.c.l.b16 %v1490
        %v2983 = vunpack.c.h.b16 %v1490
        %v2984 = vunpack.c.l.b16 %v1491
        %v2985 = vunpack.c.h.b16 %v1491
        %v2986 = vunpack.c.l.b16 %v1492
        %v2987 = vunpack.c.h.b16 %v1492
        %v2988 = vunpack.c.l.b16 %v1493
        %v2989 = vunpack.c.h.b16 %v1493
        %v2990 = vunpack.c.l.b16 %v1494
        %v2991 = vunpack.c.h.b16 %v1494
        %v2992 = vunpack.c.l.b16 %v1495
        %v2993 = vunpack.c.h.b16 %v1495
        %v2994 = vunpack.c.l.b16 %v1496
        %v2995 = vunpack.c.h.b16 %v1496
        %v2996 = vunpack.c.l.b16 %v1497
        %v2997 = vunpack.c.h.b16 %v1497
        %v2998 = vunpack.c.l.b16 %v1498
        %v2999 = vunpack.c.h.b16 %v1498
        %v3000 = vunpack.c.l.b16 %v1499
        %v3001 = vunpack.c.h.b16 %v1499
        %v3002 = vunpack.c.l.b16 %v1500
        %v3003 = vunpack.c.h.b16 %v1500
        %v3004 = vunpack.c.l.b16 %v1501
        %v3005 = vunpack.c.h.b16 %v1501
        %v3006 = vunpack.c.l.b16 %v1502
        %v3007 = vunpack.c.h.b16 %v1502
        %v3008 = vunpack.c.l.b16 %v1503
        %v3009 = vunpack.c.h.b16 %v1503
        %v3010 = vunpack.c.l.b16 %v1504
        %v3011 = vunpack.c.h.b16 %v1504
        %v3012 = vunpack.c.l.b16 %v1505
        %v3013 = vunpack.c.h.b16 %v1505
        %v3014 = vunpack.c.l.b16 %v1506
        %v3015 = vunpack.c.h.b16 %v1506
        %v3016 = vunpack.c.l.b16 %v1507
        %v3017 = vunpack.c.h.b16 %v1507
        %v3018 = vunpack.c.l.b16 %v1508
        %v3019 = vunpack.c.h.b16 %v1508
        %v3020 = vunpack.c.l.b16 %v1509
        %v3021 = vunpack.c.h.b16 %v1509
        %v3022 = vunpack.c.l.b16 %v1510
        %v3023 = vunpack.c.h.b16 %v1510
        %v3024 = vunpack.c.l.b16 %v1511
        %v3025 = vunpack.c.h.b16 %v1511
        %v3026 = vunpack.c.l.b16 %v1512
        %v3027 = vunpack.c.h.b16 %v1512
        %v3028 = vunpack.c.l.b16 %v1513
        %v3029 = vunpack.c.h.b16 %v1513
        %v3030 = vunpack.c.l.b16 %v1514
        %v3031 = vunpack.c.h.b16 %v1514
        %v3032 = vunpack.c.l.b16 %v1515
        %v3033 = vunpack.c.h.b16 %v1515
        %v3034 = vunpack.c.l.b16 %v1516
        %v3035 = vunpack.c.h.b16 %v1516
        %v3036 = vunpack.c.l.b16 %v1517
        %v3037 = vunpack.c.h.b16 %v1517
        %v3038 = vunpack.c.l.b16 %v1518
        %v3039 = vunpack.c.h.b16 %v1518
        %v3040 = vunpack.c.l.b16 %v1519
        %v3041 = vunpack.c.h.b16 %v1519
        %v3042 = vunpack.c.l.b16 %v1520
        %v3043 = vunpack.c.h.b16 %v1520
        %v3044 = vunpack.c.l.b16 %v1521
        %v3045 = vunpack.c.h.b16 %v1521
        %v3046 = vunpack.c.l.b16 %v1522
        %v3047 = vunpack.c.h.b16 %v1522
        %v3048 = vunpack.c.l.b16 %v1523
        %v3049 = vunpack.c.h.b16 %v1523
        %v3050 = vunpack.c.l.b16 %v1524
        %v3051 = vunpack.c.h.b16 %v1524
        %v3052 = vunpack.c.l.b16 %v1525
        %v3053 = vunpack.c.h.b16 %v1525
        %v3054 = vunpack.c.l.b16 %v1526
        %v3055 = vunpack.c.h.b16 %v1526
        %v3056 = vunpack.c.l.b16 %v1527
        %v3057 = vunpack.c.h.b16 %v1527
        %v3058 = vunpack.c.l.b16 %v1528
        %v3059 = vunpack.c.h.b16 %v1528
        %v3060 = vunpack.c.l.b16 %v1529
        %v3061 = vunpack.c.h.b16 %v1529
        %v3062 = vunpack.c.l.b16 %v1530
        %v3063 = vunpack.c.h.b16 %v1530
        %v3064 = vunpack.c.l.b16 %v1531
        %v3065 = vunpack.c.h.b16 %v1531
        %v3066 = vunpack.c.l.b16 %v1532
        %v3067 = vunpack.c.h.b16 %v1532
        %v3068 = vunpack.c.l.b16 %v1533
        %v3069 = vunpack.c.h.b16 %v1533
        %v3070 = vunpack.c.l.b16 %v1534
        %v3071 = vunpack.c.h.b16 %v1534
        %v3072 = vunpack.c.l.b16 %v1535
        %v3073 = vunpack.c.h.b16 %v1535
        %v3074 = vunpack.c.l.b16 %v1536
        %v3075 = vunpack.c.h.b16 %v1536
        %v3076 = vunpack.c.l.b16 %v1537
        %v3077 = vunpack.c.h.b16 %v1537
        %v3078 = vunpack.c.l.b16 %v1538
        %v3079 = vunpack.c.h.b16 %v1538
        %v3080 = vunpack.c.l.b16 %v1539
        %v3081 = vunpack.c.h.b16 %v1539
        %v3082 = vunpack.c.l.b16 %v1540
        %v3083 = vunpack.c.h.b16 %v1540
        %v3084 = vunpack.c.l.b16 %v1541
        %v3085 = vunpack.c.h.b16 %v1541
        %v3086 = vunpack.c.l.b16 %v1542
        %v3087 = vunpack.c.h.b16 %v1542
        %v3088 = vunpack.c.l.b16 %v1543
        %v3089 = vunpack.c.h.b16 %v1543
        %v3090 = vunpack.c.l.b16 %v1544
        %v3091 = vunpack.c.h.b16 %v1544
        %v3092 = vunpack.c.l.b16 %v1545
        %v3093 = vunpack.c.h.b16 %v1545
        %v3094 = vunpack.c.l.b16 %v1546
        %v3095 = vunpack.c.h.b16 %v1546
        %v3096 = vunpack.c.l.b16 %v1547
        %v3097 = vunpack.c.h.b16 %v1547
        %v3098 = vunpack.c.l.b16 %v1548
        %v3099 = vunpack.c.h.b16 %v1548
        %v3100 = vunpack.c.l.b16 %v1549
        %v3101 = vunpack.c.h.b16 %v1549
        %v3102 = vunpack.c.l.b16 %v1550
        %v3103 = vunpack.c.h.b16 %v1550
        %v3104 = vunpack.c.l.b16 %v1551
        %v3105 = vunpack.c.h.b16 %v1551
        %v3106 = vunpack.c.l.b16 %v1552
        %v3107 = vunpack.c.h.b16 %v1552
        %v3108 = vunpack.c.l.b16 %v1553
        %v3109 = vunpack.c.h.b16 %v1553
        %v3110 = vunpack.c.l.b16 %v1554
        %v3111 = vunpack.c.h.b16 %v1554
        %v3112 = vunpack.c.l.b16 %v1555
        %v3113 = vunpack.c.h.b16 %v1555
        %v3114 = vunpack.c.l.b16 %v1556
        %v3115 = vunpack.c.h.b16 %v1556
        %v3116 = vunpack.c.l.b16 %v1557
        %v3117 = vunpack.c.h.b16 %v1557
        %v3118 = vunpack.c.l.b16 %v1558
        %v3119 = vunpack.c.h.b16 %v1558
        %v3120 = vunpack.c.l.b16 %v1559
        %v3121 = vunpack.c.h.b16 %v1559
        %v3122 = vunpack.c.l.b16 %v1560
        %v3123 = vunpack.c.h.b16 %v1560
        %v3124 = vunpack.c.l.b16 %v1561
        %v3125 = vunpack.c.h.b16 %v1561
        %v3126 = vunpack.c.l.b16 %v1562
        %v3127 = vunpack.c.h.b16 %v1562
        %v3128 = vunpack.c.l.b16 %v1563
        %v3129 = vunpack.c.h.b16 %v1563
        %v3130 = vunpack.c.l.b16 %v1564
        %v3131 = vunpack.c.h.b16 %v1564
        %v3132 = vunpack.c.l.b16 %v1565
        %v3133 = vunpack.c.h.b16 %v1565
        %v3134 = vunpack.c.l.b16 %v1566
        %v3135 = vunpack.c.h.b16 %v1566
        %v3136 = vunpack.c.l.b16 %v1567
        %v3137 = vunpack.c.h.b16 %v1567
        %v3138 = vunpack.c.l.b16 %v1568
        %v3139 = vunpack.c.h.b16 %v1568
        %v3140 = vunpack.c.l.b16 %v1569
        %v3141 = vunpack.c.h.b16 %v1569
        %v3142 = vunpack.c.l.b16 %v1570
        %v3143 = vunpack.c.h.b16 %v1570
        %v3144 = vunpack.c.l.b16 %v1571
        %v3145 = vunpack.c.h.b16 %v1571
        %v3146 = vunpack.c.l.b16 %v1572
        %v3147 = vunpack.c.h.b16 %v1572
        %v3148 = vunpack.c.l.b16 %v1573
        %v3149 = vunpack.c.h.b16 %v1573
        %v3150 = vunpack.c.l.b16 %v1574
        %v3151 = vunpack.c.h.b16 %v1574
        %v3152 = vunpack.c.l.b16 %v1575
        %v3153 = vunpack.c.h.b16 %v1575
        %v3154 = vunpack.c.l.b16 %v1576
        %v3155 = vunpack.c.h.b16 %v1576
        %v3156 = vpack.c.b16 %v2140, %v2132
        %v3157 = vpack.c.b16 %v2141, %v2133
        %v3158 = vpack.c.b16 %v2142, %v2134
        %v3159 = vpack.c.b16 %v2143, %v2135
        %v3160 = vpack.c.b16 %v2144, %v2136
        %v3161 = vpack.c.b16 %v2145, %v2137
        %v3162 = vpack.c.b16 %v2146, %v2138
        %v3163 = vpack.c.b16 %v2147, %v2139
        %v3164 = vpack.c.b16 %v2156, %v2148
        %v3165 = vpack.c.b16 %v2157, %v2149
        %v3166 = vpack.c.b16 %v2158, %v2150
        %v3167 = vpack.c.b16 %v2159, %v2151
        %v3168 = vpack.c.b16 %v2160, %v2152
        %v3169 = vpack.c.b16 %v2161, %v2153
        %v3170 = vpack.c.b16 %v2162, %v2154
        %v3171 = vpack.c.b16 %v2163, %v2155
        %v3172 = vpack.c.b16 %v2172, %v2164
        %v3173 = vpack.c.b16 %v2173, %v2165
        %v3174 = vpack.c.b16 %v2174, %v2166
        %v3175 = vpack.c.b16 %v2175, %v2167
        %v3176 = vpack.c.b16 %v2176, %v2168
        %v3177 = vpack.c.b16 %v2177, %v2169
        %v3178 = vpack.c.b16 %v2178, %v2170
        %v3179 = vpack.c.b16 %v2179, %v2171
        %v3180 = vpack.c.b16 %v2188, %v2180
        %v3181 = vpack.c.b16 %v2189, %v2181
        %v3182 = vpack.c.b16 %v2190, %v2182
        %v3183 = vpack.c.b16 %v2191, %v2183
        %v3184 = vpack.c.b16 %v2192, %v2184
        %v3185 = vpack.c.b16 %v2193, %v2185
        %v3186 = vpack.c.b16 %v2194, %v2186
        %v3187 = vpack.c.b16 %v2195, %v2187
        %v3188 = vpack.c.b16 %v2204, %v2196
        %v3189 = vpack.c.b16 %v2205, %v2197
        %v3190 = vpack.c.b16 %v2206, %v2198
        %v3191 = vpack.c.b16 %v2207, %v2199
        %v3192 = vpack.c.b16 %v2208, %v2200
        %v3193 = vpack.c.b16 %v2209, %v2201
        %v3194 = vpack.c.b16 %v2210, %v2202
        %v3195 = vpack.c.b16 %v2211, %v2203
        %v3196 = vpack.c.b16 %v2220, %v2212
        %v3197 = vpack.c.b16 %v2221, %v2213
        %v3198 = vpack.c.b16 %v2222, %v2214
        %v3199 = vpack.c.b16 %v2223, %v2215
        %v3200 = vpack.c.b16 %v2224, %v2216
        %v3201 = vpack.c.b16 %v2225, %v2217
        %v3202 = vpack.c.b16 %v2226, %v2218
        %v3203 = vpack.c.b16 %v2227, %v2219
        %v3204 = vpack.c.b16 %v2236, %v2228
        %v3205 = vpack.c.b16 %v2237, %v2229
        %v3206 = vpack.c.b16 %v2238, %v2230
        %v3207 = vpack.c.b16 %v2239, %v2231
        %v3208 = vpack.c.b16 %v2240, %v2232
        %v3209 = vpack.c.b16 %v2241, %v2233
        %v3210 = vpack.c.b16 %v2242, %v2234
        %v3211 = vpack.c.b16 %v2243, %v2235
        %v3212 = vpack.c.b16 %v2252, %v2244
        %v3213 = vpack.c.b16 %v2253, %v2245
        %v3214 = vpack.c.b16 %v2254, %v2246
        %v3215 = vpack.c.b16 %v2255, %v2247
        %v3216 = vpack.c.b16 %v2256, %v2248
        %v3217 = vpack.c.b16 %v2257, %v2249
        %v3218 = vpack.c.b16 %v2258, %v2250
        %v3219 = vpack.c.b16 %v2259, %v2251
        %v3220 = vpack.c.b16 %v2268, %v2260
        %v3221 = vpack.c.b16 %v2269, %v2261
        %v3222 = vpack.c.b16 %v2270, %v2262
        %v3223 = vpack.c.b16 %v2271, %v2263
        %v3224 = vpack.c.b16 %v2272, %v2264
        %v3225 = vpack.c.b16 %v2273, %v2265
        %v3226 = vpack.c.b16 %v2274, %v2266
        %v3227 = vpack.c.b16 %v2275, %v2267
        %v3228 = vpack.c.b16 %v2284, %v2276
        %v3229 = vpack.c.b16 %v2285, %v2277
        %v3230 = vpack.c.b16 %v2286, %v2278
        %v3231 = vpack.c.b16 %v2287, %v2279
        %v3232 = vpack.c.b16 %v2288, %v2280
        %v3233 = vpack.c.b16 %v2289, %v2281
        %v3234 = vpack.c.b16 %v2290, %v2282
        %v3235 = vpack.c.b16 %v2291, %v2283
        %v3236 = vpack.c.b16 %v2300, %v2292
        %v3237 = vpack.c.b16 %v2301, %v2293
        %v3238 = vpack.c.b16 %v2302, %v2294
        %v3239 = vpack.c.b16 %v2303, %v2295
        %v3240 = vpack.c.b16 %v2304, %v2296
        %v3241 = vpack.c.b16 %v2305, %v2297
        %v3242 = vpack.c.b16 %v2306, %v2298
        %v3243 = vpack.c.b16 %v2307, %v2299
        %v3244 = vpack.c.b16 %v2316, %v2308
        %v3245 = vpack.c.b16 %v2317, %v2309
        %v3246 = vpack.c.b16 %v2318, %v2310
        %v3247 = vpack.c.b16 %v2319, %v2311
        %v3248 = vpack.c.b16 %v2320, %v2312
        %v3249 = vpack.c.b16 %v2321, %v2313
        %v3250 = vpack.c.b16 %v2322, %v2314
        %v3251 = vpack.c.b16 %v2323, %v2315
        %v3252 = vpack.c.b16 %v2332, %v2324
        %v3253 = vpack.c.b16 %v2333, %v2325
        %v3254 = vpack.c.b16 %v2334, %v2326
        %v3255 = vpack.c.b16 %v2335, %v2327
        %v3256 = vpack.c.b16 %v2336, %v2328
        %v3257 = vpack.c.b16 %v2337, %v2329
        %v3258 = vpack.c.b16 %v2338, %v2330
        %v3259 = vpack.c.b16 %v2339, %v2331
        %v3260 = vpack.c.b16 %v2348, %v2340
        %v3261 = vpack.c.b16 %v2349, %v2341
        %v3262 = vpack.c.b16 %v2350, %v2342
        %v3263 = vpack.c.b16 %v2351, %v2343
        %v3264 = vpack.c.b16 %v2352, %v2344
        %v3265 = vpack.c.b16 %v2353, %v2345
        %v3266 = vpack.c.b16 %v2354, %v2346
        %v3267 = vpack.c.b16 %v2355, %v2347
        %v3268 = vpack.c.b16 %v2364, %v2356
        %v3269 = vpack.c.b16 %v2365, %v2357
        %v3270 = vpack.c.b16 %v2366, %v2358
        %v3271 = vpack.c.b16 %v2367, %v2359
        %v3272 = vpack.c.b16 %v2368, %v2360
        %v3273 = vpack.c.b16 %v2369, %v2361
        %v3274 = vpack.c.b16 %v2370, %v2362
        %v3275 = vpack.c.b16 %v2371, %v2363
        %v3276 = vpack.c.b16 %v2380, %v2372
        %v3277 = vpack.c.b16 %v2381, %v2373
        %v3278 = vpack.c.b16 %v2382, %v2374
        %v3279 = vpack.c.b16 %v2383, %v2375
        %v3280 = vpack.c.b16 %v2384, %v2376
        %v3281 = vpack.c.b16 %v2385, %v2377
        %v3282 = vpack.c.b16 %v2386, %v2378
        %v3283 = vpack.c.b16 %v2387, %v2379
        %v3284 = vpack.c.b16 %v2396, %v2388
        %v3285 = vpack.c.b16 %v2397, %v2389
        %v3286 = vpack.c.b16 %v2398, %v2390
        %v3287 = vpack.c.b16 %v2399, %v2391
        %v3288 = vpack.c.b16 %v2400, %v2392
        %v3289 = vpack.c.b16 %v2401, %v2393
        %v3290 = vpack.c.b16 %v2402, %v2394
        %v3291 = vpack.c.b16 %v2403, %v2395
        %v3292 = vpack.c.b16 %v2412, %v2404
        %v3293 = vpack.c.b16 %v2413, %v2405
        %v3294 = vpack.c.b16 %v2414, %v2406
        %v3295 = vpack.c.b16 %v2415, %v2407
        %v3296 = vpack.c.b16 %v2416, %v2408
        %v3297 = vpack.c.b16 %v2417, %v2409
        %v3298 = vpack.c.b16 %v2418, %v2410
        %v3299 = vpack.c.b16 %v2419, %v2411
        %v3300 = vpack.c.b16 %v2428, %v2420
        %v3301 = vpack.c.b16 %v2429, %v2421
        %v3302 = vpack.c.b16 %v2430, %v2422
        %v3303 = vpack.c.b16 %v2431, %v2423
        %v3304 = vpack.c.b16 %v2432, %v2424
        %v3305 = vpack.c.b16 %v2433, %v2425
        %v3306 = vpack.c.b16 %v2434, %v2426
        %v3307 = vpack.c.b16 %v2435, %v2427
        %v3308 = vpack.c.b16 %v2444, %v2436
        %v3309 = vpack.c.b16 %v2445, %v2437
        %v3310 = vpack.c.b16 %v2446, %v2438
        %v3311 = vpack.c.b16 %v2447, %v2439
        %v3312 = vpack.c.b16 %v2448, %v2440
        %v3313 = vpack.c.b16 %v2449, %v2441
        %v3314 = vpack.c.b16 %v2450, %v2442
        %v3315 = vpack.c.b16 %v2451, %v2443
        %v3316 = vpack.c.b16 %v2460, %v2452
        %v3317 = vpack.c.b16 %v2461, %v2453
        %v3318 = vpack.c.b16 %v2462, %v2454
        %v3319 = vpack.c.b16 %v2463, %v2455
        %v3320 = vpack.c.b16 %v2464, %v2456
        %v3321 = vpack.c.b16 %v2465, %v2457
        %v3322 = vpack.c.b16 %v2466, %v2458
        %v3323 = vpack.c.b16 %v2467, %v2459
        %v3324 = vpack.c.b16 %v2476, %v2468
        %v3325 = vpack.c.b16 %v2477, %v2469
        %v3326 = vpack.c.b16 %v2478, %v2470
        %v3327 = vpack.c.b16 %v2479, %v2471
        %v3328 = vpack.c.b16 %v2480, %v2472
        %v3329 = vpack.c.b16 %v2481, %v2473
        %v3330 = vpack.c.b16 %v2482, %v2474
        %v3331 = vpack.c.b16 %v2483, %v2475
        %v3332 = vpack.c.b16 %v2492, %v2484
        %v3333 = vpack.c.b16 %v2493, %v2485
        %v3334 = vpack.c.b16 %v2494, %v2486
        %v3335 = vpack.c.b16 %v2495, %v2487
        %v3336 = vpack.c.b16 %v2496, %v2488
        %v3337 = vpack.c.b16 %v2497, %v2489
        %v3338 = vpack.c.b16 %v2498, %v2490
        %v3339 = vpack.c.b16 %v2499, %v2491
        %v3340 = vpack.c.b16 %v2508, %v2500
        %v3341 = vpack.c.b16 %v2509, %v2501
        %v3342 = vpack.c.b16 %v2510, %v2502
        %v3343 = vpack.c.b16 %v2511, %v2503
        %v3344 = vpack.c.b16 %v2512, %v2504
        %v3345 = vpack.c.b16 %v2513, %v2505
        %v3346 = vpack.c.b16 %v2514, %v2506
        %v3347 = vpack.c.b16 %v2515, %v2507
        %v3348 = vpack.c.b16 %v2524, %v2516
        %v3349 = vpack.c.b16 %v2525, %v2517
        %v3350 = vpack.c.b16 %v2526, %v2518
        %v3351 = vpack.c.b16 %v2527, %v2519
        %v3352 = vpack.c.b16 %v2528, %v2520
        %v3353 = vpack.c.b16 %v2529, %v2521
        %v3354 = vpack.c.b16 %v2530, %v2522
        %v3355 = vpack.c.b16 %v2531, %v2523
        %v3356 = vpack.c.b16 %v2540, %v2532
        %v3357 = vpack.c.b16 %v2541, %v2533
        %v3358 = vpack.c.b16 %v2542, %v2534
        %v3359 = vpack.c.b16 %v2543, %v2535
        %v3360 = vpack.c.b16 %v2544, %v2536
        %v3361 = vpack.c.b16 %v2545, %v2537
        %v3362 = vpack.c.b16 %v2546, %v2538
        %v3363 = vpack.c.b16 %v2547, %v2539
        %v3364 = vpack.c.b16 %v2556, %v2548
        %v3365 = vpack.c.b16 %v2557, %v2549
        %v3366 = vpack.c.b16 %v2558, %v2550
        %v3367 = vpack.c.b16 %v2559, %v2551
        %v3368 = vpack.c.b16 %v2560, %v2552
        %v3369 = vpack.c.b16 %v2561, %v2553
        %v3370 = vpack.c.b16 %v2562, %v2554
        %v3371 = vpack.c.b16 %v2563, %v2555
        %v3372 = vpack.c.b16 %v2572, %v2564
        %v3373 = vpack.c.b16 %v2573, %v2565
        %v3374 = vpack.c.b16 %v2574, %v2566
        %v3375 = vpack.c.b16 %v2575, %v2567
        %v3376 = vpack.c.b16 %v2576, %v2568
        %v3377 = vpack.c.b16 %v2577, %v2569
        %v3378 = vpack.c.b16 %v2578, %v2570
        %v3379 = vpack.c.b16 %v2579, %v2571
        %v3380 = vpack.c.b16 %v2588, %v2580
        %v3381 = vpack.c.b16 %v2589, %v2581
        %v3382 = vpack.c.b16 %v2590, %v2582
        %v3383 = vpack.c.b16 %v2591, %v2583
        %v3384 = vpack.c.b16 %v2592, %v2584
        %v3385 = vpack.c.b16 %v2593, %v2585
        %v3386 = vpack.c.b16 %v2594, %v2586
        %v3387 = vpack.c.b16 %v2595, %v2587
        %v3388 = vpack.c.b16 %v2604, %v2596
        %v3389 = vpack.c.b16 %v2605, %v2597
        %v3390 = vpack.c.b16 %v2606, %v2598
        %v3391 = vpack.c.b16 %v2607, %v2599
        %v3392 = vpack.c.b16 %v2608, %v2600
        %v3393 = vpack.c.b16 %v2609, %v2601
        %v3394 = vpack.c.b16 %v2610, %v2602
        %v3395 = vpack.c.b16 %v2611, %v2603
        %v3396 = vpack.c.b16 %v2620, %v2612
        %v3397 = vpack.c.b16 %v2621, %v2613
        %v3398 = vpack.c.b16 %v2622, %v2614
        %v3399 = vpack.c.b16 %v2623, %v2615
        %v3400 = vpack.c.b16 %v2624, %v2616
        %v3401 = vpack.c.b16 %v2625, %v2617
        %v3402 = vpack.c.b16 %v2626, %v2618
        %v3403 = vpack.c.b16 %v2627, %v2619
        %v3404 = vpack.c.b16 %v2636, %v2628
        %v3405 = vpack.c.b16 %v2637, %v2629
        %v3406 = vpack.c.b16 %v2638, %v2630
        %v3407 = vpack.c.b16 %v2639, %v2631
        %v3408 = vpack.c.b16 %v2640, %v2632
        %v3409 = vpack.c.b16 %v2641, %v2633
        %v3410 = vpack.c.b16 %v2642, %v2634
        %v3411 = vpack.c.b16 %v2643, %v2635
        %v3412 = vpack.c.b16 %v2652, %v2644
        %v3413 = vpack.c.b16 %v2653, %v2645
        %v3414 = vpack.c.b16 %v2654, %v2646
        %v3415 = vpack.c.b16 %v2655, %v2647
        %v3416 = vpack.c.b16 %v2656, %v2648
        %v3417 = vpack.c.b16 %v2657, %v2649
        %v3418 = vpack.c.b16 %v2658, %v2650
        %v3419 = vpack.c.b16 %v2659, %v2651
        %v3420 = vpack.c.b16 %v2668, %v2660
        %v3421 = vpack.c.b16 %v2669, %v2661
        %v3422 = vpack.c.b16 %v2670, %v2662
        %v3423 = vpack.c.b16 %v2671, %v2663
        %v3424 = vpack.c.b16 %v2672, %v2664
        %v3425 = vpack.c.b16 %v2673, %v2665
        %v3426 = vpack.c.b16 %v2674, %v2666
        %v3427 = vpack.c.b16 %v2675, %v2667
        %v3428 = vpack.c.b16 %v2684, %v2676
        %v3429 = vpack.c.b16 %v2685, %v2677
        %v3430 = vpack.c.b16 %v2686, %v2678
        %v3431 = vpack.c.b16 %v2687, %v2679
        %v3432 = vpack.c.b16 %v2688, %v2680
        %v3433 = vpack.c.b16 %v2689, %v2681
        %v3434 = vpack.c.b16 %v2690, %v2682
        %v3435 = vpack.c.b16 %v2691, %v2683
        %v3436 = vpack.c.b16 %v2700, %v2692
        %v3437 = vpack.c.b16 %v2701, %v2693
        %v3438 = vpack.c.b16 %v2702, %v2694
        %v3439 = vpack.c.b16 %v2703, %v2695
        %v3440 = vpack.c.b16 %v2704, %v2696
        %v3441 = vpack.c.b16 %v2705, %v2697
        %v3442 = vpack.c.b16 %v2706, %v2698
        %v3443 = vpack.c.b16 %v2707, %v2699
        %v3444 = vpack.c.b16 %v2716, %v2708
        %v3445 = vpack.c.b16 %v2717, %v2709
        %v3446 = vpack.c.b16 %v2718, %v2710
        %v3447 = vpack.c.b16 %v2719, %v2711
        %v3448 = vpack.c.b16 %v2720, %v2712
        %v3449 = vpack.c.b16 %v2721, %v2713
        %v3450 = vpack.c.b16 %v2722, %v2714
        %v3451 = vpack.c.b16 %v2723, %v2715
        %v3452 = vpack.c.b16 %v2732, %v2724
        %v3453 = vpack.c.b16 %v2733, %v2725
        %v3454 = vpack.c.b16 %v2734, %v2726
        %v3455 = vpack.c.b16 %v2735, %v2727
        %v3456 = vpack.c.b16 %v2736, %v2728
        %v3457 = vpack.c.b16 %v2737, %v2729
        %v3458 = vpack.c.b16 %v2738, %v2730
        %v3459 = vpack.c.b16 %v2739, %v2731
        %v3460 = vpack.c.b16 %v2748, %v2740
        %v3461 = vpack.c.b16 %v2749, %v2741
        %v3462 = vpack.c.b16 %v2750, %v2742
        %v3463 = vpack.c.b16 %v2751, %v2743
        %v3464 = vpack.c.b16 %v2752, %v2744
        %v3465 = vpack.c.b16 %v2753, %v2745
        %v3466 = vpack.c.b16 %v2754, %v2746
        %v3467 = vpack.c.b16 %v2755, %v2747
        %v3468 = vpack.c.b16 %v2764, %v2756
        %v3469 = vpack.c.b16 %v2765, %v2757
        %v3470 = vpack.c.b16 %v2766, %v2758
        %v3471 = vpack.c.b16 %v2767, %v2759
        %v3472 = vpack.c.b16 %v2768, %v2760
        %v3473 = vpack.c.b16 %v2769, %v2761
        %v3474 = vpack.c.b16 %v2770, %v2762
        %v3475 = vpack.c.b16 %v2771, %v2763
        %v3476 = vpack.c.b16 %v2780, %v2772
        %v3477 = vpack.c.b16 %v2781, %v2773
        %v3478 = vpack.c.b16 %v2782, %v2774
        %v3479 = vpack.c.b16 %v2783, %v2775
        %v3480 = vpack.c.b16 %v2784, %v2776
        %v3481 = vpack.c.b16 %v2785, %v2777
        %v3482 = vpack.c.b16 %v2786, %v2778
        %v3483 = vpack.c.b16 %v2787, %v2779
        %v3484 = vpack.c.b16 %v2796, %v2788
        %v3485 = vpack.c.b16 %v2797, %v2789
        %v3486 = vpack.c.b16 %v2798, %v2790
        %v3487 = vpack.c.b16 %v2799, %v2791
        %v3488 = vpack.c.b16 %v2800, %v2792
        %v3489 = vpack.c.b16 %v2801, %v2793
        %v3490 = vpack.c.b16 %v2802, %v2794
        %v3491 = vpack.c.b16 %v2803, %v2795
        %v3492 = vpack.c.b16 %v2812, %v2804
        %v3493 = vpack.c.b16 %v2813, %v2805
        %v3494 = vpack.c.b16 %v2814, %v2806
        %v3495 = vpack.c.b16 %v2815, %v2807
        %v3496 = vpack.c.b16 %v2816, %v2808
        %v3497 = vpack.c.b16 %v2817, %v2809
        %v3498 = vpack.c.b16 %v2818, %v2810
        %v3499 = vpack.c.b16 %v2819, %v2811
        %v3500 = vpack.c.b16 %v2828, %v2820
        %v3501 = vpack.c.b16 %v2829, %v2821
        %v3502 = vpack.c.b16 %v2830, %v2822
        %v3503 = vpack.c.b16 %v2831, %v2823
        %v3504 = vpack.c.b16 %v2832, %v2824
        %v3505 = vpack.c.b16 %v2833, %v2825
        %v3506 = vpack.c.b16 %v2834, %v2826
        %v3507 = vpack.c.b16 %v2835, %v2827
        %v3508 = vpack.c.b16 %v2844, %v2836
        %v3509 = vpack.c.b16 %v2845, %v2837
        %v3510 = vpack.c.b16 %v2846, %v2838
        %v3511 = vpack.c.b16 %v2847, %v2839
        %v3512 = vpack.c.b16 %v2848, %v2840
        %v3513 = vpack.c.b16 %v2849, %v2841
        %v3514 = vpack.c.b16 %v2850, %v2842
        %v3515 = vpack.c.b16 %v2851, %v2843
        %v3516 = vpack.c.b16 %v2860, %v2852
        %v3517 = vpack.c.b16 %v2861, %v2853
        %v3518 = vpack.c.b16 %v2862, %v2854
        %v3519 = vpack.c.b16 %v2863, %v2855
        %v3520 = vpack.c.b16 %v2864, %v2856
        %v3521 = vpack.c.b16 %v2865, %v2857
        %v3522 = vpack.c.b16 %v2866, %v2858
        %v3523 = vpack.c.b16 %v2867, %v2859
        %v3524 = vpack.c.b16 %v2876, %v2868
        %v3525 = vpack.c.b16 %v2877, %v2869
        %v3526 = vpack.c.b16 %v2878, %v2870
        %v3527 = vpack.c.b16 %v2879, %v2871
        %v3528 = vpack.c.b16 %v2880, %v2872
        %v3529 = vpack.c.b16 %v2881, %v2873
        %v3530 = vpack.c.b16 %v2882, %v2874
        %v3531 = vpack.c.b16 %v2883, %v2875
        %v3532 = vpack.c.b16 %v2892, %v2884
        %v3533 = vpack.c.b16 %v2893, %v2885
        %v3534 = vpack.c.b16 %v2894, %v2886
        %v3535 = vpack.c.b16 %v2895, %v2887
        %v3536 = vpack.c.b16 %v2896, %v2888
        %v3537 = vpack.c.b16 %v2897, %v2889
        %v3538 = vpack.c.b16 %v2898, %v2890
        %v3539 = vpack.c.b16 %v2899, %v2891
        %v3540 = vpack.c.b16 %v2908, %v2900
        %v3541 = vpack.c.b16 %v2909, %v2901
        %v3542 = vpack.c.b16 %v2910, %v2902
        %v3543 = vpack.c.b16 %v2911, %v2903
        %v3544 = vpack.c.b16 %v2912, %v2904
        %v3545 = vpack.c.b16 %v2913, %v2905
        %v3546 = vpack.c.b16 %v2914, %v2906
        %v3547 = vpack.c.b16 %v2915, %v2907
        %v3548 = vpack.c.b16 %v2924, %v2916
        %v3549 = vpack.c.b16 %v2925, %v2917
        %v3550 = vpack.c.b16 %v2926, %v2918
        %v3551 = vpack.c.b16 %v2927, %v2919
        %v3552 = vpack.c.b16 %v2928, %v2920
        %v3553 = vpack.c.b16 %v2929, %v2921
        %v3554 = vpack.c.b16 %v2930, %v2922
        %v3555 = vpack.c.b16 %v2931, %v2923
        %v3556 = vpack.c.b16 %v2940, %v2932
        %v3557 = vpack.c.b16 %v2941, %v2933
        %v3558 = vpack.c.b16 %v2942, %v2934
        %v3559 = vpack.c.b16 %v2943, %v2935
        %v3560 = vpack.c.b16 %v2944, %v2936
        %v3561 = vpack.c.b16 %v2945, %v2937
        %v3562 = vpack.c.b16 %v2946, %v2938
        %v3563 = vpack.c.b16 %v2947, %v2939
        %v3564 = vpack.c.b16 %v2956, %v2948
        %v3565 = vpack.c.b16 %v2957, %v2949
        %v3566 = vpack.c.b16 %v2958, %v2950
        %v3567 = vpack.c.b16 %v2959, %v2951
        %v3568 = vpack.c.b16 %v2960, %v2952
        %v3569 = vpack.c.b16 %v2961, %v2953
        %v3570 = vpack.c.b16 %v2962, %v2954
        %v3571 = vpack.c.b16 %v2963, %v2955
        %v3572 = vpack.c.b16 %v2972, %v2964
        %v3573 = vpack.c.b16 %v2973, %v2965
        %v3574 = vpack.c.b16 %v2974, %v2966
        %v3575 = vpack.c.b16 %v2975, %v2967
        %v3576 = vpack.c.b16 %v2976, %v2968
        %v3577 = vpack.c.b16 %v2977, %v2969
        %v3578 = vpack.c.b16 %v2978, %v2970
        %v3579 = vpack.c.b16 %v2979, %v2971
        %v3580 = vpack.c.b16 %v2988, %v2980
        %v3581 = vpack.c.b16 %v2989, %v2981
        %v3582 = vpack.c.b16 %v2990, %v2982
        %v3583 = vpack.c.b16 %v2991, %v2983
        %v3584 = vpack.c.b16 %v2992, %v2984
        %v3585 = vpack.c.b16 %v2993, %v2985
        %v3586 = vpack.c.b16 %v2994, %v2986
        %v3587 = vpack.c.b16 %v2995, %v2987
        %v3588 = vpack.c.b16 %v3004, %v2996
        %v3589 = vpack.c.b16 %v3005, %v2997
        %v3590 = vpack.c.b16 %v3006, %v2998
        %v3591 = vpack.c.b16 %v3007, %v2999
        %v3592 = vpack.c.b16 %v3008, %v3000
        %v3593 = vpack.c.b16 %v3009, %v3001
        %v3594 = vpack.c.b16 %v3010, %v3002
        %v3595 = vpack.c.b16 %v3011, %v3003
        %v3596 = vpack.c.b16 %v3020, %v3012
        %v3597 = vpack.c.b16 %v3021, %v3013
        %v3598 = vpack.c.b16 %v3022, %v3014
        %v3599 = vpack.c.b16 %v3023, %v3015
        %v3600 = vpack.c.b16 %v3024, %v3016
        %v3601 = vpack.c.b16 %v3025, %v3017
        %v3602 = vpack.c.b16 %v3026, %v3018
        %v3603 = vpack.c.b16 %v3027, %v3019
        %v3604 = vpack.c.b16 %v3036, %v3028
        %v3605 = vpack.c.b16 %v3037, %v3029
        %v3606 = vpack.c.b16 %v3038, %v3030
        %v3607 = vpack.c.b16 %v3039, %v3031
        %v3608 = vpack.c.b16 %v3040, %v3032
        %v3609 = vpack.c.b16 %v3041, %v3033
        %v3610 = vpack.c.b16 %v3042, %v3034
        %v3611 = vpack.c.b16 %v3043, %v3035
        %v3612 = vpack.c.b16 %v3052, %v3044
        %v3613 = vpack.c.b16 %v3053, %v3045
        %v3614 = vpack.c.b16 %v3054, %v3046
        %v3615 = vpack.c.b16 %v3055, %v3047
        %v3616 = vpack.c.b16 %v3056, %v3048
        %v3617 = vpack.c.b16 %v3057, %v3049
        %v3618 = vpack.c.b16 %v3058, %v3050
        %v3619 = vpack.c.b16 %v3059, %v3051
        %v3620 = vpack.c.b16 %v3068, %v3060
        %v3621 = vpack.c.b16 %v3069, %v3061
        %v3622 = vpack.c.b16 %v3070, %v3062
        %v3623 = vpack.c.b16 %v3071, %v3063
        %v3624 = vpack.c.b16 %v3072, %v3064
        %v3625 = vpack.c.b16 %v3073, %v3065
        %v3626 = vpack.c.b16 %v3074, %v3066
        %v3627 = vpack.c.b16 %v3075, %v3067
        %v3628 = vpack.c.b16 %v3084, %v3076
        %v3629 = vpack.c.b16 %v3085, %v3077
        %v3630 = vpack.c.b16 %v3086, %v3078
        %v3631 = vpack.c.b16 %v3087, %v3079
        %v3632 = vpack.c.b16 %v3088, %v3080
        %v3633 = vpack.c.b16 %v3089, %v3081
        %v3634 = vpack.c.b16 %v3090, %v3082
        %v3635 = vpack.c.b16 %v3091, %v3083
        %v3636 = vpack.c.b16 %v3100, %v3092
        %v3637 = vpack.c.b16 %v3101, %v3093
        %v3638 = vpack.c.b16 %v3102, %v3094
        %v3639 = vpack.c.b16 %v3103, %v3095
        %v3640 = vpack.c.b16 %v3104, %v3096
        %v3641 = vpack.c.b16 %v3105, %v3097
        %v3642 = vpack.c.b16 %v3106, %v3098
        %v3643 = vpack.c.b16 %v3107, %v3099
        %v3644 = vpack.c.b16 %v3116, %v3108
        %v3645 = vpack.c.b16 %v3117, %v3109
        %v3646 = vpack.c.b16 %v3118, %v3110
        %v3647 = vpack.c.b16 %v3119, %v3111
        %v3648 = vpack.c.b16 %v3120, %v3112
        %v3649 = vpack.c.b16 %v3121, %v3113
        %v3650 = vpack.c.b16 %v3122, %v3114
        %v3651 = vpack.c.b16 %v3123, %v3115
        %v3652 = vpack.c.b16 %v3132, %v3124
        %v3653 = vpack.c.b16 %v3133, %v3125
        %v3654 = vpack.c.b16 %v3134, %v3126
        %v3655 = vpack.c.b16 %v3135, %v3127
        %v3656 = vpack.c.b16 %v3136, %v3128
        %v3657 = vpack.c.b16 %v3137, %v3129
        %v3658 = vpack.c.b16 %v3138, %v3130
        %v3659 = vpack.c.b16 %v3139, %v3131
        %v3660 = vpack.c.b16 %v3148, %v3140
        %v3661 = vpack.c.b16 %v3149, %v3141
        %v3662 = vpack.c.b16 %v3150, %v3142
        %v3663 = vpack.c.b16 %v3151, %v3143
        %v3664 = vpack.c.b16 %v3152, %v3144
        %v3665 = vpack.c.b16 %v3153, %v3145
        %v3666 = vpack.c.b16 %v3154, %v3146
        %v3667 = vpack.c.b16 %v3155, %v3147
        %4180 = vmatprep.subr.bf16.mxu0 %v3213
        %4181 = vmatpush1.bf16.msra.mxu0 %v3212
        %4182 = vmatprep.subr.bf16.mxu0 %v3205
        %4183 = vmatpush1.bf16.msra.mxu0 %v3204
        %4184 = vmatprep.subr.bf16.mxu0 %v3197
        %4185 = vmatpush1.bf16.msra.mxu0 %v3196
        %4186 = vmatprep.subr.bf16.mxu0 %v3189
        %4187 = vmatpush1.bf16.msra.mxu0 %v3188
        %4188 = vmatprep.subr.bf16.mxu0 %v3181
        %4189 = vmatpush1.bf16.msra.mxu0 %v3180
        %4190 = vmatprep.subr.bf16.mxu0 %v3173
        %4191 = vmatpush1.bf16.msra.mxu0 %v3172
        %4192 = vmatprep.subr.bf16.mxu0 %v3165
        %4193 = vmatpush1.bf16.msra.mxu0 %v3164
        %4194 = vmatprep.subr.bf16.mxu0 %v3157
        %4195 = vmatpush1.bf16.msra.mxu0 %v3156
        %4196 = vmatprep.subr.bf16.mxu0 %v3277
        %4197 = vmatpush2.bf16.msra.mxu0 %v3276
        %4198 = vmatprep.subr.bf16.mxu0 %v3269
        %4199 = vmatpush2.bf16.msra.mxu0 %v3268
        %4200 = vmatprep.subr.bf16.mxu0 %v3261
        %4201 = vmatpush2.bf16.msra.mxu0 %v3260
        %4202 = vmatprep.subr.bf16.mxu0 %v3253
        %4203 = vmatpush2.bf16.msra.mxu0 %v3252
        %4204 = vmatprep.subr.bf16.mxu0 %v3245
        %4205 = vmatpush2.bf16.msra.mxu0 %v3244
        %4206 = vmatprep.subr.bf16.mxu0 %v3237
        %4207 = vmatpush2.bf16.msra.mxu0 %v3236
        %4208 = vmatprep.subr.bf16.mxu0 %v3229
        %4209 = vmatpush2.bf16.msra.mxu0 %v3228
        %4210 = vmatprep.subr.bf16.mxu0 %v3221
        %4211 = vmatpush2.bf16.msra.mxu0 %v3220
        %4212 = vmatprep.mubr.bf16.mxu0 %v1058
        %4213 = vmatmul.mubr.bf16.gmra.mxu0 %v1057
        %v4214 = vpop.f32.mrf.mxu0
        %v4215 = vadd.f32 %v1583, %v4214
        %v4216 = vpop.f32.mrf.mxu0
        %v4217 = vadd.f32 %v1587, %v4216
        %v4218 = vpop.f32.mrf.mxu0
        %v4219 = vpop.f32.mrf.mxu0
        %4220 = vdwg.mxu0
        %4221 = vmatprep.subr.bf16.mxu0 %v3341
        %4222 = vmatpush1.bf16.msra.mxu0 %v3340
        %4223 = vmatprep.subr.bf16.mxu0 %v3333
        %4224 = vmatpush1.bf16.msra.mxu0 %v3332
        %4225 = vmatprep.subr.bf16.mxu0 %v3325
        %4226 = vmatpush1.bf16.msra.mxu0 %v3324
        %4227 = vmatprep.subr.bf16.mxu0 %v3317
        %4228 = vmatpush1.bf16.msra.mxu0 %v3316
        %4229 = vmatprep.subr.bf16.mxu0 %v3309
        %4230 = vmatpush1.bf16.msra.mxu0 %v3308
        %4231 = vmatprep.subr.bf16.mxu0 %v3301
        %4232 = vmatpush1.bf16.msra.mxu0 %v3300
        %4233 = vmatprep.subr.bf16.mxu0 %v3293
        %4234 = vmatpush1.bf16.msra.mxu0 %v3292
        %4235 = vmatprep.subr.bf16.mxu0 %v3285
        %4236 = vmatpush1.bf16.msra.mxu0 %v3284
        %4237 = vmatprep.subr.bf16.mxu0 %v3405
        %4238 = vmatpush2.bf16.msra.mxu0 %v3404
        %4239 = vmatprep.subr.bf16.mxu0 %v3397
        %4240 = vmatpush2.bf16.msra.mxu0 %v3396
        %4241 = vmatprep.subr.bf16.mxu0 %v3389
        %4242 = vmatpush2.bf16.msra.mxu0 %v3388
        %4243 = vmatprep.subr.bf16.mxu0 %v3381
        %4244 = vmatpush2.bf16.msra.mxu0 %v3380
        %4245 = vmatprep.subr.bf16.mxu0 %v3373
        %4246 = vmatpush2.bf16.msra.mxu0 %v3372
        %4247 = vmatprep.subr.bf16.mxu0 %v3365
        %4248 = vmatpush2.bf16.msra.mxu0 %v3364
        %4249 = vmatprep.subr.bf16.mxu0 %v3357
        %4250 = vmatpush2.bf16.msra.mxu0 %v3356
        %4251 = vmatprep.subr.bf16.mxu0 %v3349
        %4252 = vmatpush2.bf16.msra.mxu0 %v3348
        %4253 = vmatprep.mubr.bf16.mxu0 %v1060
        %4254 = vmatmul.mubr.bf16.gmra.mxu0 %v1059
        %v4255 = vpop.f32.mrf.mxu0
        %v4256 = vadd.f32 %v4215, %v4255
        %v4257 = vpop.f32.mrf.mxu0
        %v4258 = vadd.f32 %v4217, %v4257
        %v4259 = vpop.f32.mrf.mxu0
        %v4260 = vpop.f32.mrf.mxu0
        %4261 = vdwg.mxu0
        %4262 = vmatprep.subr.bf16.mxu0 %v3469
        %4263 = vmatpush1.bf16.msra.mxu0 %v3468
        %4264 = vmatprep.subr.bf16.mxu0 %v3461
        %4265 = vmatpush1.bf16.msra.mxu0 %v3460
        %4266 = vmatprep.subr.bf16.mxu0 %v3453
        %4267 = vmatpush1.bf16.msra.mxu0 %v3452
        %4268 = vmatprep.subr.bf16.mxu0 %v3445
        %4269 = vmatpush1.bf16.msra.mxu0 %v3444
        %4270 = vmatprep.subr.bf16.mxu0 %v3437
        %4271 = vmatpush1.bf16.msra.mxu0 %v3436
        %4272 = vmatprep.subr.bf16.mxu0 %v3429
        %4273 = vmatpush1.bf16.msra.mxu0 %v3428
        %4274 = vmatprep.subr.bf16.mxu0 %v3421
        %4275 = vmatpush1.bf16.msra.mxu0 %v3420
        %4276 = vmatprep.subr.bf16.mxu0 %v3413
        %4277 = vmatpush1.bf16.msra.mxu0 %v3412
        %4278 = vmatprep.subr.bf16.mxu0 %v3533
        %4279 = vmatpush2.bf16.msra.mxu0 %v3532
        %4280 = vmatprep.subr.bf16.mxu0 %v3525
        %4281 = vmatpush2.bf16.msra.mxu0 %v3524
        %4282 = vmatprep.subr.bf16.mxu0 %v3517
        %4283 = vmatpush2.bf16.msra.mxu0 %v3516
        %4284 = vmatprep.subr.bf16.mxu0 %v3509
        %4285 = vmatpush2.bf16.msra.mxu0 %v3508
        %4286 = vmatprep.subr.bf16.mxu0 %v3501
        %4287 = vmatpush2.bf16.msra.mxu0 %v3500
        %4288 = vmatprep.subr.bf16.mxu0 %v3493
        %4289 = vmatpush2.bf16.msra.mxu0 %v3492
        %4290 = vmatprep.subr.bf16.mxu0 %v3485
        %4291 = vmatpush2.bf16.msra.mxu0 %v3484
        %4292 = vmatprep.subr.bf16.mxu0 %v3477
        %4293 = vmatpush2.bf16.msra.mxu0 %v3476
        %4294 = vmatprep.mubr.bf16.mxu0 %v1062
        %4295 = vmatmul.mubr.bf16.gmra.mxu0 %v1061
        %v4296 = vpop.f32.mrf.mxu0
        %v4297 = vadd.f32 %v4256, %v4296
        %v4298 = vpop.f32.mrf.mxu0
        %v4299 = vadd.f32 %v4258, %v4298
        %v4300 = vpop.f32.mrf.mxu0
        %v4301 = vpop.f32.mrf.mxu0
        %4302 = vdwg.mxu0
        %4303 = vmatprep.subr.bf16.mxu0 %v3597
        %4304 = vmatpush1.bf16.msra.mxu0 %v3596
        %4305 = vmatprep.subr.bf16.mxu0 %v3589
        %4306 = vmatpush1.bf16.msra.mxu0 %v3588
        %4307 = vmatprep.subr.bf16.mxu0 %v3581
        %4308 = vmatpush1.bf16.msra.mxu0 %v3580
        %4309 = vmatprep.subr.bf16.mxu0 %v3573
        %4310 = vmatpush1.bf16.msra.mxu0 %v3572
        %4311 = vmatprep.subr.bf16.mxu0 %v3565
        %4312 = vmatpush1.bf16.msra.mxu0 %v3564
        %4313 = vmatprep.subr.bf16.mxu0 %v3557
        %4314 = vmatpush1.bf16.msra.mxu0 %v3556
        %4315 = vmatprep.subr.bf16.mxu0 %v3549
        %4316 = vmatpush1.bf16.msra.mxu0 %v3548
        %4317 = vmatprep.subr.bf16.mxu0 %v3541
        %4318 = vmatpush1.bf16.msra.mxu0 %v3540
        %4319 = vmatprep.subr.bf16.mxu0 %v3661
        %4320 = vmatpush2.bf16.msra.mxu0 %v3660
        %4321 = vmatprep.subr.bf16.mxu0 %v3653
        %4322 = vmatpush2.bf16.msra.mxu0 %v3652
        %4323 = vmatprep.subr.bf16.mxu0 %v3645
        %4324 = vmatpush2.bf16.msra.mxu0 %v3644
        %4325 = vmatprep.subr.bf16.mxu0 %v3637
        %4326 = vmatpush2.bf16.msra.mxu0 %v3636
        %4327 = vmatprep.subr.bf16.mxu0 %v3629
        %4328 = vmatpush2.bf16.msra.mxu0 %v3628
        %4329 = vmatprep.subr.bf16.mxu0 %v3621
        %4330 = vmatpush2.bf16.msra.mxu0 %v3620
        %4331 = vmatprep.subr.bf16.mxu0 %v3613
        %4332 = vmatpush2.bf16.msra.mxu0 %v3612
        %4333 = vmatprep.subr.bf16.mxu0 %v3605
        %4334 = vmatpush2.bf16.msra.mxu0 %v3604
        %4335 = vmatprep.mubr.bf16.mxu0 %v1064
        %4336 = vmatmul.mubr.bf16.gmra.mxu0 %v1063
        %v4337 = vpop.f32.mrf.mxu0
        %v4338 = vadd.f32 %v4297, %v4337
        %v4339 = vpop.f32.mrf.mxu0
        %v4340 = vadd.f32 %v4299, %v4339
        %v4341 = vpop.f32.mrf.mxu0
        %v4342 = vpop.f32.mrf.mxu0
        %4343 = vdwg.mxu0
        %4344 = vmatprep.subr.bf16.mxu0 %v3215
        %4345 = vmatpush1.bf16.msra.mxu0 %v3214
        %4346 = vmatprep.subr.bf16.mxu0 %v3207
        %4347 = vmatpush1.bf16.msra.mxu0 %v3206
        %4348 = vmatprep.subr.bf16.mxu0 %v3199
        %4349 = vmatpush1.bf16.msra.mxu0 %v3198
        %4350 = vmatprep.subr.bf16.mxu0 %v3191
        %4351 = vmatpush1.bf16.msra.mxu0 %v3190
        %4352 = vmatprep.subr.bf16.mxu0 %v3183
        %4353 = vmatpush1.bf16.msra.mxu0 %v3182
        %4354 = vmatprep.subr.bf16.mxu0 %v3175
        %4355 = vmatpush1.bf16.msra.mxu0 %v3174
        %4356 = vmatprep.subr.bf16.mxu0 %v3167
        %4357 = vmatpush1.bf16.msra.mxu0 %v3166
        %4358 = vmatprep.subr.bf16.mxu0 %v3159
        %4359 = vmatpush1.bf16.msra.mxu0 %v3158
        %4360 = vmatprep.subr.bf16.mxu0 %v3279
        %4361 = vmatpush2.bf16.msra.mxu0 %v3278
        %4362 = vmatprep.subr.bf16.mxu0 %v3271
        %4363 = vmatpush2.bf16.msra.mxu0 %v3270
        %4364 = vmatprep.subr.bf16.mxu0 %v3263
        %4365 = vmatpush2.bf16.msra.mxu0 %v3262
        %4366 = vmatprep.subr.bf16.mxu0 %v3255
        %4367 = vmatpush2.bf16.msra.mxu0 %v3254
        %4368 = vmatprep.subr.bf16.mxu0 %v3247
        %4369 = vmatpush2.bf16.msra.mxu0 %v3246
        %4370 = vmatprep.subr.bf16.mxu0 %v3239
        %4371 = vmatpush2.bf16.msra.mxu0 %v3238
        %4372 = vmatprep.subr.bf16.mxu0 %v3231
        %4373 = vmatpush2.bf16.msra.mxu0 %v3230
        %4374 = vmatprep.subr.bf16.mxu0 %v3223
        %4375 = vmatpush2.bf16.msra.mxu0 %v3222
        %4376 = vmatprep.mubr.bf16.mxu0 %v1058
        %4377 = vmatmul.mubr.bf16.gmra.mxu0 %v1057
        %v4378 = vpop.f32.mrf.mxu0
        %v4379 = vadd.f32 %v1591, %v4378
        %v4380 = vpop.f32.mrf.mxu0
        %v4381 = vadd.f32 %v1595, %v4380
        %v4382 = vpop.f32.mrf.mxu0
        %v4383 = vpop.f32.mrf.mxu0
        %4384 = vdwg.mxu0
        %4385 = vmatprep.subr.bf16.mxu0 %v3343
        %4386 = vmatpush1.bf16.msra.mxu0 %v3342
        %4387 = vmatprep.subr.bf16.mxu0 %v3335
        %4388 = vmatpush1.bf16.msra.mxu0 %v3334
        %4389 = vmatprep.subr.bf16.mxu0 %v3327
        %4390 = vmatpush1.bf16.msra.mxu0 %v3326
        %4391 = vmatprep.subr.bf16.mxu0 %v3319
        %4392 = vmatpush1.bf16.msra.mxu0 %v3318
        %4393 = vmatprep.subr.bf16.mxu0 %v3311
        %4394 = vmatpush1.bf16.msra.mxu0 %v3310
        %4395 = vmatprep.subr.bf16.mxu0 %v3303
        %4396 = vmatpush1.bf16.msra.mxu0 %v3302
        %4397 = vmatprep.subr.bf16.mxu0 %v3295
        %4398 = vmatpush1.bf16.msra.mxu0 %v3294
        %4399 = vmatprep.subr.bf16.mxu0 %v3287
        %4400 = vmatpush1.bf16.msra.mxu0 %v3286
        %4401 = vmatprep.subr.bf16.mxu0 %v3407
        %4402 = vmatpush2.bf16.msra.mxu0 %v3406
        %4403 = vmatprep.subr.bf16.mxu0 %v3399
        %4404 = vmatpush2.bf16.msra.mxu0 %v3398
        %4405 = vmatprep.subr.bf16.mxu0 %v3391
        %4406 = vmatpush2.bf16.msra.mxu0 %v3390
        %4407 = vmatprep.subr.bf16.mxu0 %v3383
        %4408 = vmatpush2.bf16.msra.mxu0 %v3382
        %4409 = vmatprep.subr.bf16.mxu0 %v3375
        %4410 = vmatpush2.bf16.msra.mxu0 %v3374
        %4411 = vmatprep.subr.bf16.mxu0 %v3367
        %4412 = vmatpush2.bf16.msra.mxu0 %v3366
        %4413 = vmatprep.subr.bf16.mxu0 %v3359
        %4414 = vmatpush2.bf16.msra.mxu0 %v3358
        %4415 = vmatprep.subr.bf16.mxu0 %v3351
        %4416 = vmatpush2.bf16.msra.mxu0 %v3350
        %4417 = vmatprep.mubr.bf16.mxu0 %v1060
        %4418 = vmatmul.mubr.bf16.gmra.mxu0 %v1059
        %v4419 = vpop.f32.mrf.mxu0
        %v4420 = vadd.f32 %v4379, %v4419
        %v4421 = vpop.f32.mrf.mxu0
        %v4422 = vadd.f32 %v4381, %v4421
        %v4423 = vpop.f32.mrf.mxu0
        %v4424 = vpop.f32.mrf.mxu0
        %4425 = vdwg.mxu0
        %4426 = vmatprep.subr.bf16.mxu0 %v3471
        %4427 = vmatpush1.bf16.msra.mxu0 %v3470
        %4428 = vmatprep.subr.bf16.mxu0 %v3463
        %4429 = vmatpush1.bf16.msra.mxu0 %v3462
        %4430 = vmatprep.subr.bf16.mxu0 %v3455
        %4431 = vmatpush1.bf16.msra.mxu0 %v3454
        %4432 = vmatprep.subr.bf16.mxu0 %v3447
        %4433 = vmatpush1.bf16.msra.mxu0 %v3446
        %4434 = vmatprep.subr.bf16.mxu0 %v3439
        %4435 = vmatpush1.bf16.msra.mxu0 %v3438
        %4436 = vmatprep.subr.bf16.mxu0 %v3431
        %4437 = vmatpush1.bf16.msra.mxu0 %v3430
        %4438 = vmatprep.subr.bf16.mxu0 %v3423
        %4439 = vmatpush1.bf16.msra.mxu0 %v3422
        %4440 = vmatprep.subr.bf16.mxu0 %v3415
        %4441 = vmatpush1.bf16.msra.mxu0 %v3414
        %4442 = vmatprep.subr.bf16.mxu0 %v3535
        %4443 = vmatpush2.bf16.msra.mxu0 %v3534
        %4444 = vmatprep.subr.bf16.mxu0 %v3527
        %4445 = vmatpush2.bf16.msra.mxu0 %v3526
        %4446 = vmatprep.subr.bf16.mxu0 %v3519
        %4447 = vmatpush2.bf16.msra.mxu0 %v3518
        %4448 = vmatprep.subr.bf16.mxu0 %v3511
        %4449 = vmatpush2.bf16.msra.mxu0 %v3510
        %4450 = vmatprep.subr.bf16.mxu0 %v3503
        %4451 = vmatpush2.bf16.msra.mxu0 %v3502
        %4452 = vmatprep.subr.bf16.mxu0 %v3495
        %4453 = vmatpush2.bf16.msra.mxu0 %v3494
        %4454 = vmatprep.subr.bf16.mxu0 %v3487
        %4455 = vmatpush2.bf16.msra.mxu0 %v3486
        %4456 = vmatprep.subr.bf16.mxu0 %v3479
        %4457 = vmatpush2.bf16.msra.mxu0 %v3478
        %4458 = vmatprep.mubr.bf16.mxu0 %v1062
        %4459 = vmatmul.mubr.bf16.gmra.mxu0 %v1061
        %v4460 = vpop.f32.mrf.mxu0
        %v4461 = vadd.f32 %v4420, %v4460
        %v4462 = vpop.f32.mrf.mxu0
        %v4463 = vadd.f32 %v4422, %v4462
        %v4464 = vpop.f32.mrf.mxu0
        %v4465 = vpop.f32.mrf.mxu0
        %4466 = vdwg.mxu0
        %4467 = vmatprep.subr.bf16.mxu0 %v3599
        %4468 = vmatpush1.bf16.msra.mxu0 %v3598
        %4469 = vmatprep.subr.bf16.mxu0 %v3591
        %4470 = vmatpush1.bf16.msra.mxu0 %v3590
        %4471 = vmatprep.subr.bf16.mxu0 %v3583
        %4472 = vmatpush1.bf16.msra.mxu0 %v3582
        %4473 = vmatprep.subr.bf16.mxu0 %v3575
        %4474 = vmatpush1.bf16.msra.mxu0 %v3574
        %4475 = vmatprep.subr.bf16.mxu0 %v3567
        %4476 = vmatpush1.bf16.msra.mxu0 %v3566
        %4477 = vmatprep.subr.bf16.mxu0 %v3559
        %4478 = vmatpush1.bf16.msra.mxu0 %v3558
        %4479 = vmatprep.subr.bf16.mxu0 %v3551
        %4480 = vmatpush1.bf16.msra.mxu0 %v3550
        %4481 = vmatprep.subr.bf16.mxu0 %v3543
        %4482 = vmatpush1.bf16.msra.mxu0 %v3542
        %4483 = vmatprep.subr.bf16.mxu0 %v3663
        %4484 = vmatpush2.bf16.msra.mxu0 %v3662
        %4485 = vmatprep.subr.bf16.mxu0 %v3655
        %4486 = vmatpush2.bf16.msra.mxu0 %v3654
        %4487 = vmatprep.subr.bf16.mxu0 %v3647
        %4488 = vmatpush2.bf16.msra.mxu0 %v3646
        %4489 = vmatprep.subr.bf16.mxu0 %v3639
        %4490 = vmatpush2.bf16.msra.mxu0 %v3638
        %4491 = vmatprep.subr.bf16.mxu0 %v3631
        %4492 = vmatpush2.bf16.msra.mxu0 %v3630
        %4493 = vmatprep.subr.bf16.mxu0 %v3623
        %4494 = vmatpush2.bf16.msra.mxu0 %v3622
        %4495 = vmatprep.subr.bf16.mxu0 %v3615
        %4496 = vmatpush2.bf16.msra.mxu0 %v3614
        %4497 = vmatprep.subr.bf16.mxu0 %v3607
        %4498 = vmatpush2.bf16.msra.mxu0 %v3606
        %4499 = vmatprep.mubr.bf16.mxu0 %v1064
        %4500 = vmatmul.mubr.bf16.gmra.mxu0 %v1063
        %v4501 = vpop.f32.mrf.mxu0
        %v4502 = vadd.f32 %v4461, %v4501
        %v4503 = vpop.f32.mrf.mxu0
        %v4504 = vadd.f32 %v4463, %v4503
        %v4505 = vpop.f32.mrf.mxu0
        %v4506 = vpop.f32.mrf.mxu0
        %4507 = vdwg.mxu0
        %4508 = vmatprep.subr.bf16.mxu0 %v3217
        %4509 = vmatpush1.bf16.msra.mxu0 %v3216
        %4510 = vmatprep.subr.bf16.mxu0 %v3209
        %4511 = vmatpush1.bf16.msra.mxu0 %v3208
        %4512 = vmatprep.subr.bf16.mxu0 %v3201
        %4513 = vmatpush1.bf16.msra.mxu0 %v3200
        %4514 = vmatprep.subr.bf16.mxu0 %v3193
        %4515 = vmatpush1.bf16.msra.mxu0 %v3192
        %4516 = vmatprep.subr.bf16.mxu0 %v3185
        %4517 = vmatpush1.bf16.msra.mxu0 %v3184
        %4518 = vmatprep.subr.bf16.mxu0 %v3177
        %4519 = vmatpush1.bf16.msra.mxu0 %v3176
        %4520 = vmatprep.subr.bf16.mxu0 %v3169
        %4521 = vmatpush1.bf16.msra.mxu0 %v3168
        %4522 = vmatprep.subr.bf16.mxu0 %v3161
        %4523 = vmatpush1.bf16.msra.mxu0 %v3160
        %4524 = vmatprep.subr.bf16.mxu0 %v3281
        %4525 = vmatpush2.bf16.msra.mxu0 %v3280
        %4526 = vmatprep.subr.bf16.mxu0 %v3273
        %4527 = vmatpush2.bf16.msra.mxu0 %v3272
        %4528 = vmatprep.subr.bf16.mxu0 %v3265
        %4529 = vmatpush2.bf16.msra.mxu0 %v3264
        %4530 = vmatprep.subr.bf16.mxu0 %v3257
        %4531 = vmatpush2.bf16.msra.mxu0 %v3256
        %4532 = vmatprep.subr.bf16.mxu0 %v3249
        %4533 = vmatpush2.bf16.msra.mxu0 %v3248
        %4534 = vmatprep.subr.bf16.mxu0 %v3241
        %4535 = vmatpush2.bf16.msra.mxu0 %v3240
        %4536 = vmatprep.subr.bf16.mxu0 %v3233
        %4537 = vmatpush2.bf16.msra.mxu0 %v3232
        %4538 = vmatprep.subr.bf16.mxu0 %v3225
        %4539 = vmatpush2.bf16.msra.mxu0 %v3224
        %4540 = vmatprep.mubr.bf16.mxu0 %v1058
        %4541 = vmatmul.mubr.bf16.gmra.mxu0 %v1057
        %v4542 = vpop.f32.mrf.mxu0
        %v4543 = vadd.f32 %v1599, %v4542
        %v4544 = vpop.f32.mrf.mxu0
        %v4545 = vadd.f32 %v1603, %v4544
        %v4546 = vpop.f32.mrf.mxu0
        %v4547 = vpop.f32.mrf.mxu0
        %4548 = vdwg.mxu0
        %4549 = vmatprep.subr.bf16.mxu0 %v3345
        %4550 = vmatpush1.bf16.msra.mxu0 %v3344
        %4551 = vmatprep.subr.bf16.mxu0 %v3337
        %4552 = vmatpush1.bf16.msra.mxu0 %v3336
        %4553 = vmatprep.subr.bf16.mxu0 %v3329
        %4554 = vmatpush1.bf16.msra.mxu0 %v3328
        %4555 = vmatprep.subr.bf16.mxu0 %v3321
        %4556 = vmatpush1.bf16.msra.mxu0 %v3320
        %4557 = vmatprep.subr.bf16.mxu0 %v3313
        %4558 = vmatpush1.bf16.msra.mxu0 %v3312
        %4559 = vmatprep.subr.bf16.mxu0 %v3305
        %4560 = vmatpush1.bf16.msra.mxu0 %v3304
        %4561 = vmatprep.subr.bf16.mxu0 %v3297
        %4562 = vmatpush1.bf16.msra.mxu0 %v3296
        %4563 = vmatprep.subr.bf16.mxu0 %v3289
        %4564 = vmatpush1.bf16.msra.mxu0 %v3288
        %4565 = vmatprep.subr.bf16.mxu0 %v3409
        %4566 = vmatpush2.bf16.msra.mxu0 %v3408
        %4567 = vmatprep.subr.bf16.mxu0 %v3401
        %4568 = vmatpush2.bf16.msra.mxu0 %v3400
        %4569 = vmatprep.subr.bf16.mxu0 %v3393
        %4570 = vmatpush2.bf16.msra.mxu0 %v3392
        %4571 = vmatprep.subr.bf16.mxu0 %v3385
        %4572 = vmatpush2.bf16.msra.mxu0 %v3384
        %4573 = vmatprep.subr.bf16.mxu0 %v3377
        %4574 = vmatpush2.bf16.msra.mxu0 %v3376
        %4575 = vmatprep.subr.bf16.mxu0 %v3369
        %4576 = vmatpush2.bf16.msra.mxu0 %v3368
        %4577 = vmatprep.subr.bf16.mxu0 %v3361
        %4578 = vmatpush2.bf16.msra.mxu0 %v3360
        %4579 = vmatprep.subr.bf16.mxu0 %v3353
        %4580 = vmatpush2.bf16.msra.mxu0 %v3352
        %4581 = vmatprep.mubr.bf16.mxu0 %v1060
        %4582 = vmatmul.mubr.bf16.gmra.mxu0 %v1059
        %v4583 = vpop.f32.mrf.mxu0
        %v4584 = vadd.f32 %v4543, %v4583
        %v4585 = vpop.f32.mrf.mxu0
        %v4586 = vadd.f32 %v4545, %v4585
        %v4587 = vpop.f32.mrf.mxu0
        %v4588 = vpop.f32.mrf.mxu0
        %4589 = vdwg.mxu0
        %4590 = vmatprep.subr.bf16.mxu0 %v3473
        %4591 = vmatpush1.bf16.msra.mxu0 %v3472
        %4592 = vmatprep.subr.bf16.mxu0 %v3465
        %4593 = vmatpush1.bf16.msra.mxu0 %v3464
        %4594 = vmatprep.subr.bf16.mxu0 %v3457
        %4595 = vmatpush1.bf16.msra.mxu0 %v3456
        %4596 = vmatprep.subr.bf16.mxu0 %v3449
        %4597 = vmatpush1.bf16.msra.mxu0 %v3448
        %4598 = vmatprep.subr.bf16.mxu0 %v3441
        %4599 = vmatpush1.bf16.msra.mxu0 %v3440
        %4600 = vmatprep.subr.bf16.mxu0 %v3433
        %4601 = vmatpush1.bf16.msra.mxu0 %v3432
        %4602 = vmatprep.subr.bf16.mxu0 %v3425
        %4603 = vmatpush1.bf16.msra.mxu0 %v3424
        %4604 = vmatprep.subr.bf16.mxu0 %v3417
        %4605 = vmatpush1.bf16.msra.mxu0 %v3416
        %4606 = vmatprep.subr.bf16.mxu0 %v3537
        %4607 = vmatpush2.bf16.msra.mxu0 %v3536
        %4608 = vmatprep.subr.bf16.mxu0 %v3529
        %4609 = vmatpush2.bf16.msra.mxu0 %v3528
        %4610 = vmatprep.subr.bf16.mxu0 %v3521
        %4611 = vmatpush2.bf16.msra.mxu0 %v3520
        %4612 = vmatprep.subr.bf16.mxu0 %v3513
        %4613 = vmatpush2.bf16.msra.mxu0 %v3512
        %4614 = vmatprep.subr.bf16.mxu0 %v3505
        %4615 = vmatpush2.bf16.msra.mxu0 %v3504
        %4616 = vmatprep.subr.bf16.mxu0 %v3497
        %4617 = vmatpush2.bf16.msra.mxu0 %v3496
        %4618 = vmatprep.subr.bf16.mxu0 %v3489
        %4619 = vmatpush2.bf16.msra.mxu0 %v3488
        %4620 = vmatprep.subr.bf16.mxu0 %v3481
        %4621 = vmatpush2.bf16.msra.mxu0 %v3480
        %4622 = vmatprep.mubr.bf16.mxu0 %v1062
        %4623 = vmatmul.mubr.bf16.gmra.mxu0 %v1061
        %v4624 = vpop.f32.mrf.mxu0
        %v4625 = vadd.f32 %v4584, %v4624
        %v4626 = vpop.f32.mrf.mxu0
        %v4627 = vadd.f32 %v4586, %v4626
        %v4628 = vpop.f32.mrf.mxu0
        %v4629 = vpop.f32.mrf.mxu0
        %4630 = vdwg.mxu0
        %4631 = vmatprep.subr.bf16.mxu0 %v3601
        %4632 = vmatpush1.bf16.msra.mxu0 %v3600
        %4633 = vmatprep.subr.bf16.mxu0 %v3593
        %4634 = vmatpush1.bf16.msra.mxu0 %v3592
        %4635 = vmatprep.subr.bf16.mxu0 %v3585
        %4636 = vmatpush1.bf16.msra.mxu0 %v3584
        %4637 = vmatprep.subr.bf16.mxu0 %v3577
        %4638 = vmatpush1.bf16.msra.mxu0 %v3576
        %4639 = vmatprep.subr.bf16.mxu0 %v3569
        %4640 = vmatpush1.bf16.msra.mxu0 %v3568
        %4641 = vmatprep.subr.bf16.mxu0 %v3561
        %4642 = vmatpush1.bf16.msra.mxu0 %v3560
        %4643 = vmatprep.subr.bf16.mxu0 %v3553
        %4644 = vmatpush1.bf16.msra.mxu0 %v3552
        %4645 = vmatprep.subr.bf16.mxu0 %v3545
        %4646 = vmatpush1.bf16.msra.mxu0 %v3544
        %4647 = vmatprep.subr.bf16.mxu0 %v3665
        %4648 = vmatpush2.bf16.msra.mxu0 %v3664
        %4649 = vmatprep.subr.bf16.mxu0 %v3657
        %4650 = vmatpush2.bf16.msra.mxu0 %v3656
        %4651 = vmatprep.subr.bf16.mxu0 %v3649
        %4652 = vmatpush2.bf16.msra.mxu0 %v3648
        %4653 = vmatprep.subr.bf16.mxu0 %v3641
        %4654 = vmatpush2.bf16.msra.mxu0 %v3640
        %4655 = vmatprep.subr.bf16.mxu0 %v3633
        %4656 = vmatpush2.bf16.msra.mxu0 %v3632
        %4657 = vmatprep.subr.bf16.mxu0 %v3625
        %4658 = vmatpush2.bf16.msra.mxu0 %v3624
        %4659 = vmatprep.subr.bf16.mxu0 %v3617
        %4660 = vmatpush2.bf16.msra.mxu0 %v3616
        %4661 = vmatprep.subr.bf16.mxu0 %v3609
        %4662 = vmatpush2.bf16.msra.mxu0 %v3608
        %4663 = vmatprep.mubr.bf16.mxu0 %v1064
        %4664 = vmatmul.mubr.bf16.gmra.mxu0 %v1063
        %v4665 = vpop.f32.mrf.mxu0
        %v4666 = vadd.f32 %v4625, %v4665
        %v4667 = vpop.f32.mrf.mxu0
        %v4668 = vadd.f32 %v4627, %v4667
        %v4669 = vpop.f32.mrf.mxu0
        %v4670 = vpop.f32.mrf.mxu0
        %4671 = vdwg.mxu0
        %4672 = vmatprep.subr.bf16.mxu0 %v3219
        %4673 = vmatpush1.bf16.msra.mxu0 %v3218
        %4674 = vmatprep.subr.bf16.mxu0 %v3211
        %4675 = vmatpush1.bf16.msra.mxu0 %v3210
        %4676 = vmatprep.subr.bf16.mxu0 %v3203
        %4677 = vmatpush1.bf16.msra.mxu0 %v3202
        %4678 = vmatprep.subr.bf16.mxu0 %v3195
        %4679 = vmatpush1.bf16.msra.mxu0 %v3194
        %4680 = vmatprep.subr.bf16.mxu0 %v3187
        %4681 = vmatpush1.bf16.msra.mxu0 %v3186
        %4682 = vmatprep.subr.bf16.mxu0 %v3179
        %4683 = vmatpush1.bf16.msra.mxu0 %v3178
        %4684 = vmatprep.subr.bf16.mxu0 %v3171
        %4685 = vmatpush1.bf16.msra.mxu0 %v3170
        %4686 = vmatprep.subr.bf16.mxu0 %v3163
        %4687 = vmatpush1.bf16.msra.mxu0 %v3162
        %4688 = vmatprep.subr.bf16.mxu0 %v3283
        %4689 = vmatpush2.bf16.msra.mxu0 %v3282
        %4690 = vmatprep.subr.bf16.mxu0 %v3275
        %4691 = vmatpush2.bf16.msra.mxu0 %v3274
        %4692 = vmatprep.subr.bf16.mxu0 %v3267
        %4693 = vmatpush2.bf16.msra.mxu0 %v3266
        %4694 = vmatprep.subr.bf16.mxu0 %v3259
        %4695 = vmatpush2.bf16.msra.mxu0 %v3258
        %4696 = vmatprep.subr.bf16.mxu0 %v3251
        %4697 = vmatpush2.bf16.msra.mxu0 %v3250
        %4698 = vmatprep.subr.bf16.mxu0 %v3243
        %4699 = vmatpush2.bf16.msra.mxu0 %v3242
        %4700 = vmatprep.subr.bf16.mxu0 %v3235
        %4701 = vmatpush2.bf16.msra.mxu0 %v3234
        %4702 = vmatprep.subr.bf16.mxu0 %v3227
        %4703 = vmatpush2.bf16.msra.mxu0 %v3226
        %4704 = vmatprep.mubr.bf16.mxu0 %v1058
        %4705 = vmatmul.mubr.bf16.gmra.mxu0 %v1057
        %v4706 = vpop.f32.mrf.mxu0
        %v4707 = vadd.f32 %v1607, %v4706
        %v4708 = vpop.f32.mrf.mxu0
        %v4709 = vadd.f32 %v1611, %v4708
        %v4710 = vpop.f32.mrf.mxu0
        %v4711 = vpop.f32.mrf.mxu0
        %4712 = vdwg.mxu0
        %4713 = vmatprep.subr.bf16.mxu0 %v3347
        %4714 = vmatpush1.bf16.msra.mxu0 %v3346
        %4715 = vmatprep.subr.bf16.mxu0 %v3339
        %4716 = vmatpush1.bf16.msra.mxu0 %v3338
        %4717 = vmatprep.subr.bf16.mxu0 %v3331
        %4718 = vmatpush1.bf16.msra.mxu0 %v3330
        %4719 = vmatprep.subr.bf16.mxu0 %v3323
        %4720 = vmatpush1.bf16.msra.mxu0 %v3322
        %4721 = vmatprep.subr.bf16.mxu0 %v3315
        %4722 = vmatpush1.bf16.msra.mxu0 %v3314
        %4723 = vmatprep.subr.bf16.mxu0 %v3307
        %4724 = vmatpush1.bf16.msra.mxu0 %v3306
        %4725 = vmatprep.subr.bf16.mxu0 %v3299
        %4726 = vmatpush1.bf16.msra.mxu0 %v3298
        %4727 = vmatprep.subr.bf16.mxu0 %v3291
        %4728 = vmatpush1.bf16.msra.mxu0 %v3290
        %4729 = vmatprep.subr.bf16.mxu0 %v3411
        %4730 = vmatpush2.bf16.msra.mxu0 %v3410
        %4731 = vmatprep.subr.bf16.mxu0 %v3403
        %4732 = vmatpush2.bf16.msra.mxu0 %v3402
        %4733 = vmatprep.subr.bf16.mxu0 %v3395
        %4734 = vmatpush2.bf16.msra.mxu0 %v3394
        %4735 = vmatprep.subr.bf16.mxu0 %v3387
        %4736 = vmatpush2.bf16.msra.mxu0 %v3386
        %4737 = vmatprep.subr.bf16.mxu0 %v3379
        %4738 = vmatpush2.bf16.msra.mxu0 %v3378
        %4739 = vmatprep.subr.bf16.mxu0 %v3371
        %4740 = vmatpush2.bf16.msra.mxu0 %v3370
        %4741 = vmatprep.subr.bf16.mxu0 %v3363
        %4742 = vmatpush2.bf16.msra.mxu0 %v3362
        %4743 = vmatprep.subr.bf16.mxu0 %v3355
        %4744 = vmatpush2.bf16.msra.mxu0 %v3354
        %4745 = vmatprep.mubr.bf16.mxu0 %v1060
        %4746 = vmatmul.mubr.bf16.gmra.mxu0 %v1059
        %v4747 = vpop.f32.mrf.mxu0
        %v4748 = vadd.f32 %v4707, %v4747
        %v4749 = vpop.f32.mrf.mxu0
        %v4750 = vadd.f32 %v4709, %v4749
        %v4751 = vpop.f32.mrf.mxu0
        %v4752 = vpop.f32.mrf.mxu0
        %4753 = vdwg.mxu0
        %4754 = vmatprep.subr.bf16.mxu0 %v3475
        %4755 = vmatpush1.bf16.msra.mxu0 %v3474
        %4756 = vmatprep.subr.bf16.mxu0 %v3467
        %4757 = vmatpush1.bf16.msra.mxu0 %v3466
        %4758 = vmatprep.subr.bf16.mxu0 %v3459
        %4759 = vmatpush1.bf16.msra.mxu0 %v3458
        %4760 = vmatprep.subr.bf16.mxu0 %v3451
        %4761 = vmatpush1.bf16.msra.mxu0 %v3450
        %4762 = vmatprep.subr.bf16.mxu0 %v3443
        %4763 = vmatpush1.bf16.msra.mxu0 %v3442
        %4764 = vmatprep.subr.bf16.mxu0 %v3435
        %4765 = vmatpush1.bf16.msra.mxu0 %v3434
        %4766 = vmatprep.subr.bf16.mxu0 %v3427
        %4767 = vmatpush1.bf16.msra.mxu0 %v3426
        %4768 = vmatprep.subr.bf16.mxu0 %v3419
        %4769 = vmatpush1.bf16.msra.mxu0 %v3418
        %4770 = vmatprep.subr.bf16.mxu0 %v3539
        %4771 = vmatpush2.bf16.msra.mxu0 %v3538
        %4772 = vmatprep.subr.bf16.mxu0 %v3531
        %4773 = vmatpush2.bf16.msra.mxu0 %v3530
        %4774 = vmatprep.subr.bf16.mxu0 %v3523
        %4775 = vmatpush2.bf16.msra.mxu0 %v3522
        %4776 = vmatprep.subr.bf16.mxu0 %v3515
        %4777 = vmatpush2.bf16.msra.mxu0 %v3514
        %4778 = vmatprep.subr.bf16.mxu0 %v3507
        %4779 = vmatpush2.bf16.msra.mxu0 %v3506
        %4780 = vmatprep.subr.bf16.mxu0 %v3499
        %4781 = vmatpush2.bf16.msra.mxu0 %v3498
        %4782 = vmatprep.subr.bf16.mxu0 %v3491
        %4783 = vmatpush2.bf16.msra.mxu0 %v3490
        %4784 = vmatprep.subr.bf16.mxu0 %v3483
        %4785 = vmatpush2.bf16.msra.mxu0 %v3482
        %4786 = vmatprep.mubr.bf16.mxu0 %v1062
        %4787 = vmatmul.mubr.bf16.gmra.mxu0 %v1061
        %v4788 = vpop.f32.mrf.mxu0
        %v4789 = vadd.f32 %v4748, %v4788
        %v4790 = vpop.f32.mrf.mxu0
        %v4791 = vadd.f32 %v4750, %v4790
        %v4792 = vpop.f32.mrf.mxu0
        %v4793 = vpop.f32.mrf.mxu0
        %4794 = vdwg.mxu0
        %4795 = vmatprep.subr.bf16.mxu0 %v3603
        %4796 = vmatpush1.bf16.msra.mxu0 %v3602
        %4797 = vmatprep.subr.bf16.mxu0 %v3595
        %4798 = vmatpush1.bf16.msra.mxu0 %v3594
        %4799 = vmatprep.subr.bf16.mxu0 %v3587
        %4800 = vmatpush1.bf16.msra.mxu0 %v3586
        %4801 = vmatprep.subr.bf16.mxu0 %v3579
        %4802 = vmatpush1.bf16.msra.mxu0 %v3578
        %4803 = vmatprep.subr.bf16.mxu0 %v3571
        %4804 = vmatpush1.bf16.msra.mxu0 %v3570
        %4805 = vmatprep.subr.bf16.mxu0 %v3563
        %4806 = vmatpush1.bf16.msra.mxu0 %v3562
        %4807 = vmatprep.subr.bf16.mxu0 %v3555
        %4808 = vmatpush1.bf16.msra.mxu0 %v3554
        %4809 = vmatprep.subr.bf16.mxu0 %v3547
        %4810 = vmatpush1.bf16.msra.mxu0 %v3546
        %4811 = vmatprep.subr.bf16.mxu0 %v3667
        %4812 = vmatpush2.bf16.msra.mxu0 %v3666
        %4813 = vmatprep.subr.bf16.mxu0 %v3659
        %4814 = vmatpush2.bf16.msra.mxu0 %v3658
        %4815 = vmatprep.subr.bf16.mxu0 %v3651
        %4816 = vmatpush2.bf16.msra.mxu0 %v3650
        %4817 = vmatprep.subr.bf16.mxu0 %v3643
        %4818 = vmatpush2.bf16.msra.mxu0 %v3642
        %4819 = vmatprep.subr.bf16.mxu0 %v3635
        %4820 = vmatpush2.bf16.msra.mxu0 %v3634
        %4821 = vmatprep.subr.bf16.mxu0 %v3627
        %4822 = vmatpush2.bf16.msra.mxu0 %v3626
        %4823 = vmatprep.subr.bf16.mxu0 %v3619
        %4824 = vmatpush2.bf16.msra.mxu0 %v3618
        %4825 = vmatprep.subr.bf16.mxu0 %v3611
        %4826 = vmatpush2.bf16.msra.mxu0 %v3610
        %4827 = vmatprep.mubr.bf16.mxu0 %v1064
        %4828 = vmatmul.mubr.bf16.gmra.mxu0 %v1063
        %v4829 = vpop.f32.mrf.mxu0
        %v4830 = vadd.f32 %v4789, %v4829
        %v4831 = vpop.f32.mrf.mxu0
        %v4832 = vadd.f32 %v4791, %v4831
        %v4833 = vpop.f32.mrf.mxu0
        %v4834 = vpop.f32.mrf.mxu0
        %4835 = vdwg.mxu0
        %vm4836 = vcmp.ge.f32.partialorder %v4338, 0.0
        %vm4837 = vcmp.ge.f32.partialorder %v4340, 0.0
        %vm4838 = vcmp.ge.f32.partialorder %v4502, 0.0
        %vm4839 = vcmp.ge.f32.partialorder %v4504, 0.0
        %vm4840 = vcmp.ge.f32.partialorder %v4666, 0.0
        %vm4841 = vcmp.ge.f32.partialorder %v4668, 0.0
        %vm4842 = vcmp.ge.f32.partialorder %v4830, 0.0
        %vm4843 = vcmp.ge.f32.partialorder %v4832, 0.0
        %v4844 = vmul.f32 %v4338, 0.05
        %v4845 = vmul.f32 %v4340, 0.05
        %v4846 = vmul.f32 %v4502, 0.05
        %v4847 = vmul.f32 %v4504, 0.05
        %v4848 = vmul.f32 %v4666, 0.05
        %v4849 = vmul.f32 %v4668, 0.05
        %v4850 = vmul.f32 %v4830, 0.05
        %v4851 = vmul.f32 %v4832, 0.05
        %v4852 = vsel %vm4836, %v4338, %v4844
        %v4853 = vsel %vm4837, %v4340, %v4845
        %v4854 = vsel %vm4838, %v4502, %v4846
        %v4855 = vsel %vm4839, %v4504, %v4847
        %v4856 = vsel %vm4840, %v4666, %v4848
        %v4857 = vsel %vm4841, %v4668, %v4849
        %v4858 = vsel %vm4842, %v4830, %v4850
        %v4859 = vsel %vm4843, %v4832, %v4851
        %v4860 = vpack.c.bf16 %v4852, %v4852
        %v4861 = vpack.c.bf16 %v4853, %v4853
        %v4862 = vpack.c.bf16 %v4854, %v4854
        %v4863 = vpack.c.bf16 %v4855, %v4855
        %v4864 = vpack.c.bf16 %v4856, %v4856
        %v4865 = vpack.c.bf16 %v4857, %v4857
        %v4866 = vpack.c.bf16 %v4858, %v4858
        %v4867 = vpack.c.bf16 %v4859, %v4859
        %v4868 = vld [vmem:[#allocation10] sm:$0xf]
        %v4869 = vld [vmem:[#allocation10 + $0x4] sm:$0xf]
        %v4870 = vld [vmem:[#allocation10 + $0x8] sm:$0xf]
        %v4871 = vld [vmem:[#allocation10 + $0xc] sm:$0xf]
        %v4872 = vld [vmem:[#allocation10 + $0x10] sm:$0xf]
        %v4873 = vld [vmem:[#allocation10 + $0x14] sm:$0xf]
        %v4874 = vld [vmem:[#allocation10 + $0x18] sm:$0xf]
        %v4875 = vld [vmem:[#allocation10 + $0x1c] sm:$0xf]
        %v4876 = vld [vmem:[#allocation10 + $0x20] sm:$0xf]
        %v4877 = vld [vmem:[#allocation10 + $0x24] sm:$0xf]
        %v4878 = vld [vmem:[#allocation10 + $0x28] sm:$0xf]
        %v4879 = vld [vmem:[#allocation10 + $0x2c] sm:$0xf]
        %v4880 = vld [vmem:[#allocation10 + $0x30] sm:$0xf]
        %v4881 = vld [vmem:[#allocation10 + $0x34] sm:$0xf]
        %v4882 = vld [vmem:[#allocation10 + $0x38] sm:$0xf]
        %v4883 = vld [vmem:[#allocation10 + $0x3c] sm:$0xf]
        %v4884 = vld [vmem:[#allocation10 + $0x40] sm:$0xf]
        %v4885 = vld [vmem:[#allocation10 + $0x44] sm:$0xf]
        %v4886 = vld [vmem:[#allocation10 + $0x48] sm:$0xf]
        %v4887 = vld [vmem:[#allocation10 + $0x4c] sm:$0xf]
        %v4888 = vld [vmem:[#allocation10 + $0x50] sm:$0xf]
        %v4889 = vld [vmem:[#allocation10 + $0x54] sm:$0xf]
        %v4890 = vld [vmem:[#allocation10 + $0x58] sm:$0xf]
        %v4891 = vld [vmem:[#allocation10 + $0x5c] sm:$0xf]
        %v4892 = vld [vmem:[#allocation10 + $0x60] sm:$0xf]
        %v4893 = vld [vmem:[#allocation10 + $0x64] sm:$0xf]
        %v4894 = vld [vmem:[#allocation10 + $0x68] sm:$0xf]
        %v4895 = vld [vmem:[#allocation10 + $0x6c] sm:$0xf]
        %v4896 = vld [vmem:[#allocation10 + $0x70] sm:$0xf]
        %v4897 = vld [vmem:[#allocation10 + $0x74] sm:$0xf]
        %v4898 = vld [vmem:[#allocation10 + $0x78] sm:$0xf]
        %v4899 = vld [vmem:[#allocation10 + $0x7c] sm:$0xf]
        %v4900 = vld [vmem:[#allocation10 + $0x80] sm:$0xf]
        %v4901 = vld [vmem:[#allocation10 + $0x84] sm:$0xf]
        %v4902 = vld [vmem:[#allocation10 + $0x88] sm:$0xf]
        %v4903 = vld [vmem:[#allocation10 + $0x8c] sm:$0xf]
        %v4904 = vld [vmem:[#allocation10 + $0x90] sm:$0xf]
        %v4905 = vld [vmem:[#allocation10 + $0x94] sm:$0xf]
        %v4906 = vld [vmem:[#allocation10 + $0x98] sm:$0xf]
        %v4907 = vld [vmem:[#allocation10 + $0x9c] sm:$0xf]
        %v4908 = vld [vmem:[#allocation10 + $0xa0] sm:$0xf]
        %v4909 = vld [vmem:[#allocation10 + $0xa4] sm:$0xf]
        %v4910 = vld [vmem:[#allocation10 + $0xa8] sm:$0xf]
        %v4911 = vld [vmem:[#allocation10 + $0xac] sm:$0xf]
        %v4912 = vld [vmem:[#allocation10 + $0xb0] sm:$0xf]
        %v4913 = vld [vmem:[#allocation10 + $0xb4] sm:$0xf]
        %v4914 = vld [vmem:[#allocation10 + $0xb8] sm:$0xf]
        %v4915 = vld [vmem:[#allocation10 + $0xbc] sm:$0xf]
        %v4916 = vld [vmem:[#allocation10 + $0xc0] sm:$0xf]
        %v4917 = vld [vmem:[#allocation10 + $0xc4] sm:$0xf]
        %v4918 = vld [vmem:[#allocation10 + $0xc8] sm:$0xf]
        %v4919 = vld [vmem:[#allocation10 + $0xcc] sm:$0xf]
        %v4920 = vld [vmem:[#allocation10 + $0xd0] sm:$0xf]
        %v4921 = vld [vmem:[#allocation10 + $0xd4] sm:$0xf]
        %v4922 = vld [vmem:[#allocation10 + $0xd8] sm:$0xf]
        %v4923 = vld [vmem:[#allocation10 + $0xdc] sm:$0xf]
        %v4924 = vld [vmem:[#allocation10 + $0xe0] sm:$0xf]
        %v4925 = vld [vmem:[#allocation10 + $0xe4] sm:$0xf]
        %v4926 = vld [vmem:[#allocation10 + $0xe8] sm:$0xf]
        %v4927 = vld [vmem:[#allocation10 + $0xec] sm:$0xf]
        %v4928 = vld [vmem:[#allocation10 + $0xf0] sm:$0xf]
        %v4929 = vld [vmem:[#allocation10 + $0xf4] sm:$0xf]
        %v4930 = vld [vmem:[#allocation10 + $0xf8] sm:$0xf]
        %v4931 = vld [vmem:[#allocation10 + $0xfc] sm:$0xf]
        %v4932 = vld [vmem:[#allocation10 + $0x100] sm:$0xf]
        %v4933 = vld [vmem:[#allocation10 + $0x104] sm:$0xf]
        %v4934 = vld [vmem:[#allocation10 + $0x108] sm:$0xf]
        %v4935 = vld [vmem:[#allocation10 + $0x10c] sm:$0xf]
        %v4936 = vld [vmem:[#allocation10 + $0x110] sm:$0xf]
        %v4937 = vld [vmem:[#allocation10 + $0x114] sm:$0xf]
        %v4938 = vld [vmem:[#allocation10 + $0x118] sm:$0xf]
        %v4939 = vld [vmem:[#allocation10 + $0x11c] sm:$0xf]
        %v4940 = vld [vmem:[#allocation10 + $0x120] sm:$0xf]
        %v4941 = vld [vmem:[#allocation10 + $0x124] sm:$0xf]
        %v4942 = vld [vmem:[#allocation10 + $0x128] sm:$0xf]
        %v4943 = vld [vmem:[#allocation10 + $0x12c] sm:$0xf]
        %v4944 = vld [vmem:[#allocation10 + $0x130] sm:$0xf]
        %v4945 = vld [vmem:[#allocation10 + $0x134] sm:$0xf]
        %v4946 = vld [vmem:[#allocation10 + $0x138] sm:$0xf]
        %v4947 = vld [vmem:[#allocation10 + $0x13c] sm:$0xf]
        %v4948 = vld [vmem:[#allocation10 + $0x140] sm:$0xf]
        %v4949 = vld [vmem:[#allocation10 + $0x144] sm:$0xf]
        %v4950 = vld [vmem:[#allocation10 + $0x148] sm:$0xf]
        %v4951 = vld [vmem:[#allocation10 + $0x14c] sm:$0xf]
        %v4952 = vld [vmem:[#allocation10 + $0x150] sm:$0xf]
        %v4953 = vld [vmem:[#allocation10 + $0x154] sm:$0xf]
        %v4954 = vld [vmem:[#allocation10 + $0x158] sm:$0xf]
        %v4955 = vld [vmem:[#allocation10 + $0x15c] sm:$0xf]
        %v4956 = vld [vmem:[#allocation10 + $0x160] sm:$0xf]
        %v4957 = vld [vmem:[#allocation10 + $0x164] sm:$0xf]
        %v4958 = vld [vmem:[#allocation10 + $0x168] sm:$0xf]
        %v4959 = vld [vmem:[#allocation10 + $0x16c] sm:$0xf]
        %v4960 = vld [vmem:[#allocation10 + $0x170] sm:$0xf]
        %v4961 = vld [vmem:[#allocation10 + $0x174] sm:$0xf]
        %v4962 = vld [vmem:[#allocation10 + $0x178] sm:$0xf]
        %v4963 = vld [vmem:[#allocation10 + $0x17c] sm:$0xf]
        %v4964 = vld [vmem:[#allocation10 + $0x180] sm:$0xf]
        %v4965 = vld [vmem:[#allocation10 + $0x184] sm:$0xf]
        %v4966 = vld [vmem:[#allocation10 + $0x188] sm:$0xf]
        %v4967 = vld [vmem:[#allocation10 + $0x18c] sm:$0xf]
        %v4968 = vld [vmem:[#allocation10 + $0x190] sm:$0xf]
        %v4969 = vld [vmem:[#allocation10 + $0x194] sm:$0xf]
        %v4970 = vld [vmem:[#allocation10 + $0x198] sm:$0xf]
        %v4971 = vld [vmem:[#allocation10 + $0x19c] sm:$0xf]
        %v4972 = vld [vmem:[#allocation10 + $0x1a0] sm:$0xf]
        %v4973 = vld [vmem:[#allocation10 + $0x1a4] sm:$0xf]
        %v4974 = vld [vmem:[#allocation10 + $0x1a8] sm:$0xf]
        %v4975 = vld [vmem:[#allocation10 + $0x1ac] sm:$0xf]
        %v4976 = vld [vmem:[#allocation10 + $0x1b0] sm:$0xf]
        %v4977 = vld [vmem:[#allocation10 + $0x1b4] sm:$0xf]
        %v4978 = vld [vmem:[#allocation10 + $0x1b8] sm:$0xf]
        %v4979 = vld [vmem:[#allocation10 + $0x1bc] sm:$0xf]
        %v4980 = vld [vmem:[#allocation10 + $0x1c0] sm:$0xf]
        %v4981 = vld [vmem:[#allocation10 + $0x1c4] sm:$0xf]
        %v4982 = vld [vmem:[#allocation10 + $0x1c8] sm:$0xf]
        %v4983 = vld [vmem:[#allocation10 + $0x1cc] sm:$0xf]
        %v4984 = vld [vmem:[#allocation10 + $0x1d0] sm:$0xf]
        %v4985 = vld [vmem:[#allocation10 + $0x1d4] sm:$0xf]
        %v4986 = vld [vmem:[#allocation10 + $0x1d8] sm:$0xf]
        %v4987 = vld [vmem:[#allocation10 + $0x1dc] sm:$0xf]
        %v4988 = vld [vmem:[#allocation10 + $0x1e0] sm:$0xf]
        %v4989 = vld [vmem:[#allocation10 + $0x1e4] sm:$0xf]
        %v4990 = vld [vmem:[#allocation10 + $0x1e8] sm:$0xf]
        %v4991 = vld [vmem:[#allocation10 + $0x1ec] sm:$0xf]
        %v4992 = vld [vmem:[#allocation10 + $0x1f0] sm:$0xf]
        %v4993 = vld [vmem:[#allocation10 + $0x1f4] sm:$0xf]
        %v4994 = vld [vmem:[#allocation10 + $0x1f8] sm:$0xf]
        %v4995 = vld [vmem:[#allocation10 + $0x1fc] sm:$0xf]
        %v4996 = vld [vmem:[#allocation14] sm:$0x1]
        %v4997 = vlaneseq
        %v4998 = vshrl.u32 %v4997, 7
        %v4999 = vsub.s32 0, %v4998
        %v5000 = vrot.slane %v4996, %v4999
        %v5129 = vunpack.c.l.b16 %v4868
        %v5130 = vunpack.c.l.b16 %v4869
        %v5131 = vunpack.c.l.b16 %v4870
        %v5132 = vunpack.c.l.b16 %v4871
        %v5133 = vunpack.c.l.b16 %v4872
        %v5134 = vunpack.c.l.b16 %v4873
        %v5135 = vunpack.c.l.b16 %v4874
        %v5136 = vunpack.c.l.b16 %v4875
        %v5137 = vunpack.c.l.b16 %v4876
        %v5138 = vunpack.c.l.b16 %v4877
        %v5139 = vunpack.c.l.b16 %v4878
        %v5140 = vunpack.c.l.b16 %v4879
        %v5141 = vunpack.c.l.b16 %v4880
        %v5142 = vunpack.c.l.b16 %v4881
        %v5143 = vunpack.c.l.b16 %v4882
        %v5144 = vunpack.c.l.b16 %v4883
        %v5145 = vunpack.c.l.b16 %v4884
        %v5146 = vunpack.c.l.b16 %v4885
        %v5147 = vunpack.c.l.b16 %v4886
        %v5148 = vunpack.c.l.b16 %v4887
        %v5149 = vunpack.c.l.b16 %v4888
        %v5150 = vunpack.c.l.b16 %v4889
        %v5151 = vunpack.c.l.b16 %v4890
        %v5152 = vunpack.c.l.b16 %v4891
        %v5153 = vunpack.c.l.b16 %v4892
        %v5154 = vunpack.c.l.b16 %v4893
        %v5155 = vunpack.c.l.b16 %v4894
        %v5156 = vunpack.c.l.b16 %v4895
        %v5157 = vunpack.c.l.b16 %v4896
        %v5158 = vunpack.c.l.b16 %v4897
        %v5159 = vunpack.c.l.b16 %v4898
        %v5160 = vunpack.c.l.b16 %v4899
        %v5161 = vunpack.c.l.b16 %v4900
        %v5162 = vunpack.c.l.b16 %v4901
        %v5163 = vunpack.c.l.b16 %v4902
        %v5164 = vunpack.c.l.b16 %v4903
        %v5165 = vunpack.c.l.b16 %v4904
        %v5166 = vunpack.c.l.b16 %v4905
        %v5167 = vunpack.c.l.b16 %v4906
        %v5168 = vunpack.c.l.b16 %v4907
        %v5169 = vunpack.c.l.b16 %v4908
        %v5170 = vunpack.c.l.b16 %v4909
        %v5171 = vunpack.c.l.b16 %v4910
        %v5172 = vunpack.c.l.b16 %v4911
        %v5173 = vunpack.c.l.b16 %v4912
        %v5174 = vunpack.c.l.b16 %v4913
        %v5175 = vunpack.c.l.b16 %v4914
        %v5176 = vunpack.c.l.b16 %v4915
        %v5177 = vunpack.c.l.b16 %v4916
        %v5178 = vunpack.c.l.b16 %v4917
        %v5179 = vunpack.c.l.b16 %v4918
        %v5180 = vunpack.c.l.b16 %v4919
        %v5181 = vunpack.c.l.b16 %v4920
        %v5182 = vunpack.c.l.b16 %v4921
        %v5183 = vunpack.c.l.b16 %v4922
        %v5184 = vunpack.c.l.b16 %v4923
        %v5185 = vunpack.c.l.b16 %v4924
        %v5186 = vunpack.c.l.b16 %v4925
        %v5187 = vunpack.c.l.b16 %v4926
        %v5188 = vunpack.c.l.b16 %v4927
        %v5189 = vunpack.c.l.b16 %v4928
        %v5190 = vunpack.c.l.b16 %v4929
        %v5191 = vunpack.c.l.b16 %v4930
        %v5192 = vunpack.c.l.b16 %v4931
        %v5193 = vunpack.c.l.b16 %v4932
        %v5194 = vunpack.c.l.b16 %v4933
        %v5195 = vunpack.c.l.b16 %v4934
        %v5196 = vunpack.c.l.b16 %v4935
        %v5197 = vunpack.c.l.b16 %v4936
        %v5198 = vunpack.c.l.b16 %v4937
        %v5199 = vunpack.c.l.b16 %v4938
        %v5200 = vunpack.c.l.b16 %v4939
        %v5201 = vunpack.c.l.b16 %v4940
        %v5202 = vunpack.c.l.b16 %v4941
        %v5203 = vunpack.c.l.b16 %v4942
        %v5204 = vunpack.c.l.b16 %v4943
        %v5205 = vunpack.c.l.b16 %v4944
        %v5206 = vunpack.c.l.b16 %v4945
        %v5207 = vunpack.c.l.b16 %v4946
        %v5208 = vunpack.c.l.b16 %v4947
        %v5209 = vunpack.c.l.b16 %v4948
        %v5210 = vunpack.c.l.b16 %v4949
        %v5211 = vunpack.c.l.b16 %v4950
        %v5212 = vunpack.c.l.b16 %v4951
        %v5213 = vunpack.c.l.b16 %v4952
        %v5214 = vunpack.c.l.b16 %v4953
        %v5215 = vunpack.c.l.b16 %v4954
        %v5216 = vunpack.c.l.b16 %v4955
        %v5217 = vunpack.c.l.b16 %v4956
        %v5218 = vunpack.c.l.b16 %v4957
        %v5219 = vunpack.c.l.b16 %v4958
        %v5220 = vunpack.c.l.b16 %v4959
        %v5221 = vunpack.c.l.b16 %v4960
        %v5222 = vunpack.c.l.b16 %v4961
        %v5223 = vunpack.c.l.b16 %v4962
        %v5224 = vunpack.c.l.b16 %v4963
        %v5225 = vunpack.c.l.b16 %v4964
        %v5226 = vunpack.c.l.b16 %v4965
        %v5227 = vunpack.c.l.b16 %v4966
        %v5228 = vunpack.c.l.b16 %v4967
        %v5229 = vunpack.c.l.b16 %v4968
        %v5230 = vunpack.c.l.b16 %v4969
        %v5231 = vunpack.c.l.b16 %v4970
        %v5232 = vunpack.c.l.b16 %v4971
        %v5233 = vunpack.c.l.b16 %v4972
        %v5234 = vunpack.c.l.b16 %v4973
        %v5235 = vunpack.c.l.b16 %v4974
        %v5236 = vunpack.c.l.b16 %v4975
        %v5237 = vunpack.c.l.b16 %v4976
        %v5238 = vunpack.c.l.b16 %v4977
        %v5239 = vunpack.c.l.b16 %v4978
        %v5240 = vunpack.c.l.b16 %v4979
        %v5241 = vunpack.c.l.b16 %v4980
        %v5242 = vunpack.c.l.b16 %v4981
        %v5243 = vunpack.c.l.b16 %v4982
        %v5244 = vunpack.c.l.b16 %v4983
        %v5245 = vunpack.c.l.b16 %v4984
        %v5246 = vunpack.c.l.b16 %v4985
        %v5247 = vunpack.c.l.b16 %v4986
        %v5248 = vunpack.c.l.b16 %v4987
        %v5249 = vunpack.c.l.b16 %v4988
        %v5250 = vunpack.c.l.b16 %v4989
        %v5251 = vunpack.c.l.b16 %v4990
        %v5252 = vunpack.c.l.b16 %v4991
        %v5253 = vunpack.c.l.b16 %v4992
        %v5254 = vunpack.c.l.b16 %v4993
        %v5255 = vunpack.c.l.b16 %v4994
        %v5256 = vunpack.c.l.b16 %v4995
        %v5257 = vpack.c.b16 %v5130, %v5129
        %v5258 = vpack.c.b16 %v5132, %v5131
        %v5259 = vpack.c.b16 %v5134, %v5133
        %v5260 = vpack.c.b16 %v5136, %v5135
        %v5261 = vpack.c.b16 %v5138, %v5137
        %v5262 = vpack.c.b16 %v5140, %v5139
        %v5263 = vpack.c.b16 %v5142, %v5141
        %v5264 = vpack.c.b16 %v5144, %v5143
        %v5265 = vpack.c.b16 %v5146, %v5145
        %v5266 = vpack.c.b16 %v5148, %v5147
        %v5267 = vpack.c.b16 %v5150, %v5149
        %v5268 = vpack.c.b16 %v5152, %v5151
        %v5269 = vpack.c.b16 %v5154, %v5153
        %v5270 = vpack.c.b16 %v5156, %v5155
        %v5271 = vpack.c.b16 %v5158, %v5157
        %v5272 = vpack.c.b16 %v5160, %v5159
        %v5273 = vpack.c.b16 %v5162, %v5161
        %v5274 = vpack.c.b16 %v5164, %v5163
        %v5275 = vpack.c.b16 %v5166, %v5165
        %v5276 = vpack.c.b16 %v5168, %v5167
        %v5277 = vpack.c.b16 %v5170, %v5169
        %v5278 = vpack.c.b16 %v5172, %v5171
        %v5279 = vpack.c.b16 %v5174, %v5173
        %v5280 = vpack.c.b16 %v5176, %v5175
        %v5281 = vpack.c.b16 %v5178, %v5177
        %v5282 = vpack.c.b16 %v5180, %v5179
        %v5283 = vpack.c.b16 %v5182, %v5181
        %v5284 = vpack.c.b16 %v5184, %v5183
        %v5285 = vpack.c.b16 %v5186, %v5185
        %v5286 = vpack.c.b16 %v5188, %v5187
        %v5287 = vpack.c.b16 %v5190, %v5189
        %v5288 = vpack.c.b16 %v5192, %v5191
        %v5289 = vpack.c.b16 %v5194, %v5193
        %v5290 = vpack.c.b16 %v5196, %v5195
        %v5291 = vpack.c.b16 %v5198, %v5197
        %v5292 = vpack.c.b16 %v5200, %v5199
        %v5293 = vpack.c.b16 %v5202, %v5201
        %v5294 = vpack.c.b16 %v5204, %v5203
        %v5295 = vpack.c.b16 %v5206, %v5205
        %v5296 = vpack.c.b16 %v5208, %v5207
        %v5297 = vpack.c.b16 %v5210, %v5209
        %v5298 = vpack.c.b16 %v5212, %v5211
        %v5299 = vpack.c.b16 %v5214, %v5213
        %v5300 = vpack.c.b16 %v5216, %v5215
        %v5301 = vpack.c.b16 %v5218, %v5217
        %v5302 = vpack.c.b16 %v5220, %v5219
        %v5303 = vpack.c.b16 %v5222, %v5221
        %v5304 = vpack.c.b16 %v5224, %v5223
        %v5305 = vpack.c.b16 %v5226, %v5225
        %v5306 = vpack.c.b16 %v5228, %v5227
        %v5307 = vpack.c.b16 %v5230, %v5229
        %v5308 = vpack.c.b16 %v5232, %v5231
        %v5309 = vpack.c.b16 %v5234, %v5233
        %v5310 = vpack.c.b16 %v5236, %v5235
        %v5311 = vpack.c.b16 %v5238, %v5237
        %v5312 = vpack.c.b16 %v5240, %v5239
        %v5313 = vpack.c.b16 %v5242, %v5241
        %v5314 = vpack.c.b16 %v5244, %v5243
        %v5315 = vpack.c.b16 %v5246, %v5245
        %v5316 = vpack.c.b16 %v5248, %v5247
        %v5317 = vpack.c.b16 %v5250, %v5249
        %v5318 = vpack.c.b16 %v5252, %v5251
        %v5319 = vpack.c.b16 %v5254, %v5253
        %v5320 = vpack.c.b16 %v5256, %v5255
        %5385 = vmatprep.subr.bf16.mxu0 0
        %5386 = vmatpush1.bf16.msra.mxu0 %v5264
        %5387 = vmatprep.subr.bf16.mxu0 0
        %5388 = vmatpush1.bf16.msra.mxu0 %v5263
        %5389 = vmatprep.subr.bf16.mxu0 0
        %5390 = vmatpush1.bf16.msra.mxu0 %v5262
        %5391 = vmatprep.subr.bf16.mxu0 0
        %5392 = vmatpush1.bf16.msra.mxu0 %v5261
        %5393 = vmatprep.subr.bf16.mxu0 0
        %5394 = vmatpush1.bf16.msra.mxu0 %v5260
        %5395 = vmatprep.subr.bf16.mxu0 0
        %5396 = vmatpush1.bf16.msra.mxu0 %v5259
        %5397 = vmatprep.subr.bf16.mxu0 0
        %5398 = vmatpush1.bf16.msra.mxu0 %v5258
        %5399 = vmatprep.subr.bf16.mxu0 0
        %5400 = vmatpush1.bf16.msra.mxu0 %v5257
        %5401 = vmatprep.subr.bf16.mxu0 0
        %5402 = vmatpush2.bf16.msra.mxu0 %v5272
        %5403 = vmatprep.subr.bf16.mxu0 0
        %5404 = vmatpush2.bf16.msra.mxu0 %v5271
        %5405 = vmatprep.subr.bf16.mxu0 0
        %5406 = vmatpush2.bf16.msra.mxu0 %v5270
        %5407 = vmatprep.subr.bf16.mxu0 0
        %5408 = vmatpush2.bf16.msra.mxu0 %v5269
        %5409 = vmatprep.subr.bf16.mxu0 0
        %5410 = vmatpush2.bf16.msra.mxu0 %v5268
        %5411 = vmatprep.subr.bf16.mxu0 0
        %5412 = vmatpush2.bf16.msra.mxu0 %v5267
        %5413 = vmatprep.subr.bf16.mxu0 0
        %5414 = vmatpush2.bf16.msra.mxu0 %v5266
        %5415 = vmatprep.subr.bf16.mxu0 0
        %5416 = vmatpush2.bf16.msra.mxu0 %v5265
        %5417 = vmatprep.mubr.bf16.mxu0 %v4861
        %5418 = vmatmul.mubr.bf16.gmra.mxu0 %v4860
        %v5419 = vpop.f32.mrf.mxu0
        %v5420 = vadd.f32 %v5000, %v5419
        %v5421 = vpop.f32.mrf.mxu0
        %v5422 = vpop.f32.mrf.mxu0
        %v5423 = vpop.f32.mrf.mxu0
        %5424 = vdwg.mxu0
        %5425 = vmatprep.subr.bf16.mxu0 0
        %5426 = vmatpush1.bf16.msra.mxu0 %v5280
        %5427 = vmatprep.subr.bf16.mxu0 0
        %5428 = vmatpush1.bf16.msra.mxu0 %v5279
        %5429 = vmatprep.subr.bf16.mxu0 0
        %5430 = vmatpush1.bf16.msra.mxu0 %v5278
        %5431 = vmatprep.subr.bf16.mxu0 0
        %5432 = vmatpush1.bf16.msra.mxu0 %v5277
        %5433 = vmatprep.subr.bf16.mxu0 0
        %5434 = vmatpush1.bf16.msra.mxu0 %v5276
        %5435 = vmatprep.subr.bf16.mxu0 0
        %5436 = vmatpush1.bf16.msra.mxu0 %v5275
        %5437 = vmatprep.subr.bf16.mxu0 0
        %5438 = vmatpush1.bf16.msra.mxu0 %v5274
        %5439 = vmatprep.subr.bf16.mxu0 0
        %5440 = vmatpush1.bf16.msra.mxu0 %v5273
        %5441 = vmatprep.subr.bf16.mxu0 0
        %5442 = vmatpush2.bf16.msra.mxu0 %v5288
        %5443 = vmatprep.subr.bf16.mxu0 0
        %5444 = vmatpush2.bf16.msra.mxu0 %v5287
        %5445 = vmatprep.subr.bf16.mxu0 0
        %5446 = vmatpush2.bf16.msra.mxu0 %v5286
        %5447 = vmatprep.subr.bf16.mxu0 0
        %5448 = vmatpush2.bf16.msra.mxu0 %v5285
        %5449 = vmatprep.subr.bf16.mxu0 0
        %5450 = vmatpush2.bf16.msra.mxu0 %v5284
        %5451 = vmatprep.subr.bf16.mxu0 0
        %5452 = vmatpush2.bf16.msra.mxu0 %v5283
        %5453 = vmatprep.subr.bf16.mxu0 0
        %5454 = vmatpush2.bf16.msra.mxu0 %v5282
        %5455 = vmatprep.subr.bf16.mxu0 0
        %5456 = vmatpush2.bf16.msra.mxu0 %v5281
        %5457 = vmatprep.mubr.bf16.mxu0 %v4863
        %5458 = vmatmul.mubr.bf16.gmra.mxu0 %v4862
        %v5459 = vpop.f32.mrf.mxu0
        %v5460 = vadd.f32 %v5420, %v5459
        %v5461 = vpop.f32.mrf.mxu0
        %v5462 = vpop.f32.mrf.mxu0
        %v5463 = vpop.f32.mrf.mxu0
        %5464 = vdwg.mxu0
        %5465 = vmatprep.subr.bf16.mxu0 0
        %5466 = vmatpush1.bf16.msra.mxu0 %v5296
        %5467 = vmatprep.subr.bf16.mxu0 0
        %5468 = vmatpush1.bf16.msra.mxu0 %v5295
        %5469 = vmatprep.subr.bf16.mxu0 0
        %5470 = vmatpush1.bf16.msra.mxu0 %v5294
        %5471 = vmatprep.subr.bf16.mxu0 0
        %5472 = vmatpush1.bf16.msra.mxu0 %v5293
        %5473 = vmatprep.subr.bf16.mxu0 0
        %5474 = vmatpush1.bf16.msra.mxu0 %v5292
        %5475 = vmatprep.subr.bf16.mxu0 0
        %5476 = vmatpush1.bf16.msra.mxu0 %v5291
        %5477 = vmatprep.subr.bf16.mxu0 0
        %5478 = vmatpush1.bf16.msra.mxu0 %v5290
        %5479 = vmatprep.subr.bf16.mxu0 0
        %5480 = vmatpush1.bf16.msra.mxu0 %v5289
        %5481 = vmatprep.subr.bf16.mxu0 0
        %5482 = vmatpush2.bf16.msra.mxu0 %v5304
        %5483 = vmatprep.subr.bf16.mxu0 0
        %5484 = vmatpush2.bf16.msra.mxu0 %v5303
        %5485 = vmatprep.subr.bf16.mxu0 0
        %5486 = vmatpush2.bf16.msra.mxu0 %v5302
        %5487 = vmatprep.subr.bf16.mxu0 0
        %5488 = vmatpush2.bf16.msra.mxu0 %v5301
        %5489 = vmatprep.subr.bf16.mxu0 0
        %5490 = vmatpush2.bf16.msra.mxu0 %v5300
        %5491 = vmatprep.subr.bf16.mxu0 0
        %5492 = vmatpush2.bf16.msra.mxu0 %v5299
        %5493 = vmatprep.subr.bf16.mxu0 0
        %5494 = vmatpush2.bf16.msra.mxu0 %v5298
        %5495 = vmatprep.subr.bf16.mxu0 0
        %5496 = vmatpush2.bf16.msra.mxu0 %v5297
        %5497 = vmatprep.mubr.bf16.mxu0 %v4865
        %5498 = vmatmul.mubr.bf16.gmra.mxu0 %v4864
        %v5499 = vpop.f32.mrf.mxu0
        %v5500 = vadd.f32 %v5460, %v5499
        %v5501 = vpop.f32.mrf.mxu0
        %v5502 = vpop.f32.mrf.mxu0
        %v5503 = vpop.f32.mrf.mxu0
        %5504 = vdwg.mxu0
        %5505 = vmatprep.subr.bf16.mxu0 0
        %5506 = vmatpush1.bf16.msra.mxu0 %v5312
        %5507 = vmatprep.subr.bf16.mxu0 0
        %5508 = vmatpush1.bf16.msra.mxu0 %v5311
        %5509 = vmatprep.subr.bf16.mxu0 0
        %5510 = vmatpush1.bf16.msra.mxu0 %v5310
        %5511 = vmatprep.subr.bf16.mxu0 0
        %5512 = vmatpush1.bf16.msra.mxu0 %v5309
        %5513 = vmatprep.subr.bf16.mxu0 0
        %5514 = vmatpush1.bf16.msra.mxu0 %v5308
        %5515 = vmatprep.subr.bf16.mxu0 0
        %5516 = vmatpush1.bf16.msra.mxu0 %v5307
        %5517 = vmatprep.subr.bf16.mxu0 0
        %5518 = vmatpush1.bf16.msra.mxu0 %v5306
        %5519 = vmatprep.subr.bf16.mxu0 0
        %5520 = vmatpush1.bf16.msra.mxu0 %v5305
        %5521 = vmatprep.subr.bf16.mxu0 0
        %5522 = vmatpush2.bf16.msra.mxu0 %v5320
        %5523 = vmatprep.subr.bf16.mxu0 0
        %5524 = vmatpush2.bf16.msra.mxu0 %v5319
        %5525 = vmatprep.subr.bf16.mxu0 0
        %5526 = vmatpush2.bf16.msra.mxu0 %v5318
        %5527 = vmatprep.subr.bf16.mxu0 0
        %5528 = vmatpush2.bf16.msra.mxu0 %v5317
        %5529 = vmatprep.subr.bf16.mxu0 0
        %5530 = vmatpush2.bf16.msra.mxu0 %v5316
        %5531 = vmatprep.subr.bf16.mxu0 0
        %5532 = vmatpush2.bf16.msra.mxu0 %v5315
        %5533 = vmatprep.subr.bf16.mxu0 0
        %5534 = vmatpush2.bf16.msra.mxu0 %v5314
        %5535 = vmatprep.subr.bf16.mxu0 0
        %5536 = vmatpush2.bf16.msra.mxu0 %v5313
        %5537 = vmatprep.mubr.bf16.mxu0 %v4867
        %5538 = vmatmul.mubr.bf16.gmra.mxu0 %v4866
        %v5539 = vpop.f32.mrf.mxu0
        %v5540 = vadd.f32 %v5500, %v5539
        %v5541 = vpop.f32.mrf.mxu0
        %v5542 = vpop.f32.mrf.mxu0
        %v5543 = vpop.f32.mrf.mxu0
        %5544 = vdwg.mxu0
        %vm5545 = vcmp.ge.f32.partialorder %v5540, 0.0
        %v5546 = vmul.f32 %v5540, 0.05
        %v5547 = vsel %vm5545, %v5540, %v5546
        %v5548 = vld [vmem:[%s379] sm:$0xf]
        %v5549 = vld [vmem:[#allocation11] sm:$0xf]
        %v5550 = vld [vmem:[#allocation11 + $0x4] sm:$0xf]
        %v5551 = vld [vmem:[#allocation11 + $0x8] sm:$0xf]
        %v5552 = vld [vmem:[#allocation11 + $0xc] sm:$0xf]
        %v5553 = vld [vmem:[#allocation11 + $0x10] sm:$0xf]
        %v5554 = vld [vmem:[#allocation11 + $0x14] sm:$0xf]
        %v5555 = vld [vmem:[#allocation11 + $0x18] sm:$0xf]
        %v5556 = vld [vmem:[#allocation11 + $0x1c] sm:$0xf]
        %v5557 = vld [vmem:[#allocation11 + $0x20] sm:$0xf]
        %v5558 = vld [vmem:[#allocation11 + $0x24] sm:$0xf]
        %v5559 = vld [vmem:[#allocation11 + $0x28] sm:$0xf]
        %v5560 = vld [vmem:[#allocation11 + $0x2c] sm:$0xf]
        %v5561 = vld [vmem:[#allocation11 + $0x30] sm:$0xf]
        %v5562 = vld [vmem:[#allocation11 + $0x34] sm:$0xf]
        %v5563 = vld [vmem:[#allocation11 + $0x38] sm:$0xf]
        %v5564 = vld [vmem:[#allocation11 + $0x3c] sm:$0xf]
        %v5565 = vld [vmem:[#allocation14 + $0x1] sm:$0x1]
        %v5566 = vlaneseq
        %v5567 = vshrl.u32 %v5566, 7
        %v5568 = vsub.s32 0, %v5567
        %v5569 = vrot.slane %v5565, %v5568
        %v5586 = vunpack.c.l.b16 %v5549
        %v5587 = vunpack.c.l.b16 %v5550
        %v5588 = vunpack.c.l.b16 %v5551
        %v5589 = vunpack.c.l.b16 %v5552
        %v5590 = vunpack.c.l.b16 %v5553
        %v5591 = vunpack.c.l.b16 %v5554
        %v5592 = vunpack.c.l.b16 %v5555
        %v5593 = vunpack.c.l.b16 %v5556
        %v5594 = vunpack.c.l.b16 %v5557
        %v5595 = vunpack.c.l.b16 %v5558
        %v5596 = vunpack.c.l.b16 %v5559
        %v5597 = vunpack.c.l.b16 %v5560
        %v5598 = vunpack.c.l.b16 %v5561
        %v5599 = vunpack.c.l.b16 %v5562
        %v5600 = vunpack.c.l.b16 %v5563
        %v5601 = vunpack.c.l.b16 %v5564
        %v5602 = vpack.c.b16 %v5587, %v5586
        %v5603 = vpack.c.b16 %v5589, %v5588
        %v5604 = vpack.c.b16 %v5591, %v5590
        %v5605 = vpack.c.b16 %v5593, %v5592
        %v5606 = vpack.c.b16 %v5595, %v5594
        %v5607 = vpack.c.b16 %v5597, %v5596
        %v5608 = vpack.c.b16 %v5599, %v5598
        %v5609 = vpack.c.b16 %v5601, %v5600
        %5618 = vmatprep.subr.bf16.mxu0 0
        %5619 = vmatpush1.bf16.msra.mxu0 %v5609
        %5620 = vmatprep.subr.bf16.mxu0 0
        %5621 = vmatpush1.bf16.msra.mxu0 %v5608
        %5622 = vmatprep.subr.bf16.mxu0 0
        %5623 = vmatpush1.bf16.msra.mxu0 %v5607
        %5624 = vmatprep.subr.bf16.mxu0 0
        %5625 = vmatpush1.bf16.msra.mxu0 %v5606
        %5626 = vmatprep.subr.bf16.mxu0 0
        %5627 = vmatpush1.bf16.msra.mxu0 %v5605
        %5628 = vmatprep.subr.bf16.mxu0 0
        %5629 = vmatpush1.bf16.msra.mxu0 %v5604
        %5630 = vmatprep.subr.bf16.mxu0 0
        %5631 = vmatpush1.bf16.msra.mxu0 %v5603
        %5632 = vmatprep.subr.bf16.mxu0 0
        %5633 = vmatpush1.bf16.msra.mxu0 %v5602
        %5634 = vmatprep.subr.bf16.mxu0 0
        %5635 = vmatpush2.bf16.msra.mxu0 0
        %5636 = vmatprep.subr.bf16.mxu0 0
        %5637 = vmatpush2.bf16.msra.mxu0 0
        %5638 = vmatprep.subr.bf16.mxu0 0
        %5639 = vmatpush2.bf16.msra.mxu0 0
        %5640 = vmatprep.subr.bf16.mxu0 0
        %5641 = vmatpush2.bf16.msra.mxu0 0
        %5642 = vmatprep.subr.bf16.mxu0 0
        %5643 = vmatpush2.bf16.msra.mxu0 0
        %5644 = vmatprep.subr.bf16.mxu0 0
        %5645 = vmatpush2.bf16.msra.mxu0 0
        %5646 = vmatprep.subr.bf16.mxu0 0
        %5647 = vmatpush2.bf16.msra.mxu0 0
        %5648 = vmatprep.subr.bf16.mxu0 0
        %5649 = vmatpush2.bf16.msra.mxu0 0
        %5650 = vmatprep.mubr.bf16.mxu0 0
        %5651 = vmatmul.mubr.bf16.gmra.mxu0 %v5548
        %v5652 = vpop.f32.mrf.mxu0
        %v5653 = vadd.f32 %v5569, %v5652
        %v5654 = vpop.f32.mrf.mxu0
        %v5655 = vpop.f32.mrf.mxu0
        %v5656 = vpop.f32.mrf.mxu0
        %5657 = vdwg.mxu0
        %v5658 = vadd.f32 %v5547, %v5653
        %vm5659 = vcmp.ge.f32.partialorder %v5658, 0.0
        %v5660 = vmul.f32 %v5658, 0.05
        %v5661 = vsel %vm5659, %v5658, %v5660
        %5662 = vst [vmem:[%s440] sm:$0xff] %v5661
        %s5663 = sand.u32 %s217, 1
        %s5664 = scalar_lea.sflag [#allocation4], %s5663
        %s5665 = sand.u32 %s217, 1
        %s5666 = smul.addr %s5665, 8
        %s5667 = scalar_lea.vmem [#allocation16], %s5666
        // Predicated region
        $region85: #{tpu_custom_call.1} parent=51 // pred_check
          %p5668 = pneg %p227
        $region86: #{tpu_custom_call.1} parent=51 // pred_check_branch
          %5670 = sbr.rel (%p5668) target = $region88
        $region87: #{tpu_custom_call.1} parent=51 // pred_region
          %s5672 = ssub.s32 128, 128
          %5673 = vsyncadd %s5664, %s5672
          %s5674 = smul.addr %s31, 128
          %s5675 = scalar_lea.hbm %s8, %s5674
          %s5677 = sshll.u32 %s5667, 4
          %s5678 = int_to_ptr.vmem [resolvable:$true] %s5677
          %5680 = dma.vmem_to_hbm [thread:$0]  %s5678, 128, %s5675, %s5664
        $region88: #{tpu_custom_call.1} parent=51 // pred_fallthru
          _
      $region52: #{tpu_custom_call.1} parent=5 // pred_fallthru
        _
      %p5681 = scmp.le.s32.totalorder 2, %s26
      // Predicated region
      $region89: #{tpu_custom_call.1} parent=5 // pred_check
        %p5682 = pneg %p5681
      $region90: #{tpu_custom_call.1} parent=5 // pred_check_branch
        %5684 = sbr.rel (%p5682) target = $region92
      $region91: #{tpu_custom_call.1} parent=5 // pred_region
        %s5685 = ssub.s32 %s26, 2
        // Predicated region
        $region93: #{tpu_custom_call.1} parent=91 // pred_check
          %p5686 = pneg %p233
        $region94: #{tpu_custom_call.1} parent=91 // pred_check_branch
          %5688 = sbr.rel (%p5686) target = $region96
        $region95: #{tpu_custom_call.1} parent=91 // pred_region
          %s5689 = sand.u32 %s218, 1
          %s5690 = scalar_lea.sflag [#allocation4], %s5689
          %s5691 = sand.u32 %s218, 1
          %s5692 = smul.addr %s5691, 8
          %s5693 = scalar_lea.vmem [#allocation16], %s5692
          %5694 = dma.done %s5690, 128
        $region96: #{tpu_custom_call.1} parent=91 // pred_fallthru
          _
      $region92: #{tpu_custom_call.1} parent=5 // pred_fallthru
        _
    $region6: #{tpu_custom_call.1} parent=1 // loop_footer
      %s30 = sadd.s32 1, %s26
    $region7: #{tpu_custom_call.1} parent=1 // loop_footer_branch
      %25 = sbr.rel target = $region3
    $region8: #{tpu_custom_call.1} parent=1 // loop_exit
      _
    %5695 = vsyncpa [#allocation3], 1
    %s5696 = scalar_lea.sflag [#allocation3], 1
    %5697 = vsyncpa %s5696, 1
    %5698 = vsyncpa [#allocation6], 1
    %s5699 = scalar_lea.sflag [#allocation6], 1
    %5700 = vsyncpa %s5699, 1
    %5701 = vsyncpa [#allocation9], 1
    %5702 = vsyncpa [#allocation12], 1
    %5703 = vsyncpa [#allocation15], 1
    %5704 = vsyncpa [#allocation4], 1
    %s5705 = scalar_lea.sflag [#allocation4], 1
    %5706 = vsyncpa %s5705, 1

</llo_original>
